<compile_context>
chip_gen: v5e
topology: v5e:2x2
jax: 0.10.0
libtpu: 0.0.40
codegen_flags: <defaults>
</compile_context>

<pallas_src>
import functools

import jax
import jax.numpy as jnp
from jax import lax
from jax.experimental import pallas as pl
from jax.experimental.pallas import tpu as pltpu  # noqa: F401  (TPU backend)

LATENT_DIM = 32


# ----------------------------- Pallas kernels ------------------------------


def _matmul_bias_act_kernel(w_ref, x_ref, b_ref, o_ref, *, act):
    """o = act(w @ x + b).  w:(Cout,K) bf16, x:(K,M) bf16, b:(Cout,1) f32, o:(Cout,M) f32."""
    acc = jnp.dot(w_ref[...], x_ref[...], preferred_element_type=jnp.float32)
    acc = acc + b_ref[...]
    if act == "relu":
        acc = jnp.maximum(acc, 0.0)
    elif act == "sigmoid":
        acc = 1.0 / (1.0 + jnp.exp(-acc))  # exact sigmoid: keep recon strictly in [0, 1]
    o_ref[...] = acc


def pallas_matmul_t(w, x_t, b, act="none"):
    """w:(Cout,K), x_t:(K,M), b:(Cout,) -> act(w @ x_t + b[:,None]) as f32 (Cout, M).

    Lane-dense output (spatial M on lanes). Operands cast to bf16; all blocks are
    whole arrays (everything fits VMEM for this model), so no grid and no M padding.
    """
    cout, _ = w.shape
    _, m = x_t.shape
    return pl.pallas_call(
        functools.partial(_matmul_bias_act_kernel, act=act),
        out_shape=jax.ShapeDtypeStruct((cout, m), jnp.float32),
    )(w.astype(jnp.bfloat16),
      x_t.astype(jnp.bfloat16),
      b.reshape(cout, 1).astype(jnp.float32))


def _fc_reparam_dec_kernel(flat_ref, wmu_ref, bmu_ref, wlv_ref, blv_ref,
                           eps_ref, wdec_ref, bdec_ref,
                           mu_ref, logvar_ref, z_ref, d_ref):
    """Fused: mu/logvar projections, z = mu + eps*exp(0.5*logvar), d = relu(z @ Wdec + b)."""
    flat = flat_ref[...]                                                  # (N, 1568) bf16
    mu = jnp.dot(flat, wmu_ref[...], preferred_element_type=jnp.float32) + bmu_ref[...]
    logvar = jnp.dot(flat, wlv_ref[...], preferred_element_type=jnp.float32) + blv_ref[...]
    z = mu + eps_ref[...] * jnp.exp(0.5 * logvar)
    d = jnp.dot(z.astype(jnp.bfloat16), wdec_ref[...],
                preferred_element_type=jnp.float32) + bdec_ref[...]
    mu_ref[...] = mu
    logvar_ref[...] = logvar
    z_ref[...] = z
    d_ref[...] = jnp.maximum(d, 0.0)


def pallas_encode_reparam_decode_fc(flat, w_mu, b_mu, w_lv, b_lv, eps, w_dec, b_dec):
    n = flat.shape[0]
    hid = w_dec.shape[1]
    out_shapes = (
        jax.ShapeDtypeStruct((n, LATENT_DIM), jnp.float32),   # mu
        jax.ShapeDtypeStruct((n, LATENT_DIM), jnp.float32),   # logvar
        jax.ShapeDtypeStruct((n, LATENT_DIM), jnp.float32),   # z
        jax.ShapeDtypeStruct((n, hid), jnp.float32),          # relu(decoder_fc(z))
    )
    return pl.pallas_call(_fc_reparam_dec_kernel, out_shape=out_shapes)(
        flat.astype(jnp.bfloat16),
        w_mu.astype(jnp.bfloat16), b_mu.reshape(1, -1).astype(jnp.float32),
        w_lv.astype(jnp.bfloat16), b_lv.reshape(1, -1).astype(jnp.float32),
        eps.astype(jnp.float32),
        w_dec.astype(jnp.bfloat16), b_dec.reshape(1, -1).astype(jnp.float32),
    )


# ----------------------------- conv glue (JAX) -----------------------------


def _im2col_t(x, k, s):
    """x:(N,C,H,W) -> cols^T (C*k*k, N*Ho*Wo); K ordered (c, kh, kw) to match the
    PyTorch weight flatten, M ordered (n, oi, oj)."""
    n, c, h, w = x.shape
    ho = (h - k) // s + 1
    wo = (w - k) // s + 1
    patches = [x[:, :, a:a + s * ho:s, b:b + s * wo:s]
               for a in range(k) for b in range(k)]              # each (N, C, Ho, Wo)
    cols = jnp.stack(patches, axis=0).reshape(k, k, n, c, ho, wo)
    cols = cols.transpose(3, 0, 1, 2, 4, 5).reshape(c * k * k, n * ho * wo)
    return cols, ho, wo


def _space_to_depth(x, w, s):
    """Rewrite a stride-s conv (s | k, s | H, s | W) as an equivalent stride-1 conv."""
    n, c, h, wd = x.shape
    cout, cin, k, _ = w.shape
    xs = x.reshape(n, c, h // s, s, wd // s, s)
    xs = xs.transpose(0, 1, 3, 5, 2, 4).reshape(n, c * s * s, h // s, wd // s)
    ws = w.reshape(cout, cin, k // s, s, k // s, s)
    ws = ws.transpose(0, 1, 3, 5, 2, 4).reshape(cout, cin * s * s, k // s, k // s)
    return xs, ws


def conv2d(x, w, b, stride, act):
    """PyTorch-layout Conv2d (VALID padding): w (Cout, Cin, k, k)."""
    cout, cin, k, _ = w.shape
    n, _, h, wd = x.shape
    if stride > 1 and k % stride == 0 and h % stride == 0 and wd % stride == 0:
        x, w = _space_to_depth(x, w, stride)
        cout, cin, k, _ = w.shape
        stride = 1
    cols_t, ho, wo = _im2col_t(x, k, stride)
    w_flat = w.reshape(cout, cin * k * k)
    y_t = pallas_matmul_t(w_flat, cols_t, b, act=act)            # (Cout, N*Ho*Wo)
    return y_t.reshape(cout, x.shape[0], ho, wo).transpose(1, 0, 2, 3)


def conv_transpose2d(x, w, b, stride, act):
    """PyTorch-layout ConvTranspose2d (padding=0): w (Cin, Cout, k, k).

    For stride | kernel (true for all three deconvs here), rewritten as a stride-1
    conv with Cout*s*s output channels on the raw (undilated) input followed by a
    pixel shuffle — no zero-dilated input and no k^2-duplicated im2col.
    """
    cin, cout, k, _ = w.shape
    s = stride
    assert k % s == 0, "pixel-shuffle rewrite requires stride | kernel"
    m = k // s
    # w2[(co, ri, rj), ci, a, b] = w[ci, co, s*(m-1-a)+ri, s*(m-1-b)+rj]
    w6 = w.reshape(cin, cout, m, s, m, s)           # [ci, co, t, ri, u, rj], di = s*t + ri
    w6 = jnp.flip(w6, axis=(2, 4))                  # t -> a = m-1-t, u -> b = m-1-u
    w2 = w6.transpose(1, 3, 5, 0, 2, 4).reshape(cout * s * s, cin, m, m)
    b2 = jnp.broadcast_to(b[:, None], (cout, s * s)).reshape(cout * s * s)
    xp = jnp.pad(x, ((0, 0), (0, 0), (m - 1, m - 1), (m - 1, m - 1)))
    y = conv2d(xp, w2, b2, 1, act)                  # (N, Cout*s*s, Hq, Wq)
    n, _, hq, wq = y.shape
    y = y.reshape(n, cout, s, s, hq, wq).transpose(0, 1, 4, 2, 5, 3)
    return y.reshape(n, cout, hq * s, wq * s)       # (N, Cout, (H-1)*s + k, ...)


# ----------------------------- VAE parameters ------------------------------


def init_params(key):
    # Mirrors init_weights(): weight ~ N(0, 0.1), bias = 0 (applied after layer_init).
    ks = jax.random.split(key, 9)
    n = lambda k, s: 0.1 * jax.random.normal(k, s, jnp.float32)
    return {
        "conv1_w": n(ks[0], (16, 4, 8, 8)), "conv1_b": jnp.zeros((16,), jnp.float32),
        "conv2_w": n(ks[1], (32, 16, 4, 4)), "conv2_b": jnp.zeros((32,), jnp.float32),
        "conv3_w": n(ks[2], (32, 32, 3, 3)), "conv3_b": jnp.zeros((32,), jnp.float32),
        "fc_mu_w": n(ks[3], (LATENT_DIM, 32 * 7 * 7)), "fc_mu_b": jnp.zeros((LATENT_DIM,), jnp.float32),
        "fc_logvar_w": n(ks[4], (LATENT_DIM, 32 * 7 * 7)), "fc_logvar_b": jnp.zeros((LATENT_DIM,), jnp.float32),
        "dec_fc_w": n(ks[5], (32 * 7 * 7, LATENT_DIM)), "dec_fc_b": jnp.zeros((32 * 7 * 7,), jnp.float32),
        "deconv1_w": n(ks[6], (32, 32, 3, 3)), "deconv1_b": jnp.zeros((32,), jnp.float32),
        "deconv2_w": n(ks[7], (32, 16, 4, 4)), "deconv2_b": jnp.zeros((16,), jnp.float32),
        "deconv3_w": n(ks[8], (16, 4, 8, 8)), "deconv3_b": jnp.zeros((4,), jnp.float32),
    }


# ----------------------------- VAE forward ---------------------------------


def vae_forward(params, x, eps):
    # encoder_cnn
    h = conv2d(x, params["conv1_w"], params["conv1_b"], 4, "relu")   # (N, 16, 20, 20)
    h = conv2d(h, params["conv2_w"], params["conv2_b"], 2, "relu")   # (N, 32, 9, 9)
    h = conv2d(h, params["conv3_w"], params["conv3_b"], 1, "relu")   # (N, 32, 7, 7)
    n = x.shape[0]
    flat = h.reshape(n, -1)                                          # nn.Flatten -> (N, 1568)
    # encode + reparameterize + decoder_fc(+ReLU): one fused Pallas call
    # (eps drawn deterministically outside; torch uses randn_like)
    mu, logvar, z, d = pallas_encode_reparam_decode_fc(
        flat,
        params["fc_mu_w"].T, params["fc_mu_b"],
        params["fc_logvar_w"].T, params["fc_logvar_b"],
        eps,
        params["dec_fc_w"].T, params["dec_fc_b"])
    d = d.reshape(n, 32, 7, 7)                                       # nn.Unflatten(1, (32, 7, 7))
    d = conv_transpose2d(d, params["deconv1_w"], params["deconv1_b"], 1, "relu")      # (N, 32, 9, 9)
    d = conv_transpose2d(d, params["deconv2_w"], params["deconv2_b"], 2, "relu")      # (N, 16, 20, 20)
    recon = conv_transpose2d(d, params["deconv3_w"], params["deconv3_b"], 4, "sigmoid")  # (N, 4, 84, 84)
    return recon, mu, logvar, z


# --------------------------------- main -------------------------------------

if __name__ == "__main__":
    key = jax.random.PRNGKey(0)
    pk, xk, ek = jax.random.split(key, 3)
    params = init_params(pk)

    # 32*7*7 flatten in the module implies 84x84 spatial input (Atari-style), 4 channels.
    x = jax.random.uniform(xk, (2, 4, 84, 84), jnp.float32)
    eps = jax.random.normal(ek, (2, LATENT_DIM), jnp.float32)

    recon, mu, logvar, z = jax.jit(vae_forward)(params, x, eps)
    jax.block_until_ready((recon, mu, logvar, z))

    # sanity 1: conv1 (space-to-depth + Pallas bf16 matmul) vs XLA strided conv
    ref1 = lax.conv_general_dilated(
        x, params["conv1_w"], (4, 4), "VALID",
        dimension_numbers=("NCHW", "OIHW", "NCHW"),
        precision=lax.Precision.HIGHEST,
    ) + params["conv1_b"][None, :, None, None]
    ref1 = jnp.maximum(ref1, 0.0)
    got1 = conv2d(x, params["conv1_w"], params["conv1_b"], 4, "relu")
    assert jnp.allclose(got1, ref1, atol=5e-2, rtol=5e-2), "conv1 mismatch vs XLA reference"

    # sanity 2: deconv3 (pixel-shuffle rewrite + Pallas bf16 matmul) vs XLA dilated-conv reference
    t = jax.random.normal(jax.random.PRNGKey(42), (2, 16, 20, 20), jnp.float32)
    w3, b3 = params["deconv3_w"], params["deconv3_b"]
    got3 = conv_transpose2d(t, w3, b3, 4, "none")
    ref3 = lax.conv_general_dilated(
        t, jnp.flip(w3, (2, 3)).transpose(1, 0, 2, 3), (1, 1),
        [(7, 7), (7, 7)], lhs_dilation=(4, 4),
        dimension_numbers=("NCHW", "OIHW", "NCHW"),
        precision=lax.Precision.HIGHEST,
    ) + b3[None, :, None, None]
    assert jnp.allclose(got3, ref3, atol=5e-2, rtol=5e-2), "deconv3 mismatch vs XLA reference"

    assert recon.shape == (2, 4, 84, 84)
    assert mu.shape == (2, LATENT_DIM) and logvar.shape == (2, LATENT_DIM)
    assert z.shape == (2, LATENT_DIM)
    assert bool(jnp.all(jnp.isfinite(recon)))
    assert bool(jnp.all((recon >= 0.0) & (recon <= 1.0)))  # sigmoid output range

    print("KERNEL_OK")
</pallas_src>

<mosaic_0001>
module attributes {stable_mosaic.version = 11 : i64} {
  func.func @_matmul_bias_act_kernel(%arg0: memref<16x256xbf16, #tpu.memory_space<vmem>>, %arg1: memref<256x800xbf16, #tpu.memory_space<vmem>>, %arg2: memref<16x1xf32, #tpu.memory_space<vmem>>, %arg3: memref<16x800xf32, #tpu.memory_space<vmem>>) attributes {dimension_semantics = [], scalar_prefetch = 0 : i64, scratch_operands = 0 : i64, tpu.core_type = #tpu.core_type<tc>} {
    %c0 = arith.constant 0 : index
    %c0_0 = arith.constant 0 : index
    %0 = vector.load %arg0[%c0, %c0_0] : memref<16x256xbf16, #tpu.memory_space<vmem>>, vector<16x256xbf16>
    %c0_1 = arith.constant 0 : index
    %c0_2 = arith.constant 0 : index
    %1 = vector.load %arg1[%c0_1, %c0_2] : memref<256x800xbf16, #tpu.memory_space<vmem>>, vector<256x800xbf16>
    %cst = arith.constant dense<0.000000e+00> : vector<16x800xf32>
    %2 = tpu.matmul %0, %1, %cst {dimension_numbers = #tpu.dot_dimension_numbers<[1], [0], [0], [1], [0, 0, 1, 1], [], []>} : vector<16x256xbf16>, vector<256x800xbf16>, vector<16x800xf32> -> vector<16x800xf32>
    %c0_3 = arith.constant 0 : index
    %c0_4 = arith.constant 0 : index
    %3 = vector.load %arg2[%c0_3, %c0_4] : memref<16x1xf32, #tpu.memory_space<vmem>>, vector<16x1xf32>
    %4 = vector.broadcast %3 : vector<16x1xf32> to vector<16x800xf32>
    %5 = arith.addf %2, %4 : vector<16x800xf32>
    %cst_5 = arith.constant 0.000000e+00 : f32
    %6 = vector.broadcast %cst_5 : f32 to vector<16x800xf32>
    %7 = arith.maximumf %5, %6 : vector<16x800xf32>
    %c0_6 = arith.constant 0 : index
    %c0_7 = arith.constant 0 : index
    %8 = vector.load %arg3[%c0_6, %c0_7] : memref<16x800xf32, #tpu.memory_space<vmem>>, vector<16x800xf32>
    tpu.vector_store %arg3[%c0_6, %c0_7], %7 {strides = array<i32>} : memref<16x800xf32, #tpu.memory_space<vmem>>, vector<16x800xf32>,
    return
  }
}

module attributes {stable_mosaic.version = 11 : i64} {
  func.func @_matmul_bias_act_kernel(%arg0: memref<32x256xbf16, #tpu.memory_space<vmem>>, %arg1: memref<256x162xbf16, #tpu.memory_space<vmem>>, %arg2: memref<32x1xf32, #tpu.memory_space<vmem>>, %arg3: memref<32x162xf32, #tpu.memory_space<vmem>>) attributes {dimension_semantics = [], scalar_prefetch = 0 : i64, scratch_operands = 0 : i64, tpu.core_type = #tpu.core_type<tc>} {
    %c0 = arith.constant 0 : index
    %c0_0 = arith.constant 0 : index
    %0 = vector.load %arg0[%c0, %c0_0] : memref<32x256xbf16, #tpu.memory_space<vmem>>, vector<32x256xbf16>
    %c0_1 = arith.constant 0 : index
    %c0_2 = arith.constant 0 : index
    %1 = vector.load %arg1[%c0_1, %c0_2] : memref<256x162xbf16, #tpu.memory_space<vmem>>, vector<256x162xbf16>
    %cst = arith.constant dense<0.000000e+00> : vector<32x162xf32>
    %2 = tpu.matmul %0, %1, %cst {dimension_numbers = #tpu.dot_dimension_numbers<[1], [0], [0], [1], [0, 0, 1, 1], [], []>} : vector<32x256xbf16>, vector<256x162xbf16>, vector<32x162xf32> -> vector<32x162xf32>
    %c0_3 = arith.constant 0 : index
    %c0_4 = arith.constant 0 : index
    %3 = vector.load %arg2[%c0_3, %c0_4] : memref<32x1xf32, #tpu.memory_space<vmem>>, vector<32x1xf32>
    %4 = vector.broadcast %3 : vector<32x1xf32> to vector<32x162xf32>
    %5 = arith.addf %2, %4 : vector<32x162xf32>
    %cst_5 = arith.constant 0.000000e+00 : f32
    %6 = vector.broadcast %cst_5 : f32 to vector<32x162xf32>
    %7 = arith.maximumf %5, %6 : vector<32x162xf32>
    %c0_6 = arith.constant 0 : index
    %c0_7 = arith.constant 0 : index
    %8 = vector.load %arg3[%c0_6, %c0_7] : memref<32x162xf32, #tpu.memory_space<vmem>>, vector<32x162xf32>
    tpu.vector_store %arg3[%c0_6, %c0_7], %7 {strides = array<i32>} : memref<32x162xf32, #tpu.memory_space<vmem>>, vector<32x162xf32>,
    return
  }
}

module attributes {stable_mosaic.version = 11 : i64} {
  func.func @_matmul_bias_act_kernel(%arg0: memref<32x288xbf16, #tpu.memory_space<vmem>>, %arg1: memref<288x98xbf16, #tpu.memory_space<vmem>>, %arg2: memref<32x1xf32, #tpu.memory_space<vmem>>, %arg3: memref<32x98xf32, #tpu.memory_space<vmem>>) attributes {dimension_semantics = [], scalar_prefetch = 0 : i64, scratch_operands = 0 : i64, tpu.core_type = #tpu.core_type<tc>} {
    %c0 = arith.constant 0 : index
    %c0_0 = arith.constant 0 : index
    %0 = vector.load %arg0[%c0, %c0_0] : memref<32x288xbf16, #tpu.memory_space<vmem>>, vector<32x288xbf16>
    %c0_1 = arith.constant 0 : index
    %c0_2 = arith.constant 0 : index
    %1 = vector.load %arg1[%c0_1, %c0_2] : memref<288x98xbf16, #tpu.memory_space<vmem>>, vector<288x98xbf16>
    %cst = arith.constant dense<0.000000e+00> : vector<32x98xf32>
    %2 = tpu.matmul %0, %1, %cst {dimension_numbers = #tpu.dot_dimension_numbers<[1], [0], [0], [1], [0, 0, 1, 1], [], []>} : vector<32x288xbf16>, vector<288x98xbf16>, vector<32x98xf32> -> vector<32x98xf32>
    %c0_3 = arith.constant 0 : index
    %c0_4 = arith.constant 0 : index
    %3 = vector.load %arg2[%c0_3, %c0_4] : memref<32x1xf32, #tpu.memory_space<vmem>>, vector<32x1xf32>
    %4 = vector.broadcast %3 : vector<32x1xf32> to vector<32x98xf32>
    %5 = arith.addf %2, %4 : vector<32x98xf32>
    %cst_5 = arith.constant 0.000000e+00 : f32
    %6 = vector.broadcast %cst_5 : f32 to vector<32x98xf32>
    %7 = arith.maximumf %5, %6 : vector<32x98xf32>
    %c0_6 = arith.constant 0 : index
    %c0_7 = arith.constant 0 : index
    %8 = vector.load %arg3[%c0_6, %c0_7] : memref<32x98xf32, #tpu.memory_space<vmem>>, vector<32x98xf32>
    tpu.vector_store %arg3[%c0_6, %c0_7], %7 {strides = array<i32>} : memref<32x98xf32, #tpu.memory_space<vmem>>, vector<32x98xf32>,
    return
  }
}

module attributes {stable_mosaic.version = 11 : i64} {
  func.func @_fc_reparam_dec_kernel(%arg0: memref<2x1568xbf16, #tpu.memory_space<vmem>>, %arg1: memref<1568x32xbf16, #tpu.memory_space<vmem>>, %arg2: memref<1x32xf32, #tpu.memory_space<vmem>>, %arg3: memref<1568x32xbf16, #tpu.memory_space<vmem>>, %arg4: memref<1x32xf32, #tpu.memory_space<vmem>>, %arg5: memref<2x32xf32, #tpu.memory_space<vmem>>, %arg6: memref<32x1568xbf16, #tpu.memory_space<vmem>>, %arg7: memref<1x1568xf32, #tpu.memory_space<vmem>>, %arg8: memref<2x32xf32, #tpu.memory_space<vmem>>, %arg9: memref<2x32xf32, #tpu.memory_space<vmem>>, %arg10: memref<2x32xf32, #tpu.memory_space<vmem>>, %arg11: memref<2x1568xf32, #tpu.memory_space<vmem>>) attributes {dimension_semantics = [], scalar_prefetch = 0 : i64, scratch_operands = 0 : i64, tpu.core_type = #tpu.core_type<tc>} {
    %c0 = arith.constant 0 : index
    %c0_0 = arith.constant 0 : index
    %0 = vector.load %arg0[%c0, %c0_0] : memref<2x1568xbf16, #tpu.memory_space<vmem>>, vector<2x1568xbf16>
    %c0_1 = arith.constant 0 : index
    %c0_2 = arith.constant 0 : index
    %1 = vector.load %arg1[%c0_1, %c0_2] : memref<1568x32xbf16, #tpu.memory_space<vmem>>, vector<1568x32xbf16>
    %cst = arith.constant dense<0.000000e+00> : vector<2x32xf32>
    %2 = tpu.matmul %0, %1, %cst {dimension_numbers = #tpu.dot_dimension_numbers<[1], [0], [0], [1], [0, 0, 1, 1], [], []>} : vector<2x1568xbf16>, vector<1568x32xbf16>, vector<2x32xf32> -> vector<2x32xf32>
    %c0_3 = arith.constant 0 : index
    %c0_4 = arith.constant 0 : index
    %3 = vector.load %arg2[%c0_3, %c0_4] : memref<1x32xf32, #tpu.memory_space<vmem>>, vector<1x32xf32>
    %4 = vector.broadcast %3 : vector<1x32xf32> to vector<2x32xf32>
    %5 = arith.addf %2, %4 : vector<2x32xf32>
    %c0_5 = arith.constant 0 : index
    %c0_6 = arith.constant 0 : index
    %6 = vector.load %arg3[%c0_5, %c0_6] : memref<1568x32xbf16, #tpu.memory_space<vmem>>, vector<1568x32xbf16>
    %cst_7 = arith.constant dense<0.000000e+00> : vector<2x32xf32>
    %7 = tpu.matmul %0, %6, %cst_7 {dimension_numbers = #tpu.dot_dimension_numbers<[1], [0], [0], [1], [0, 0, 1, 1], [], []>} : vector<2x1568xbf16>, vector<1568x32xbf16>, vector<2x32xf32> -> vector<2x32xf32>
    %c0_8 = arith.constant 0 : index
    %c0_9 = arith.constant 0 : index
    %8 = vector.load %arg4[%c0_8, %c0_9] : memref<1x32xf32, #tpu.memory_space<vmem>>, vector<1x32xf32>
    %9 = vector.broadcast %8 : vector<1x32xf32> to vector<2x32xf32>
    %10 = arith.addf %7, %9 : vector<2x32xf32>
    %c0_10 = arith.constant 0 : index
    %c0_11 = arith.constant 0 : index
    %11 = vector.load %arg5[%c0_10, %c0_11] : memref<2x32xf32, #tpu.memory_space<vmem>>, vector<2x32xf32>
    %cst_12 = arith.constant 5.000000e-01 : f32
    %12 = vector.broadcast %cst_12 : f32 to vector<2x32xf32>
    %13 = arith.mulf %12, %10 : vector<2x32xf32>
    %14 = math.exp %13 : vector<2x32xf32>
    %15 = arith.mulf %11, %14 : vector<2x32xf32>
    %16 = arith.addf %5, %15 : vector<2x32xf32>
    %17 = arith.truncf %16 : vector<2x32xf32> to vector<2x32xbf16>
    %c0_13 = arith.constant 0 : index
    %c0_14 = arith.constant 0 : index
    %18 = vector.load %arg6[%c0_13, %c0_14] : memref<32x1568xbf16, #tpu.memory_space<vmem>>, vector<32x1568xbf16>
    %cst_15 = arith.constant dense<0.000000e+00> : vector<2x1568xf32>
    %19 = tpu.matmul %17, %18, %cst_15 {dimension_numbers = #tpu.dot_dimension_numbers<[1], [0], [0], [1], [0, 0, 1, 1], [], []>} : vector<2x32xbf16>, vector<32x1568xbf16>, vector<2x1568xf32> -> vector<2x1568xf32>
    %c0_16 = arith.constant 0 : index
    %c0_17 = arith.constant 0 : index
    %20 = vector.load %arg7[%c0_16, %c0_17] : memref<1x1568xf32, #tpu.memory_space<vmem>>, vector<1x1568xf32>
    %21 = vector.broadcast %20 : vector<1x1568xf32> to vector<2x1568xf32>
    %22 = arith.addf %19, %21 : vector<2x1568xf32>
    %c0_18 = arith.constant 0 : index
    %c0_19 = arith.constant 0 : index
    %23 = vector.load %arg8[%c0_18, %c0_19] : memref<2x32xf32, #tpu.memory_space<vmem>>, vector<2x32xf32>
    tpu.vector_store %arg8[%c0_18, %c0_19], %5 {strides = array<i32>} : memref<2x32xf32, #tpu.memory_space<vmem>>, vector<2x32xf32>,
    %c0_20 = arith.constant 0 : index
    %c0_21 = arith.constant 0 : index
    %24 = vector.load %arg9[%c0_20, %c0_21] : memref<2x32xf32, #tpu.memory_space<vmem>>, vector<2x32xf32>
    tpu.vector_store %arg9[%c0_20, %c0_21], %10 {strides = array<i32>} : memref<2x32xf32, #tpu.memory_space<vmem>>, vector<2x32xf32>,
    %c0_22 = arith.constant 0 : index
    %c0_23 = arith.constant 0 : index
    %25 = vector.load %arg10[%c0_22, %c0_23] : memref<2x32xf32, #tpu.memory_space<vmem>>, vector<2x32xf32>
    tpu.vector_store %arg10[%c0_22, %c0_23], %16 {strides = array<i32>} : memref<2x32xf32, #tpu.memory_space<vmem>>, vector<2x32xf32>,
    %cst_24 = arith.constant 0.000000e+00 : f32
    %26 = vector.broadcast %cst_24 : f32 to vector<2x1568xf32>
    %27 = arith.maximumf %22, %26 : vector<2x1568xf32>
    %c0_25 = arith.constant 0 : index
    %c0_26 = arith.constant 0 : index
    %28 = vector.load %arg11[%c0_25, %c0_26] : memref<2x1568xf32, #tpu.memory_space<vmem>>, vector<2x1568xf32>
    tpu.vector_store %arg11[%c0_25, %c0_26], %27 {strides = array<i32>} : memref<2x1568xf32, #tpu.memory_space<vmem>>, vector<2x1568xf32>,
    return
  }
}

module attributes {stable_mosaic.version = 11 : i64} {
  func.func @_matmul_bias_act_kernel(%arg0: memref<32x288xbf16, #tpu.memory_space<vmem>>, %arg1: memref<288x162xbf16, #tpu.memory_space<vmem>>, %arg2: memref<32x1xf32, #tpu.memory_space<vmem>>, %arg3: memref<32x162xf32, #tpu.memory_space<vmem>>) attributes {dimension_semantics = [], scalar_prefetch = 0 : i64, scratch_operands = 0 : i64, tpu.core_type = #tpu.core_type<tc>} {
    %c0 = arith.constant 0 : index
    %c0_0 = arith.constant 0 : index
    %0 = vector.load %arg0[%c0, %c0_0] : memref<32x288xbf16, #tpu.memory_space<vmem>>, vector<32x288xbf16>
    %c0_1 = arith.constant 0 : index
    %c0_2 = arith.constant 0 : index
    %1 = vector.load %arg1[%c0_1, %c0_2] : memref<288x162xbf16, #tpu.memory_space<vmem>>, vector<288x162xbf16>
    %cst = arith.constant dense<0.000000e+00> : vector<32x162xf32>
    %2 = tpu.matmul %0, %1, %cst {dimension_numbers = #tpu.dot_dimension_numbers<[1], [0], [0], [1], [0, 0, 1, 1], [], []>} : vector<32x288xbf16>, vector<288x162xbf16>, vector<32x162xf32> -> vector<32x162xf32>
    %c0_3 = arith.constant 0 : index
    %c0_4 = arith.constant 0 : index
    %3 = vector.load %arg2[%c0_3, %c0_4] : memref<32x1xf32, #tpu.memory_space<vmem>>, vector<32x1xf32>
    %4 = vector.broadcast %3 : vector<32x1xf32> to vector<32x162xf32>
    %5 = arith.addf %2, %4 : vector<32x162xf32>
    %cst_5 = arith.constant 0.000000e+00 : f32
    %6 = vector.broadcast %cst_5 : f32 to vector<32x162xf32>
    %7 = arith.maximumf %5, %6 : vector<32x162xf32>
    %c0_6 = arith.constant 0 : index
    %c0_7 = arith.constant 0 : index
    %8 = vector.load %arg3[%c0_6, %c0_7] : memref<32x162xf32, #tpu.memory_space<vmem>>, vector<32x162xf32>
    tpu.vector_store %arg3[%c0_6, %c0_7], %7 {strides = array<i32>} : memref<32x162xf32, #tpu.memory_space<vmem>>, vector<32x162xf32>,
    return
  }
}

module attributes {stable_mosaic.version = 11 : i64} {
  func.func @_matmul_bias_act_kernel(%arg0: memref<64x128xbf16, #tpu.memory_space<vmem>>, %arg1: memref<128x200xbf16, #tpu.memory_space<vmem>>, %arg2: memref<64x1xf32, #tpu.memory_space<vmem>>, %arg3: memref<64x200xf32, #tpu.memory_space<vmem>>) attributes {dimension_semantics = [], scalar_prefetch = 0 : i64, scratch_operands = 0 : i64, tpu.core_type = #tpu.core_type<tc>} {
    %c0 = arith.constant 0 : index
    %c0_0 = arith.constant 0 : index
    %0 = vector.load %arg0[%c0, %c0_0] : memref<64x128xbf16, #tpu.memory_space<vmem>>, vector<64x128xbf16>
    %c0_1 = arith.constant 0 : index
    %c0_2 = arith.constant 0 : index
    %1 = vector.load %arg1[%c0_1, %c0_2] : memref<128x200xbf16, #tpu.memory_space<vmem>>, vector<128x200xbf16>
    %cst = arith.constant dense<0.000000e+00> : vector<64x200xf32>
    %2 = tpu.matmul %0, %1, %cst {dimension_numbers = #tpu.dot_dimension_numbers<[1], [0], [0], [1], [0, 0, 1, 1], [], []>} : vector<64x128xbf16>, vector<128x200xbf16>, vector<64x200xf32> -> vector<64x200xf32>
    %c0_3 = arith.constant 0 : index
    %c0_4 = arith.constant 0 : index
    %3 = vector.load %arg2[%c0_3, %c0_4] : memref<64x1xf32, #tpu.memory_space<vmem>>, vector<64x1xf32>
    %4 = vector.broadcast %3 : vector<64x1xf32> to vector<64x200xf32>
    %5 = arith.addf %2, %4 : vector<64x200xf32>
    %cst_5 = arith.constant 0.000000e+00 : f32
    %6 = vector.broadcast %cst_5 : f32 to vector<64x200xf32>
    %7 = arith.maximumf %5, %6 : vector<64x200xf32>
    %c0_6 = arith.constant 0 : index
    %c0_7 = arith.constant 0 : index
    %8 = vector.load %arg3[%c0_6, %c0_7] : memref<64x200xf32, #tpu.memory_space<vmem>>, vector<64x200xf32>
    tpu.vector_store %arg3[%c0_6, %c0_7], %7 {strides = array<i32>} : memref<64x200xf32, #tpu.memory_space<vmem>>, vector<64x200xf32>,
    return
  }
}

module attributes {stable_mosaic.version = 11 : i64} {
  func.func @_matmul_bias_act_kernel(%arg0: memref<64x64xbf16, #tpu.memory_space<vmem>>, %arg1: memref<64x882xbf16, #tpu.memory_space<vmem>>, %arg2: memref<64x1xf32, #tpu.memory_space<vmem>>, %arg3: memref<64x882xf32, #tpu.memory_space<vmem>>) attributes {dimension_semantics = [], scalar_prefetch = 0 : i64, scratch_operands = 0 : i64, tpu.core_type = #tpu.core_type<tc>} {
    %c0 = arith.constant 0 : index
    %c0_0 = arith.constant 0 : index
    %0 = vector.load %arg0[%c0, %c0_0] : memref<64x64xbf16, #tpu.memory_space<vmem>>, vector<64x64xbf16>
    %c0_1 = arith.constant 0 : index
    %c0_2 = arith.constant 0 : index
    %1 = vector.load %arg1[%c0_1, %c0_2] : memref<64x882xbf16, #tpu.memory_space<vmem>>, vector<64x882xbf16>
    %cst = arith.constant dense<0.000000e+00> : vector<64x882xf32>
    %2 = tpu.matmul %0, %1, %cst {dimension_numbers = #tpu.dot_dimension_numbers<[1], [0], [0], [1], [0, 0, 1, 1], [], []>} : vector<64x64xbf16>, vector<64x882xbf16>, vector<64x882xf32> -> vector<64x882xf32>
    %c0_3 = arith.constant 0 : index
    %c0_4 = arith.constant 0 : index
    %3 = vector.load %arg2[%c0_3, %c0_4] : memref<64x1xf32, #tpu.memory_space<vmem>>, vector<64x1xf32>
    %4 = vector.broadcast %3 : vector<64x1xf32> to vector<64x882xf32>
    %5 = arith.addf %2, %4 : vector<64x882xf32>
    %cst_5 = arith.constant 0.000000e+00 : f32
    %6 = vector.broadcast %cst_5 : f32 to vector<64x882xf32>
    %7 = arith.subf %6, %5 : vector<64x882xf32>
    %8 = math.exp %7 : vector<64x882xf32>
    %cst_6 = arith.constant 1.000000e+00 : f32
    %9 = vector.broadcast %cst_6 : f32 to vector<64x882xf32>
    %10 = arith.addf %9, %8 : vector<64x882xf32>
    %cst_7 = arith.constant 1.000000e+00 : f32
    %11 = vector.broadcast %cst_7 : f32 to vector<64x882xf32>
    %12 = arith.divf %11, %10 : vector<64x882xf32>
    %c0_8 = arith.constant 0 : index
    %c0_9 = arith.constant 0 : index
    %13 = vector.load %arg3[%c0_8, %c0_9] : memref<64x882xf32, #tpu.memory_space<vmem>>, vector<64x882xf32>
    tpu.vector_store %arg3[%c0_8, %c0_9], %12 {strides = array<i32>} : memref<64x882xf32, #tpu.memory_space<vmem>>, vector<64x882xf32>,
    return
  }
}

</mosaic_0001>

<llo_original>
// kernel: vae_forward.7
$region0: #{vae_forward.7}
  #allocation0 [shape = 'u32[]', space=smem, size = 0x4, offset = 0x4, fixed_abs, tag = 'smem constant byte address 0x4 - core index']
  #allocation1 [shape = 'u32[72,128]{1,0:T(1,128)}', space=vmem, size = 0x9000, scoped, tag = 'internal scratch']
  %s0 = inlined_call_operand.vmem [shape: bf16[16,256], index: 0, kind: input, shape index: {}]
  %s1 = inlined_call_operand.vmem [shape: bf16[256,800], index: 1, kind: input, shape index: {}]
  %s2 = inlined_call_operand.vmem [shape: f32[16,1], index: 2, kind: input, shape index: {}]
  %s3 = inlined_call_operand.vmem [shape: f32[16,800], index: 3, kind: output, shape index: {}]
  %s4 = sld [smem:[#allocation0]]
  $region22: #{vae_forward.7} parent=0
    _
  %s6 = ssub.s32 1, %s4
  %s7 = scalar_select 0, %s6, %s4
  // Predicated region
  $region2: #{vae_forward.7} parent=0 // pred_check
    _
  $region3: #{vae_forward.7} parent=0 // pred_check_branch
    %9 = sbr.rel (0) target = $region5
  $region4: #{vae_forward.7} parent=0 // pred_region
    _
  $region5: #{vae_forward.7} parent=0 // pred_fallthru
    _
  // Predicated region
  $region6: #{vae_forward.7} parent=0 // pred_check
    _
  $region7: #{vae_forward.7} parent=0 // pred_check_branch
    %11 = sbr.rel (0) target = $region9
  $region8: #{vae_forward.7} parent=0 // pred_region
    _
  $region9: #{vae_forward.7} parent=0 // pred_fallthru
    _
  // Predicated region
  $region10: #{vae_forward.7} parent=0 // pred_check
    _
  $region11: #{vae_forward.7} parent=0 // pred_check_branch
    %13 = sbr.rel (0) target = $region13
  $region12: #{vae_forward.7} parent=0 // pred_region
    _
  $region13: #{vae_forward.7} parent=0 // pred_fallthru
    _
  %v14 = vld [vmem:[%s0] sm:$0xff]
  %v15 = vld [vmem:[%s0 + $0x8] sm:$0xff]
  %v16 = vld [vmem:[%s1] sm:$0xff]
  %v17 = vld [vmem:[%s1 + $0x8] sm:$0xff]
  %v18 = vld [vmem:[%s1 + $0x10] sm:$0xff]
  %v19 = vld [vmem:[%s1 + $0x18] sm:$0xf]
  %v20 = vld [vmem:[%s1 + $0x1c] sm:$0xff]
  %v21 = vld [vmem:[%s1 + $0x24] sm:$0xff]
  %v22 = vld [vmem:[%s1 + $0x2c] sm:$0xff]
  %v23 = vld [vmem:[%s1 + $0x34] sm:$0xf]
  %v24 = vld [vmem:[%s1 + $0x38] sm:$0xff]
  %v25 = vld [vmem:[%s1 + $0x40] sm:$0xff]
  %v26 = vld [vmem:[%s1 + $0x48] sm:$0xff]
  %v27 = vld [vmem:[%s1 + $0x50] sm:$0xf]
  %v28 = vld [vmem:[%s1 + $0x54] sm:$0xff]
  %v29 = vld [vmem:[%s1 + $0x5c] sm:$0xff]
  %v30 = vld [vmem:[%s1 + $0x64] sm:$0xff]
  %v31 = vld [vmem:[%s1 + $0x6c] sm:$0xf]
  %v32 = vld [vmem:[%s1 + $0x70] sm:$0xff]
  %v33 = vld [vmem:[%s1 + $0x78] sm:$0xff]
  %v34 = vld [vmem:[%s1 + $0x80] sm:$0xff]
  %v35 = vld [vmem:[%s1 + $0x88] sm:$0xf]
  %v36 = vld [vmem:[%s1 + $0x8c] sm:$0xff]
  %v37 = vld [vmem:[%s1 + $0x94] sm:$0xff]
  %v38 = vld [vmem:[%s1 + $0x9c] sm:$0xff]
  %v39 = vld [vmem:[%s1 + $0xa4] sm:$0xf]
  %v40 = vld [vmem:[%s1 + $0xa8] sm:$0xff]
  %v41 = vld [vmem:[%s1 + $0xb0] sm:$0xff]
  %v42 = vld [vmem:[%s1 + $0xb8] sm:$0xff]
  %v43 = vld [vmem:[%s1 + $0xc0] sm:$0xf]
  %v44 = vld [vmem:[%s1 + $0xc4] sm:$0xff]
  %v45 = vld [vmem:[%s1 + $0xcc] sm:$0xff]
  %v46 = vld [vmem:[%s1 + $0xd4] sm:$0xff]
  %v47 = vld [vmem:[%s1 + $0xdc] sm:$0xf]
  %v48 = vld [vmem:[%s1 + $0xe0] sm:$0xff]
  %v49 = vld [vmem:[%s1 + $0xe8] sm:$0xff]
  %v50 = vld [vmem:[%s1 + $0xf0] sm:$0xff]
  %v51 = vld [vmem:[%s1 + $0xf8] sm:$0xf]
  %v52 = vld [vmem:[%s1 + $0xfc] sm:$0xff]
  %v53 = vld [vmem:[%s1 + $0x104] sm:$0xff]
  %v54 = vld [vmem:[%s1 + $0x10c] sm:$0xff]
  %v55 = vld [vmem:[%s1 + $0x114] sm:$0xf]
  %v56 = vld [vmem:[%s1 + $0x118] sm:$0xff]
  %v57 = vld [vmem:[%s1 + $0x120] sm:$0xff]
  %v58 = vld [vmem:[%s1 + $0x128] sm:$0xff]
  %v59 = vld [vmem:[%s1 + $0x130] sm:$0xf]
  %v60 = vld [vmem:[%s1 + $0x134] sm:$0xff]
  %v61 = vld [vmem:[%s1 + $0x13c] sm:$0xff]
  %v62 = vld [vmem:[%s1 + $0x144] sm:$0xff]
  %v63 = vld [vmem:[%s1 + $0x14c] sm:$0xf]
  %v64 = vld [vmem:[%s1 + $0x150] sm:$0xff]
  %v65 = vld [vmem:[%s1 + $0x158] sm:$0xff]
  %v66 = vld [vmem:[%s1 + $0x160] sm:$0xff]
  %v67 = vld [vmem:[%s1 + $0x168] sm:$0xf]
  %v68 = vld [vmem:[%s1 + $0x16c] sm:$0xff]
  %v69 = vld [vmem:[%s1 + $0x174] sm:$0xff]
  %v70 = vld [vmem:[%s1 + $0x17c] sm:$0xff]
  %v71 = vld [vmem:[%s1 + $0x184] sm:$0xf]
  %v72 = vld [vmem:[%s1 + $0x188] sm:$0xff]
  %v73 = vld [vmem:[%s1 + $0x190] sm:$0xff]
  %v74 = vld [vmem:[%s1 + $0x198] sm:$0xff]
  %v75 = vld [vmem:[%s1 + $0x1a0] sm:$0xf]
  %v76 = vld [vmem:[%s1 + $0x1a4] sm:$0xff]
  %v77 = vld [vmem:[%s1 + $0x1ac] sm:$0xff]
  %v78 = vld [vmem:[%s1 + $0x1b4] sm:$0xff]
  %v79 = vld [vmem:[%s1 + $0x1bc] sm:$0xf]
  %v80 = vld [vmem:[%s1 + $0x1c0] sm:$0xff]
  %v81 = vld [vmem:[%s1 + $0x1c8] sm:$0xff]
  %v82 = vld [vmem:[%s1 + $0x1d0] sm:$0xff]
  %v83 = vld [vmem:[%s1 + $0x1d8] sm:$0xf]
  %v84 = vld [vmem:[%s1 + $0x1dc] sm:$0xff]
  %v85 = vld [vmem:[%s1 + $0x1e4] sm:$0xff]
  %v86 = vld [vmem:[%s1 + $0x1ec] sm:$0xff]
  %v87 = vld [vmem:[%s1 + $0x1f4] sm:$0xf]
  %v88 = vld [vmem:[%s1 + $0x1f8] sm:$0xff]
  %v89 = vld [vmem:[%s1 + $0x200] sm:$0xff]
  %v90 = vld [vmem:[%s1 + $0x208] sm:$0xff]
  %v91 = vld [vmem:[%s1 + $0x210] sm:$0xf]
  %v92 = vld [vmem:[%s1 + $0x214] sm:$0xff]
  %v93 = vld [vmem:[%s1 + $0x21c] sm:$0xff]
  %v94 = vld [vmem:[%s1 + $0x224] sm:$0xff]
  %v95 = vld [vmem:[%s1 + $0x22c] sm:$0xf]
  %v96 = vld [vmem:[%s1 + $0x230] sm:$0xff]
  %v97 = vld [vmem:[%s1 + $0x238] sm:$0xff]
  %v98 = vld [vmem:[%s1 + $0x240] sm:$0xff]
  %v99 = vld [vmem:[%s1 + $0x248] sm:$0xf]
  %v100 = vld [vmem:[%s1 + $0x24c] sm:$0xff]
  %v101 = vld [vmem:[%s1 + $0x254] sm:$0xff]
  %v102 = vld [vmem:[%s1 + $0x25c] sm:$0xff]
  %v103 = vld [vmem:[%s1 + $0x264] sm:$0xf]
  %v104 = vld [vmem:[%s1 + $0x268] sm:$0xff]
  %v105 = vld [vmem:[%s1 + $0x270] sm:$0xff]
  %v106 = vld [vmem:[%s1 + $0x278] sm:$0xff]
  %v107 = vld [vmem:[%s1 + $0x280] sm:$0xf]
  %v108 = vld [vmem:[%s1 + $0x284] sm:$0xff]
  %v109 = vld [vmem:[%s1 + $0x28c] sm:$0xff]
  %v110 = vld [vmem:[%s1 + $0x294] sm:$0xff]
  %v111 = vld [vmem:[%s1 + $0x29c] sm:$0xf]
  %v112 = vld [vmem:[%s1 + $0x2a0] sm:$0xff]
  %v113 = vld [vmem:[%s1 + $0x2a8] sm:$0xff]
  %v114 = vld [vmem:[%s1 + $0x2b0] sm:$0xff]
  %v115 = vld [vmem:[%s1 + $0x2b8] sm:$0xf]
  %v116 = vld [vmem:[%s1 + $0x2bc] sm:$0xff]
  %v117 = vld [vmem:[%s1 + $0x2c4] sm:$0xff]
  %v118 = vld [vmem:[%s1 + $0x2cc] sm:$0xff]
  %v119 = vld [vmem:[%s1 + $0x2d4] sm:$0xf]
  %v120 = vld [vmem:[%s1 + $0x2d8] sm:$0xff]
  %v121 = vld [vmem:[%s1 + $0x2e0] sm:$0xff]
  %v122 = vld [vmem:[%s1 + $0x2e8] sm:$0xff]
  %v123 = vld [vmem:[%s1 + $0x2f0] sm:$0xf]
  %v124 = vld [vmem:[%s1 + $0x2f4] sm:$0xff]
  %v125 = vld [vmem:[%s1 + $0x2fc] sm:$0xff]
  %v126 = vld [vmem:[%s1 + $0x304] sm:$0xff]
  %v127 = vld [vmem:[%s1 + $0x30c] sm:$0xf]
  %v128 = vld [vmem:[%s1 + $0x310] sm:$0xff]
  %v129 = vld [vmem:[%s1 + $0x318] sm:$0xff]
  %v130 = vld [vmem:[%s1 + $0x320] sm:$0xff]
  %v131 = vld [vmem:[%s1 + $0x328] sm:$0xf]
  %v132 = vld [vmem:[%s1 + $0x32c] sm:$0xff]
  %v133 = vld [vmem:[%s1 + $0x334] sm:$0xff]
  %v134 = vld [vmem:[%s1 + $0x33c] sm:$0xff]
  %v135 = vld [vmem:[%s1 + $0x344] sm:$0xf]
  %v136 = vld [vmem:[%s1 + $0x348] sm:$0xff]
  %v137 = vld [vmem:[%s1 + $0x350] sm:$0xff]
  %v138 = vld [vmem:[%s1 + $0x358] sm:$0xff]
  %v139 = vld [vmem:[%s1 + $0x360] sm:$0xf]
  %v140 = vld [vmem:[%s1 + $0x364] sm:$0xff]
  %v141 = vld [vmem:[%s1 + $0x36c] sm:$0xff]
  %v142 = vld [vmem:[%s1 + $0x374] sm:$0xff]
  %v143 = vld [vmem:[%s1 + $0x37c] sm:$0xf]
  %v144 = vld [vmem:[%s2] sm:$0xff]
  %v145 = vld [vmem:[%s2 + $0x8] sm:$0xff]
  %147 = vset.pattern.permute.xlu0 0
  %148 = vperm.xlu0 %147, %v144
  %v149 = vpop.permute.xlu0 %148
  %152 = vset.pattern.permute.xlu0 0
  %153 = vperm.xlu0 %152, %v145
  %v154 = vpop.permute.xlu0 %153
  %v158 = vunpack.c.l.b16 %v14
  %v159 = vunpack.c.h.b16 %v14
  %v160 = vunpack.c.l.b16 %v15
  %v161 = vunpack.c.h.b16 %v15
  %v162 = vpack.c.b16 %v160, %v158
  %v163 = vpack.c.b16 %v161, %v159
  %v294 = vunpack.c.l.b16 %v16
  %v295 = vunpack.c.h.b16 %v16
  %v296 = vunpack.c.l.b16 %v17
  %v297 = vunpack.c.h.b16 %v17
  %v298 = vunpack.c.l.b16 %v18
  %v299 = vunpack.c.h.b16 %v18
  %v300 = vunpack.c.l.b16 %v19
  %v301 = vunpack.c.l.b16 %v20
  %v302 = vunpack.c.h.b16 %v20
  %v303 = vunpack.c.l.b16 %v21
  %v304 = vunpack.c.h.b16 %v21
  %v305 = vunpack.c.l.b16 %v22
  %v306 = vunpack.c.h.b16 %v22
  %v307 = vunpack.c.l.b16 %v23
  %v308 = vunpack.c.l.b16 %v24
  %v309 = vunpack.c.h.b16 %v24
  %v310 = vunpack.c.l.b16 %v25
  %v311 = vunpack.c.h.b16 %v25
  %v312 = vunpack.c.l.b16 %v26
  %v313 = vunpack.c.h.b16 %v26
  %v314 = vunpack.c.l.b16 %v27
  %v315 = vunpack.c.l.b16 %v28
  %v316 = vunpack.c.h.b16 %v28
  %v317 = vunpack.c.l.b16 %v29
  %v318 = vunpack.c.h.b16 %v29
  %v319 = vunpack.c.l.b16 %v30
  %v320 = vunpack.c.h.b16 %v30
  %v321 = vunpack.c.l.b16 %v31
  %v322 = vunpack.c.l.b16 %v32
  %v323 = vunpack.c.h.b16 %v32
  %v324 = vunpack.c.l.b16 %v33
  %v325 = vunpack.c.h.b16 %v33
  %v326 = vunpack.c.l.b16 %v34
  %v327 = vunpack.c.h.b16 %v34
  %v328 = vunpack.c.l.b16 %v35
  %v329 = vunpack.c.l.b16 %v36
  %v330 = vunpack.c.h.b16 %v36
  %v331 = vunpack.c.l.b16 %v37
  %v332 = vunpack.c.h.b16 %v37
  %v333 = vunpack.c.l.b16 %v38
  %v334 = vunpack.c.h.b16 %v38
  %v335 = vunpack.c.l.b16 %v39
  %v336 = vunpack.c.l.b16 %v40
  %v337 = vunpack.c.h.b16 %v40
  %v338 = vunpack.c.l.b16 %v41
  %v339 = vunpack.c.h.b16 %v41
  %v340 = vunpack.c.l.b16 %v42
  %v341 = vunpack.c.h.b16 %v42
  %v342 = vunpack.c.l.b16 %v43
  %v343 = vunpack.c.l.b16 %v44
  %v344 = vunpack.c.h.b16 %v44
  %v345 = vunpack.c.l.b16 %v45
  %v346 = vunpack.c.h.b16 %v45
  %v347 = vunpack.c.l.b16 %v46
  %v348 = vunpack.c.h.b16 %v46
  %v349 = vunpack.c.l.b16 %v47
  %v350 = vunpack.c.l.b16 %v48
  %v351 = vunpack.c.h.b16 %v48
  %v352 = vunpack.c.l.b16 %v49
  %v353 = vunpack.c.h.b16 %v49
  %v354 = vunpack.c.l.b16 %v50
  %v355 = vunpack.c.h.b16 %v50
  %v356 = vunpack.c.l.b16 %v51
  %v357 = vunpack.c.l.b16 %v52
  %v358 = vunpack.c.h.b16 %v52
  %v359 = vunpack.c.l.b16 %v53
  %v360 = vunpack.c.h.b16 %v53
  %v361 = vunpack.c.l.b16 %v54
  %v362 = vunpack.c.h.b16 %v54
  %v363 = vunpack.c.l.b16 %v55
  %v364 = vunpack.c.l.b16 %v56
  %v365 = vunpack.c.h.b16 %v56
  %v366 = vunpack.c.l.b16 %v57
  %v367 = vunpack.c.h.b16 %v57
  %v368 = vunpack.c.l.b16 %v58
  %v369 = vunpack.c.h.b16 %v58
  %v370 = vunpack.c.l.b16 %v59
  %v371 = vunpack.c.l.b16 %v60
  %v372 = vunpack.c.h.b16 %v60
  %v373 = vunpack.c.l.b16 %v61
  %v374 = vunpack.c.h.b16 %v61
  %v375 = vunpack.c.l.b16 %v62
  %v376 = vunpack.c.h.b16 %v62
  %v377 = vunpack.c.l.b16 %v63
  %v378 = vunpack.c.l.b16 %v64
  %v379 = vunpack.c.h.b16 %v64
  %v380 = vunpack.c.l.b16 %v65
  %v381 = vunpack.c.h.b16 %v65
  %v382 = vunpack.c.l.b16 %v66
  %v383 = vunpack.c.h.b16 %v66
  %v384 = vunpack.c.l.b16 %v67
  %v385 = vunpack.c.l.b16 %v68
  %v386 = vunpack.c.h.b16 %v68
  %v387 = vunpack.c.l.b16 %v69
  %v388 = vunpack.c.h.b16 %v69
  %v389 = vunpack.c.l.b16 %v70
  %v390 = vunpack.c.h.b16 %v70
  %v391 = vunpack.c.l.b16 %v71
  %v392 = vunpack.c.l.b16 %v72
  %v393 = vunpack.c.h.b16 %v72
  %v394 = vunpack.c.l.b16 %v73
  %v395 = vunpack.c.h.b16 %v73
  %v396 = vunpack.c.l.b16 %v74
  %v397 = vunpack.c.h.b16 %v74
  %v398 = vunpack.c.l.b16 %v75
  %v399 = vunpack.c.l.b16 %v76
  %v400 = vunpack.c.h.b16 %v76
  %v401 = vunpack.c.l.b16 %v77
  %v402 = vunpack.c.h.b16 %v77
  %v403 = vunpack.c.l.b16 %v78
  %v404 = vunpack.c.h.b16 %v78
  %v405 = vunpack.c.l.b16 %v79
  %v406 = vunpack.c.l.b16 %v80
  %v407 = vunpack.c.h.b16 %v80
  %v408 = vunpack.c.l.b16 %v81
  %v409 = vunpack.c.h.b16 %v81
  %v410 = vunpack.c.l.b16 %v82
  %v411 = vunpack.c.h.b16 %v82
  %v412 = vunpack.c.l.b16 %v83
  %v413 = vunpack.c.l.b16 %v84
  %v414 = vunpack.c.h.b16 %v84
  %v415 = vunpack.c.l.b16 %v85
  %v416 = vunpack.c.h.b16 %v85
  %v417 = vunpack.c.l.b16 %v86
  %v418 = vunpack.c.h.b16 %v86
  %v419 = vunpack.c.l.b16 %v87
  %v420 = vunpack.c.l.b16 %v88
  %v421 = vunpack.c.h.b16 %v88
  %v422 = vunpack.c.l.b16 %v89
  %v423 = vunpack.c.h.b16 %v89
  %v424 = vunpack.c.l.b16 %v90
  %v425 = vunpack.c.h.b16 %v90
  %v426 = vunpack.c.l.b16 %v91
  %v427 = vunpack.c.l.b16 %v92
  %v428 = vunpack.c.h.b16 %v92
  %v429 = vunpack.c.l.b16 %v93
  %v430 = vunpack.c.h.b16 %v93
  %v431 = vunpack.c.l.b16 %v94
  %v432 = vunpack.c.h.b16 %v94
  %v433 = vunpack.c.l.b16 %v95
  %v434 = vunpack.c.l.b16 %v96
  %v435 = vunpack.c.h.b16 %v96
  %v436 = vunpack.c.l.b16 %v97
  %v437 = vunpack.c.h.b16 %v97
  %v438 = vunpack.c.l.b16 %v98
  %v439 = vunpack.c.h.b16 %v98
  %v440 = vunpack.c.l.b16 %v99
  %v441 = vunpack.c.l.b16 %v100
  %v442 = vunpack.c.h.b16 %v100
  %v443 = vunpack.c.l.b16 %v101
  %v444 = vunpack.c.h.b16 %v101
  %v445 = vunpack.c.l.b16 %v102
  %v446 = vunpack.c.h.b16 %v102
  %v447 = vunpack.c.l.b16 %v103
  %v448 = vunpack.c.l.b16 %v104
  %v449 = vunpack.c.h.b16 %v104
  %v450 = vunpack.c.l.b16 %v105
  %v451 = vunpack.c.h.b16 %v105
  %v452 = vunpack.c.l.b16 %v106
  %v453 = vunpack.c.h.b16 %v106
  %v454 = vunpack.c.l.b16 %v107
  %v455 = vunpack.c.l.b16 %v108
  %v456 = vunpack.c.h.b16 %v108
  %v457 = vunpack.c.l.b16 %v109
  %v458 = vunpack.c.h.b16 %v109
  %v459 = vunpack.c.l.b16 %v110
  %v460 = vunpack.c.h.b16 %v110
  %v461 = vunpack.c.l.b16 %v111
  %v462 = vunpack.c.l.b16 %v112
  %v463 = vunpack.c.h.b16 %v112
  %v464 = vunpack.c.l.b16 %v113
  %v465 = vunpack.c.h.b16 %v113
  %v466 = vunpack.c.l.b16 %v114
  %v467 = vunpack.c.h.b16 %v114
  %v468 = vunpack.c.l.b16 %v115
  %v469 = vunpack.c.l.b16 %v116
  %v470 = vunpack.c.h.b16 %v116
  %v471 = vunpack.c.l.b16 %v117
  %v472 = vunpack.c.h.b16 %v117
  %v473 = vunpack.c.l.b16 %v118
  %v474 = vunpack.c.h.b16 %v118
  %v475 = vunpack.c.l.b16 %v119
  %v476 = vunpack.c.l.b16 %v120
  %v477 = vunpack.c.h.b16 %v120
  %v478 = vunpack.c.l.b16 %v121
  %v479 = vunpack.c.h.b16 %v121
  %v480 = vunpack.c.l.b16 %v122
  %v481 = vunpack.c.h.b16 %v122
  %v482 = vunpack.c.l.b16 %v123
  %v483 = vunpack.c.l.b16 %v124
  %v484 = vunpack.c.h.b16 %v124
  %v485 = vunpack.c.l.b16 %v125
  %v486 = vunpack.c.h.b16 %v125
  %v487 = vunpack.c.l.b16 %v126
  %v488 = vunpack.c.h.b16 %v126
  %v489 = vunpack.c.l.b16 %v127
  %v490 = vunpack.c.l.b16 %v128
  %v491 = vunpack.c.h.b16 %v128
  %v492 = vunpack.c.l.b16 %v129
  %v493 = vunpack.c.h.b16 %v129
  %v494 = vunpack.c.l.b16 %v130
  %v495 = vunpack.c.h.b16 %v130
  %v496 = vunpack.c.l.b16 %v131
  %v497 = vunpack.c.l.b16 %v132
  %v498 = vunpack.c.h.b16 %v132
  %v499 = vunpack.c.l.b16 %v133
  %v500 = vunpack.c.h.b16 %v133
  %v501 = vunpack.c.l.b16 %v134
  %v502 = vunpack.c.h.b16 %v134
  %v503 = vunpack.c.l.b16 %v135
  %v504 = vunpack.c.l.b16 %v136
  %v505 = vunpack.c.h.b16 %v136
  %v506 = vunpack.c.l.b16 %v137
  %v507 = vunpack.c.h.b16 %v137
  %v508 = vunpack.c.l.b16 %v138
  %v509 = vunpack.c.h.b16 %v138
  %v510 = vunpack.c.l.b16 %v139
  %v511 = vunpack.c.l.b16 %v140
  %v512 = vunpack.c.h.b16 %v140
  %v513 = vunpack.c.l.b16 %v141
  %v514 = vunpack.c.h.b16 %v141
  %v515 = vunpack.c.l.b16 %v142
  %v516 = vunpack.c.h.b16 %v142
  %v517 = vunpack.c.l.b16 %v143
  %v518 = vpack.c.b16 %v301, %v294
  %v519 = vpack.c.b16 %v302, %v295
  %v520 = vpack.c.b16 %v303, %v296
  %v521 = vpack.c.b16 %v304, %v297
  %v522 = vpack.c.b16 %v305, %v298
  %v523 = vpack.c.b16 %v306, %v299
  %v524 = vpack.c.b16 %v307, %v300
  %v525 = vpack.c.b16 %v315, %v308
  %v526 = vpack.c.b16 %v316, %v309
  %v527 = vpack.c.b16 %v317, %v310
  %v528 = vpack.c.b16 %v318, %v311
  %v529 = vpack.c.b16 %v319, %v312
  %v530 = vpack.c.b16 %v320, %v313
  %v531 = vpack.c.b16 %v321, %v314
  %v532 = vpack.c.b16 %v329, %v322
  %v533 = vpack.c.b16 %v330, %v323
  %v534 = vpack.c.b16 %v331, %v324
  %v535 = vpack.c.b16 %v332, %v325
  %v536 = vpack.c.b16 %v333, %v326
  %v537 = vpack.c.b16 %v334, %v327
  %v538 = vpack.c.b16 %v335, %v328
  %v539 = vpack.c.b16 %v343, %v336
  %v540 = vpack.c.b16 %v344, %v337
  %v541 = vpack.c.b16 %v345, %v338
  %v542 = vpack.c.b16 %v346, %v339
  %v543 = vpack.c.b16 %v347, %v340
  %v544 = vpack.c.b16 %v348, %v341
  %v545 = vpack.c.b16 %v349, %v342
  %v546 = vpack.c.b16 %v357, %v350
  %v547 = vpack.c.b16 %v358, %v351
  %v548 = vpack.c.b16 %v359, %v352
  %v549 = vpack.c.b16 %v360, %v353
  %v550 = vpack.c.b16 %v361, %v354
  %v551 = vpack.c.b16 %v362, %v355
  %v552 = vpack.c.b16 %v363, %v356
  %v553 = vpack.c.b16 %v371, %v364
  %v554 = vpack.c.b16 %v372, %v365
  %v555 = vpack.c.b16 %v373, %v366
  %v556 = vpack.c.b16 %v374, %v367
  %v557 = vpack.c.b16 %v375, %v368
  %v558 = vpack.c.b16 %v376, %v369
  %v559 = vpack.c.b16 %v377, %v370
  %v560 = vpack.c.b16 %v385, %v378
  %v561 = vpack.c.b16 %v386, %v379
  %v562 = vpack.c.b16 %v387, %v380
  %v563 = vpack.c.b16 %v388, %v381
  %v564 = vpack.c.b16 %v389, %v382
  %v565 = vpack.c.b16 %v390, %v383
  %v566 = vpack.c.b16 %v391, %v384
  %v567 = vpack.c.b16 %v399, %v392
  %v568 = vpack.c.b16 %v400, %v393
  %v569 = vpack.c.b16 %v401, %v394
  %v570 = vpack.c.b16 %v402, %v395
  %v571 = vpack.c.b16 %v403, %v396
  %v572 = vpack.c.b16 %v404, %v397
  %v573 = vpack.c.b16 %v405, %v398
  %v574 = vpack.c.b16 %v413, %v406
  %v575 = vpack.c.b16 %v414, %v407
  %v576 = vpack.c.b16 %v415, %v408
  %v577 = vpack.c.b16 %v416, %v409
  %v578 = vpack.c.b16 %v417, %v410
  %v579 = vpack.c.b16 %v418, %v411
  %v580 = vpack.c.b16 %v419, %v412
  %v581 = vpack.c.b16 %v427, %v420
  %v582 = vpack.c.b16 %v428, %v421
  %v583 = vpack.c.b16 %v429, %v422
  %v584 = vpack.c.b16 %v430, %v423
  %v585 = vpack.c.b16 %v431, %v424
  %v586 = vpack.c.b16 %v432, %v425
  %v587 = vpack.c.b16 %v433, %v426
  %v588 = vpack.c.b16 %v441, %v434
  %v589 = vpack.c.b16 %v442, %v435
  %v590 = vpack.c.b16 %v443, %v436
  %v591 = vpack.c.b16 %v444, %v437
  %v592 = vpack.c.b16 %v445, %v438
  %v593 = vpack.c.b16 %v446, %v439
  %v594 = vpack.c.b16 %v447, %v440
  %v595 = vpack.c.b16 %v455, %v448
  %v596 = vpack.c.b16 %v456, %v449
  %v597 = vpack.c.b16 %v457, %v450
  %v598 = vpack.c.b16 %v458, %v451
  %v599 = vpack.c.b16 %v459, %v452
  %v600 = vpack.c.b16 %v460, %v453
  %v601 = vpack.c.b16 %v461, %v454
  %v602 = vpack.c.b16 %v469, %v462
  %v603 = vpack.c.b16 %v470, %v463
  %v604 = vpack.c.b16 %v471, %v464
  %v605 = vpack.c.b16 %v472, %v465
  %v606 = vpack.c.b16 %v473, %v466
  %v607 = vpack.c.b16 %v474, %v467
  %v608 = vpack.c.b16 %v475, %v468
  %v609 = vpack.c.b16 %v483, %v476
  %v610 = vpack.c.b16 %v484, %v477
  %v611 = vpack.c.b16 %v485, %v478
  %v612 = vpack.c.b16 %v486, %v479
  %v613 = vpack.c.b16 %v487, %v480
  %v614 = vpack.c.b16 %v488, %v481
  %v615 = vpack.c.b16 %v489, %v482
  %v616 = vpack.c.b16 %v497, %v490
  %v617 = vpack.c.b16 %v498, %v491
  %v618 = vpack.c.b16 %v499, %v492
  %v619 = vpack.c.b16 %v500, %v493
  %v620 = vpack.c.b16 %v501, %v494
  %v621 = vpack.c.b16 %v502, %v495
  %v622 = vpack.c.b16 %v503, %v496
  %v623 = vpack.c.b16 %v511, %v504
  %v624 = vpack.c.b16 %v512, %v505
  %v625 = vpack.c.b16 %v513, %v506
  %v626 = vpack.c.b16 %v514, %v507
  %v627 = vpack.c.b16 %v515, %v508
  %v628 = vpack.c.b16 %v516, %v509
  %v629 = vpack.c.b16 %v517, %v510
  %742 = vmatpush.bf16.msra.mxu0 %v567
  %743 = vmatpush.bf16.msra.mxu0 %v560
  %744 = vmatpush.bf16.msra.mxu0 %v553
  %745 = vmatpush.bf16.msra.mxu0 %v546
  %746 = vmatpush.bf16.msra.mxu0 %v539
  %747 = vmatpush.bf16.msra.mxu0 %v532
  %748 = vmatpush.bf16.msra.mxu0 %v525
  %749 = vmatpush.bf16.msra.mxu0 %v518
  %750 = vmatmul.bf16.gmra.mxu0 %v162
  %v751 = vpop.f32.mrf.mxu0
  %v752 = vadd.f32 %v149, %v751
  %v753 = vpop.f32.mrf.mxu0
  %v754 = vadd.f32 %v154, %v753
  %755 = vdwg.mxu0
  %756 = vmatpush.bf16.msra.mxu0 %v623
  %757 = vmatpush.bf16.msra.mxu0 %v616
  %758 = vmatpush.bf16.msra.mxu0 %v609
  %759 = vmatpush.bf16.msra.mxu0 %v602
  %760 = vmatpush.bf16.msra.mxu0 %v595
  %761 = vmatpush.bf16.msra.mxu0 %v588
  %762 = vmatpush.bf16.msra.mxu0 %v581
  %763 = vmatpush.bf16.msra.mxu0 %v574
  %764 = vmatmul.bf16.gmra.mxu0 %v163
  %v765 = vpop.f32.mrf.mxu0
  %v766 = vadd.f32 %v752, %v765
  %v767 = vpop.f32.mrf.mxu0
  %v768 = vadd.f32 %v754, %v767
  %769 = vdwg.mxu0
  %770 = vmatpush.bf16.msra.mxu0 %v568
  %771 = vmatpush.bf16.msra.mxu0 %v561
  %772 = vmatpush.bf16.msra.mxu0 %v554
  %773 = vmatpush.bf16.msra.mxu0 %v547
  %774 = vmatpush.bf16.msra.mxu0 %v540
  %775 = vmatpush.bf16.msra.mxu0 %v533
  %776 = vmatpush.bf16.msra.mxu0 %v526
  %777 = vmatpush.bf16.msra.mxu0 %v519
  %778 = vmatmul.bf16.gmra.mxu0 %v162
  %v779 = vpop.f32.mrf.mxu0
  %v780 = vadd.f32 %v149, %v779
  %v781 = vpop.f32.mrf.mxu0
  %v782 = vadd.f32 %v154, %v781
  %783 = vdwg.mxu0
  %784 = vmatpush.bf16.msra.mxu0 %v624
  %785 = vmatpush.bf16.msra.mxu0 %v617
  %786 = vmatpush.bf16.msra.mxu0 %v610
  %787 = vmatpush.bf16.msra.mxu0 %v603
  %788 = vmatpush.bf16.msra.mxu0 %v596
  %789 = vmatpush.bf16.msra.mxu0 %v589
  %790 = vmatpush.bf16.msra.mxu0 %v582
  %791 = vmatpush.bf16.msra.mxu0 %v575
  %792 = vmatmul.bf16.gmra.mxu0 %v163
  %v793 = vpop.f32.mrf.mxu0
  %v794 = vadd.f32 %v780, %v793
  %v795 = vpop.f32.mrf.mxu0
  %v796 = vadd.f32 %v782, %v795
  %797 = vdwg.mxu0
  %798 = vmatpush.bf16.msra.mxu0 %v569
  %799 = vmatpush.bf16.msra.mxu0 %v562
  %800 = vmatpush.bf16.msra.mxu0 %v555
  %801 = vmatpush.bf16.msra.mxu0 %v548
  %802 = vmatpush.bf16.msra.mxu0 %v541
  %803 = vmatpush.bf16.msra.mxu0 %v534
  %804 = vmatpush.bf16.msra.mxu0 %v527
  %805 = vmatpush.bf16.msra.mxu0 %v520
  %806 = vmatmul.bf16.gmra.mxu0 %v162
  %v807 = vpop.f32.mrf.mxu0
  %v808 = vadd.f32 %v149, %v807
  %v809 = vpop.f32.mrf.mxu0
  %v810 = vadd.f32 %v154, %v809
  %811 = vdwg.mxu0
  %812 = vmatpush.bf16.msra.mxu0 %v625
  %813 = vmatpush.bf16.msra.mxu0 %v618
  %814 = vmatpush.bf16.msra.mxu0 %v611
  %815 = vmatpush.bf16.msra.mxu0 %v604
  %816 = vmatpush.bf16.msra.mxu0 %v597
  %817 = vmatpush.bf16.msra.mxu0 %v590
  %818 = vmatpush.bf16.msra.mxu0 %v583
  %819 = vmatpush.bf16.msra.mxu0 %v576
  %820 = vmatmul.bf16.gmra.mxu0 %v163
  %v821 = vpop.f32.mrf.mxu0
  %v822 = vadd.f32 %v808, %v821
  %v823 = vpop.f32.mrf.mxu0
  %v824 = vadd.f32 %v810, %v823
  %825 = vdwg.mxu0
  %826 = vmatpush.bf16.msra.mxu0 %v570
  %827 = vmatpush.bf16.msra.mxu0 %v563
  %828 = vmatpush.bf16.msra.mxu0 %v556
  %829 = vmatpush.bf16.msra.mxu0 %v549
  %830 = vmatpush.bf16.msra.mxu0 %v542
  %831 = vmatpush.bf16.msra.mxu0 %v535
  %832 = vmatpush.bf16.msra.mxu0 %v528
  %833 = vmatpush.bf16.msra.mxu0 %v521
  %834 = vmatmul.bf16.gmra.mxu0 %v162
  %v835 = vpop.f32.mrf.mxu0
  %v836 = vadd.f32 %v149, %v835
  %v837 = vpop.f32.mrf.mxu0
  %v838 = vadd.f32 %v154, %v837
  %839 = vdwg.mxu0
  %840 = vmatpush.bf16.msra.mxu0 %v626
  %841 = vmatpush.bf16.msra.mxu0 %v619
  %842 = vmatpush.bf16.msra.mxu0 %v612
  %843 = vmatpush.bf16.msra.mxu0 %v605
  %844 = vmatpush.bf16.msra.mxu0 %v598
  %845 = vmatpush.bf16.msra.mxu0 %v591
  %846 = vmatpush.bf16.msra.mxu0 %v584
  %847 = vmatpush.bf16.msra.mxu0 %v577
  %848 = vmatmul.bf16.gmra.mxu0 %v163
  %v849 = vpop.f32.mrf.mxu0
  %v850 = vadd.f32 %v836, %v849
  %v851 = vpop.f32.mrf.mxu0
  %v852 = vadd.f32 %v838, %v851
  %853 = vdwg.mxu0
  %854 = vmatpush.bf16.msra.mxu0 %v571
  %855 = vmatpush.bf16.msra.mxu0 %v564
  %856 = vmatpush.bf16.msra.mxu0 %v557
  %857 = vmatpush.bf16.msra.mxu0 %v550
  %858 = vmatpush.bf16.msra.mxu0 %v543
  %859 = vmatpush.bf16.msra.mxu0 %v536
  %860 = vmatpush.bf16.msra.mxu0 %v529
  %861 = vmatpush.bf16.msra.mxu0 %v522
  %862 = vmatmul.bf16.gmra.mxu0 %v162
  %v863 = vpop.f32.mrf.mxu0
  %v864 = vadd.f32 %v149, %v863
  %v865 = vpop.f32.mrf.mxu0
  %v866 = vadd.f32 %v154, %v865
  %867 = vdwg.mxu0
  %868 = vmatpush.bf16.msra.mxu0 %v627
  %869 = vmatpush.bf16.msra.mxu0 %v620
  %870 = vmatpush.bf16.msra.mxu0 %v613
  %871 = vmatpush.bf16.msra.mxu0 %v606
  %872 = vmatpush.bf16.msra.mxu0 %v599
  %873 = vmatpush.bf16.msra.mxu0 %v592
  %874 = vmatpush.bf16.msra.mxu0 %v585
  %875 = vmatpush.bf16.msra.mxu0 %v578
  %876 = vmatmul.bf16.gmra.mxu0 %v163
  %v877 = vpop.f32.mrf.mxu0
  %v878 = vadd.f32 %v864, %v877
  %v879 = vpop.f32.mrf.mxu0
  %v880 = vadd.f32 %v866, %v879
  %881 = vdwg.mxu0
  %882 = vmatpush.bf16.msra.mxu0 %v572
  %883 = vmatpush.bf16.msra.mxu0 %v565
  %884 = vmatpush.bf16.msra.mxu0 %v558
  %885 = vmatpush.bf16.msra.mxu0 %v551
  %886 = vmatpush.bf16.msra.mxu0 %v544
  %887 = vmatpush.bf16.msra.mxu0 %v537
  %888 = vmatpush.bf16.msra.mxu0 %v530
  %889 = vmatpush.bf16.msra.mxu0 %v523
  %890 = vmatmul.bf16.gmra.mxu0 %v162
  %v891 = vpop.f32.mrf.mxu0
  %v892 = vadd.f32 %v149, %v891
  %v893 = vpop.f32.mrf.mxu0
  %v894 = vadd.f32 %v154, %v893
  %895 = vdwg.mxu0
  %896 = vmatpush.bf16.msra.mxu0 %v628
  %897 = vmatpush.bf16.msra.mxu0 %v621
  %898 = vmatpush.bf16.msra.mxu0 %v614
  %899 = vmatpush.bf16.msra.mxu0 %v607
  %900 = vmatpush.bf16.msra.mxu0 %v600
  %901 = vmatpush.bf16.msra.mxu0 %v593
  %902 = vmatpush.bf16.msra.mxu0 %v586
  %903 = vmatpush.bf16.msra.mxu0 %v579
  %904 = vmatmul.bf16.gmra.mxu0 %v163
  %v905 = vpop.f32.mrf.mxu0
  %v906 = vadd.f32 %v892, %v905
  %v907 = vpop.f32.mrf.mxu0
  %v908 = vadd.f32 %v894, %v907
  %909 = vdwg.mxu0
  %910 = vmatpush.bf16.msra.mxu0 %v573
  %911 = vmatpush.bf16.msra.mxu0 %v566
  %912 = vmatpush.bf16.msra.mxu0 %v559
  %913 = vmatpush.bf16.msra.mxu0 %v552
  %914 = vmatpush.bf16.msra.mxu0 %v545
  %915 = vmatpush.bf16.msra.mxu0 %v538
  %916 = vmatpush.bf16.msra.mxu0 %v531
  %917 = vmatpush.bf16.msra.mxu0 %v524
  %918 = vmatmul.bf16.gmra.mxu0 %v162
  %v919 = vpop.f32.mrf.mxu0
  %v920 = vadd.f32 %v149, %v919
  %v921 = vpop.f32.mrf.mxu0
  %v922 = vadd.f32 %v154, %v921
  %923 = vdwg.mxu0
  %924 = vmatpush.bf16.msra.mxu0 %v629
  %925 = vmatpush.bf16.msra.mxu0 %v622
  %926 = vmatpush.bf16.msra.mxu0 %v615
  %927 = vmatpush.bf16.msra.mxu0 %v608
  %928 = vmatpush.bf16.msra.mxu0 %v601
  %929 = vmatpush.bf16.msra.mxu0 %v594
  %930 = vmatpush.bf16.msra.mxu0 %v587
  %931 = vmatpush.bf16.msra.mxu0 %v580
  %932 = vmatmul.bf16.gmra.mxu0 %v163
  %v933 = vpop.f32.mrf.mxu0
  %v934 = vadd.f32 %v920, %v933
  %v935 = vpop.f32.mrf.mxu0
  %v936 = vadd.f32 %v922, %v935
  %937 = vdwg.mxu0
  %v938 = vmax.f32 %v766, 0.0
  %v939 = vmax.f32 %v794, 0.0
  %v940 = vmax.f32 %v822, 0.0
  %v941 = vmax.f32 %v850, 0.0
  %v942 = vmax.f32 %v878, 0.0
  %v943 = vmax.f32 %v906, 0.0
  %v944 = vmax.f32 %v934, 0.0
  %v945 = vmax.f32 %v768, 0.0
  %v946 = vmax.f32 %v796, 0.0
  %v947 = vmax.f32 %v824, 0.0
  %v948 = vmax.f32 %v852, 0.0
  %v949 = vmax.f32 %v880, 0.0
  %v950 = vmax.f32 %v908, 0.0
  %v951 = vmax.f32 %v936, 0.0
  %952 = vst [vmem:[%s3] sm:$0xff] %v938
  %953 = vst [vmem:[%s3 + $0x8] sm:$0xff] %v939
  %954 = vst [vmem:[%s3 + $0x10] sm:$0xff] %v940
  %955 = vst [vmem:[%s3 + $0x18] sm:$0xff] %v941
  %956 = vst [vmem:[%s3 + $0x20] sm:$0xff] %v942
  %957 = vst [vmem:[%s3 + $0x28] sm:$0xff] %v943
  %vm958 = vcmask 261120
  %959 = vst.msk [vmem:[%s3 + $0x30] sm:$0xff] %vm958, %v944
  %960 = vst [vmem:[%s3 + $0x38] sm:$0xff] %v945
  %961 = vst [vmem:[%s3 + $0x40] sm:$0xff] %v946
  %962 = vst [vmem:[%s3 + $0x48] sm:$0xff] %v947
  %963 = vst [vmem:[%s3 + $0x50] sm:$0xff] %v948
  %964 = vst [vmem:[%s3 + $0x58] sm:$0xff] %v949
  %965 = vst [vmem:[%s3 + $0x60] sm:$0xff] %v950
  %966 = vst.msk [vmem:[%s3 + $0x68] sm:$0xff] %vm958, %v951
  // Predicated region
  $region14: #{vae_forward.7} parent=0 // pred_check
    _
  $region15: #{vae_forward.7} parent=0 // pred_check_branch
    %968 = sbr.rel (0) target = $region17
  $region16: #{vae_forward.7} parent=0 // pred_region
    _
  $region17: #{vae_forward.7} parent=0 // pred_fallthru
    _
  // Predicated region
  $region18: #{vae_forward.7} parent=0 // pred_check
    _
  $region19: #{vae_forward.7} parent=0 // pred_check_branch
    %970 = sbr.rel (0) target = $region21
  $region20: #{vae_forward.7} parent=0 // pred_region
    _
  $region21: #{vae_forward.7} parent=0 // pred_fallthru
    _

// kernel: vae_forward.8
$region0: #{vae_forward.8}
  #allocation0 [shape = 'u32[]', space=smem, size = 0x4, offset = 0x4, fixed_abs, tag = 'smem constant byte address 0x4 - core index']
  #allocation1 [shape = 'u32[72,128]{1,0:T(1,128)}', space=vmem, size = 0x9000, scoped, tag = 'internal scratch']
  %s0 = inlined_call_operand.vmem [shape: bf16[32,256], index: 0, kind: input, shape index: {}]
  %s1 = inlined_call_operand.vmem [shape: bf16[256,162], index: 1, kind: input, shape index: {}]
  %s2 = inlined_call_operand.vmem [shape: f32[32,1], index: 2, kind: input, shape index: {}]
  %s3 = inlined_call_operand.vmem [shape: f32[32,162], index: 3, kind: output, shape index: {}]
  %s4 = sld [smem:[#allocation0]]
  $region22: #{vae_forward.8} parent=0
    _
  %s6 = ssub.s32 1, %s4
  %s7 = scalar_select 0, %s6, %s4
  // Predicated region
  $region2: #{vae_forward.8} parent=0 // pred_check
    _
  $region3: #{vae_forward.8} parent=0 // pred_check_branch
    %9 = sbr.rel (0) target = $region5
  $region4: #{vae_forward.8} parent=0 // pred_region
    _
  $region5: #{vae_forward.8} parent=0 // pred_fallthru
    _
  // Predicated region
  $region6: #{vae_forward.8} parent=0 // pred_check
    _
  $region7: #{vae_forward.8} parent=0 // pred_check_branch
    %11 = sbr.rel (0) target = $region9
  $region8: #{vae_forward.8} parent=0 // pred_region
    _
  $region9: #{vae_forward.8} parent=0 // pred_fallthru
    _
  // Predicated region
  $region10: #{vae_forward.8} parent=0 // pred_check
    _
  $region11: #{vae_forward.8} parent=0 // pred_check_branch
    %13 = sbr.rel (0) target = $region13
  $region12: #{vae_forward.8} parent=0 // pred_region
    _
  $region13: #{vae_forward.8} parent=0 // pred_fallthru
    _
  %v14 = vld [vmem:[%s0] sm:$0xff]
  %v15 = vld [vmem:[%s0 + $0x8] sm:$0xff]
  %v16 = vld [vmem:[%s0 + $0x10] sm:$0xff]
  %v17 = vld [vmem:[%s0 + $0x18] sm:$0xff]
  %v18 = vld [vmem:[%s1] sm:$0xff]
  %v19 = vld [vmem:[%s1 + $0x8] sm:$0xff]
  %v20 = vld [vmem:[%s1 + $0x10] sm:$0xff]
  %v21 = vld [vmem:[%s1 + $0x18] sm:$0xff]
  %v22 = vld [vmem:[%s1 + $0x20] sm:$0xff]
  %v23 = vld [vmem:[%s1 + $0x28] sm:$0xff]
  %v24 = vld [vmem:[%s1 + $0x30] sm:$0xff]
  %v25 = vld [vmem:[%s1 + $0x38] sm:$0xff]
  %v26 = vld [vmem:[%s1 + $0x40] sm:$0xff]
  %v27 = vld [vmem:[%s1 + $0x48] sm:$0xff]
  %v28 = vld [vmem:[%s1 + $0x50] sm:$0xff]
  %v29 = vld [vmem:[%s1 + $0x58] sm:$0xff]
  %v30 = vld [vmem:[%s1 + $0x60] sm:$0xff]
  %v31 = vld [vmem:[%s1 + $0x68] sm:$0xff]
  %v32 = vld [vmem:[%s1 + $0x70] sm:$0xff]
  %v33 = vld [vmem:[%s1 + $0x78] sm:$0xff]
  %v34 = vld [vmem:[%s1 + $0x80] sm:$0xff]
  %v35 = vld [vmem:[%s1 + $0x88] sm:$0xff]
  %v36 = vld [vmem:[%s1 + $0x90] sm:$0xff]
  %v37 = vld [vmem:[%s1 + $0x98] sm:$0xff]
  %v38 = vld [vmem:[%s1 + $0xa0] sm:$0xff]
  %v39 = vld [vmem:[%s1 + $0xa8] sm:$0xff]
  %v40 = vld [vmem:[%s1 + $0xb0] sm:$0xff]
  %v41 = vld [vmem:[%s1 + $0xb8] sm:$0xff]
  %v42 = vld [vmem:[%s1 + $0xc0] sm:$0xff]
  %v43 = vld [vmem:[%s1 + $0xc8] sm:$0xff]
  %v44 = vld [vmem:[%s1 + $0xd0] sm:$0xff]
  %v45 = vld [vmem:[%s1 + $0xd8] sm:$0xff]
  %v46 = vld [vmem:[%s1 + $0xe0] sm:$0xff]
  %v47 = vld [vmem:[%s1 + $0xe8] sm:$0xff]
  %v48 = vld [vmem:[%s1 + $0xf0] sm:$0xff]
  %v49 = vld [vmem:[%s1 + $0xf8] sm:$0xff]
  %v50 = vld [vmem:[%s2] sm:$0xff]
  %v51 = vld [vmem:[%s2 + $0x8] sm:$0xff]
  %v52 = vld [vmem:[%s2 + $0x10] sm:$0xff]
  %v53 = vld [vmem:[%s2 + $0x18] sm:$0xff]
  %55 = vset.pattern.permute.xlu0 0
  %56 = vperm.xlu0 %55, %v50
  %v57 = vpop.permute.xlu0 %56
  %60 = vset.pattern.permute.xlu0 0
  %61 = vperm.xlu0 %60, %v51
  %v62 = vpop.permute.xlu0 %61
  %65 = vset.pattern.permute.xlu0 0
  %66 = vperm.xlu0 %65, %v52
  %v67 = vpop.permute.xlu0 %66
  %70 = vset.pattern.permute.xlu0 0
  %71 = vperm.xlu0 %70, %v53
  %v72 = vpop.permute.xlu0 %71
  %v78 = vunpack.c.l.b16 %v14
  %v79 = vunpack.c.h.b16 %v14
  %v80 = vunpack.c.l.b16 %v15
  %v81 = vunpack.c.h.b16 %v15
  %v82 = vunpack.c.l.b16 %v16
  %v83 = vunpack.c.h.b16 %v16
  %v84 = vunpack.c.l.b16 %v17
  %v85 = vunpack.c.h.b16 %v17
  %v86 = vpack.c.b16 %v80, %v78
  %v87 = vpack.c.b16 %v81, %v79
  %v88 = vpack.c.b16 %v84, %v82
  %v89 = vpack.c.b16 %v85, %v83
  %v126 = vunpack.c.l.b16 %v18
  %v127 = vunpack.c.h.b16 %v18
  %v128 = vunpack.c.l.b16 %v19
  %v129 = vunpack.c.h.b16 %v19
  %v130 = vunpack.c.l.b16 %v20
  %v131 = vunpack.c.h.b16 %v20
  %v132 = vunpack.c.l.b16 %v21
  %v133 = vunpack.c.h.b16 %v21
  %v134 = vunpack.c.l.b16 %v22
  %v135 = vunpack.c.h.b16 %v22
  %v136 = vunpack.c.l.b16 %v23
  %v137 = vunpack.c.h.b16 %v23
  %v138 = vunpack.c.l.b16 %v24
  %v139 = vunpack.c.h.b16 %v24
  %v140 = vunpack.c.l.b16 %v25
  %v141 = vunpack.c.h.b16 %v25
  %v142 = vunpack.c.l.b16 %v26
  %v143 = vunpack.c.h.b16 %v26
  %v144 = vunpack.c.l.b16 %v27
  %v145 = vunpack.c.h.b16 %v27
  %v146 = vunpack.c.l.b16 %v28
  %v147 = vunpack.c.h.b16 %v28
  %v148 = vunpack.c.l.b16 %v29
  %v149 = vunpack.c.h.b16 %v29
  %v150 = vunpack.c.l.b16 %v30
  %v151 = vunpack.c.h.b16 %v30
  %v152 = vunpack.c.l.b16 %v31
  %v153 = vunpack.c.h.b16 %v31
  %v154 = vunpack.c.l.b16 %v32
  %v155 = vunpack.c.h.b16 %v32
  %v156 = vunpack.c.l.b16 %v33
  %v157 = vunpack.c.h.b16 %v33
  %v158 = vunpack.c.l.b16 %v34
  %v159 = vunpack.c.h.b16 %v34
  %v160 = vunpack.c.l.b16 %v35
  %v161 = vunpack.c.h.b16 %v35
  %v162 = vunpack.c.l.b16 %v36
  %v163 = vunpack.c.h.b16 %v36
  %v164 = vunpack.c.l.b16 %v37
  %v165 = vunpack.c.h.b16 %v37
  %v166 = vunpack.c.l.b16 %v38
  %v167 = vunpack.c.h.b16 %v38
  %v168 = vunpack.c.l.b16 %v39
  %v169 = vunpack.c.h.b16 %v39
  %v170 = vunpack.c.l.b16 %v40
  %v171 = vunpack.c.h.b16 %v40
  %v172 = vunpack.c.l.b16 %v41
  %v173 = vunpack.c.h.b16 %v41
  %v174 = vunpack.c.l.b16 %v42
  %v175 = vunpack.c.h.b16 %v42
  %v176 = vunpack.c.l.b16 %v43
  %v177 = vunpack.c.h.b16 %v43
  %v178 = vunpack.c.l.b16 %v44
  %v179 = vunpack.c.h.b16 %v44
  %v180 = vunpack.c.l.b16 %v45
  %v181 = vunpack.c.h.b16 %v45
  %v182 = vunpack.c.l.b16 %v46
  %v183 = vunpack.c.h.b16 %v46
  %v184 = vunpack.c.l.b16 %v47
  %v185 = vunpack.c.h.b16 %v47
  %v186 = vunpack.c.l.b16 %v48
  %v187 = vunpack.c.h.b16 %v48
  %v188 = vunpack.c.l.b16 %v49
  %v189 = vunpack.c.h.b16 %v49
  %v190 = vpack.c.b16 %v128, %v126
  %v191 = vpack.c.b16 %v129, %v127
  %v192 = vpack.c.b16 %v132, %v130
  %v193 = vpack.c.b16 %v133, %v131
  %v194 = vpack.c.b16 %v136, %v134
  %v195 = vpack.c.b16 %v137, %v135
  %v196 = vpack.c.b16 %v140, %v138
  %v197 = vpack.c.b16 %v141, %v139
  %v198 = vpack.c.b16 %v144, %v142
  %v199 = vpack.c.b16 %v145, %v143
  %v200 = vpack.c.b16 %v148, %v146
  %v201 = vpack.c.b16 %v149, %v147
  %v202 = vpack.c.b16 %v152, %v150
  %v203 = vpack.c.b16 %v153, %v151
  %v204 = vpack.c.b16 %v156, %v154
  %v205 = vpack.c.b16 %v157, %v155
  %v206 = vpack.c.b16 %v160, %v158
  %v207 = vpack.c.b16 %v161, %v159
  %v208 = vpack.c.b16 %v164, %v162
  %v209 = vpack.c.b16 %v165, %v163
  %v210 = vpack.c.b16 %v168, %v166
  %v211 = vpack.c.b16 %v169, %v167
  %v212 = vpack.c.b16 %v172, %v170
  %v213 = vpack.c.b16 %v173, %v171
  %v214 = vpack.c.b16 %v176, %v174
  %v215 = vpack.c.b16 %v177, %v175
  %v216 = vpack.c.b16 %v180, %v178
  %v217 = vpack.c.b16 %v181, %v179
  %v218 = vpack.c.b16 %v184, %v182
  %v219 = vpack.c.b16 %v185, %v183
  %v220 = vpack.c.b16 %v188, %v186
  %v221 = vpack.c.b16 %v189, %v187
  %254 = vmatpush.bf16.msra.mxu0 %v204
  %255 = vmatpush.bf16.msra.mxu0 %v202
  %256 = vmatpush.bf16.msra.mxu0 %v200
  %257 = vmatpush.bf16.msra.mxu0 %v198
  %258 = vmatpush.bf16.msra.mxu0 %v196
  %259 = vmatpush.bf16.msra.mxu0 %v194
  %260 = vmatpush.bf16.msra.mxu0 %v192
  %261 = vmatpush.bf16.msra.mxu0 %v190
  %262 = vmatmul.bf16.gmra.mxu0 %v86
  %v263 = vpop.f32.mrf.mxu0
  %v264 = vadd.f32 %v57, %v263
  %v265 = vpop.f32.mrf.mxu0
  %v266 = vadd.f32 %v62, %v265
  %267 = vmatmul.bf16.gmra.mxu0 %v88
  %v268 = vpop.f32.mrf.mxu0
  %v269 = vadd.f32 %v67, %v268
  %v270 = vpop.f32.mrf.mxu0
  %v271 = vadd.f32 %v72, %v270
  %272 = vdwg.mxu0
  %273 = vmatpush.bf16.msra.mxu0 %v220
  %274 = vmatpush.bf16.msra.mxu0 %v218
  %275 = vmatpush.bf16.msra.mxu0 %v216
  %276 = vmatpush.bf16.msra.mxu0 %v214
  %277 = vmatpush.bf16.msra.mxu0 %v212
  %278 = vmatpush.bf16.msra.mxu0 %v210
  %279 = vmatpush.bf16.msra.mxu0 %v208
  %280 = vmatpush.bf16.msra.mxu0 %v206
  %281 = vmatmul.bf16.gmra.mxu0 %v87
  %v282 = vpop.f32.mrf.mxu0
  %v283 = vadd.f32 %v264, %v282
  %v284 = vpop.f32.mrf.mxu0
  %v285 = vadd.f32 %v266, %v284
  %286 = vmatmul.bf16.gmra.mxu0 %v89
  %v287 = vpop.f32.mrf.mxu0
  %v288 = vadd.f32 %v269, %v287
  %v289 = vpop.f32.mrf.mxu0
  %v290 = vadd.f32 %v271, %v289
  %291 = vdwg.mxu0
  %292 = vmatpush.bf16.msra.mxu0 %v205
  %293 = vmatpush.bf16.msra.mxu0 %v203
  %294 = vmatpush.bf16.msra.mxu0 %v201
  %295 = vmatpush.bf16.msra.mxu0 %v199
  %296 = vmatpush.bf16.msra.mxu0 %v197
  %297 = vmatpush.bf16.msra.mxu0 %v195
  %298 = vmatpush.bf16.msra.mxu0 %v193
  %299 = vmatpush.bf16.msra.mxu0 %v191
  %300 = vmatmul.bf16.gmra.mxu0 %v86
  %v301 = vpop.f32.mrf.mxu0
  %v302 = vadd.f32 %v57, %v301
  %v303 = vpop.f32.mrf.mxu0
  %v304 = vadd.f32 %v62, %v303
  %305 = vmatmul.bf16.gmra.mxu0 %v88
  %v306 = vpop.f32.mrf.mxu0
  %v307 = vadd.f32 %v67, %v306
  %v308 = vpop.f32.mrf.mxu0
  %v309 = vadd.f32 %v72, %v308
  %310 = vdwg.mxu0
  %311 = vmatpush.bf16.msra.mxu0 %v221
  %312 = vmatpush.bf16.msra.mxu0 %v219
  %313 = vmatpush.bf16.msra.mxu0 %v217
  %314 = vmatpush.bf16.msra.mxu0 %v215
  %315 = vmatpush.bf16.msra.mxu0 %v213
  %316 = vmatpush.bf16.msra.mxu0 %v211
  %317 = vmatpush.bf16.msra.mxu0 %v209
  %318 = vmatpush.bf16.msra.mxu0 %v207
  %319 = vmatmul.bf16.gmra.mxu0 %v87
  %v320 = vpop.f32.mrf.mxu0
  %v321 = vadd.f32 %v302, %v320
  %v322 = vpop.f32.mrf.mxu0
  %v323 = vadd.f32 %v304, %v322
  %324 = vmatmul.bf16.gmra.mxu0 %v89
  %v325 = vpop.f32.mrf.mxu0
  %v326 = vadd.f32 %v307, %v325
  %v327 = vpop.f32.mrf.mxu0
  %v328 = vadd.f32 %v309, %v327
  %329 = vdwg.mxu0
  %v330 = vmax.f32 %v283, 0.0
  %v331 = vmax.f32 %v321, 0.0
  %v332 = vmax.f32 %v285, 0.0
  %v333 = vmax.f32 %v323, 0.0
  %v334 = vmax.f32 %v288, 0.0
  %v335 = vmax.f32 %v326, 0.0
  %v336 = vmax.f32 %v290, 0.0
  %v337 = vmax.f32 %v328, 0.0
  %338 = vst [vmem:[%s3] sm:$0xff] %v330
  %vm339 = vcmask 277504
  %340 = vst.msk [vmem:[%s3 + $0x8] sm:$0xff] %vm339, %v331
  %341 = vst [vmem:[%s3 + $0x10] sm:$0xff] %v332
  %342 = vst.msk [vmem:[%s3 + $0x18] sm:$0xff] %vm339, %v333
  %343 = vst [vmem:[%s3 + $0x20] sm:$0xff] %v334
  %344 = vst.msk [vmem:[%s3 + $0x28] sm:$0xff] %vm339, %v335
  %345 = vst [vmem:[%s3 + $0x30] sm:$0xff] %v336
  %346 = vst.msk [vmem:[%s3 + $0x38] sm:$0xff] %vm339, %v337
  // Predicated region
  $region14: #{vae_forward.8} parent=0 // pred_check
    _
  $region15: #{vae_forward.8} parent=0 // pred_check_branch
    %348 = sbr.rel (0) target = $region17
  $region16: #{vae_forward.8} parent=0 // pred_region
    _
  $region17: #{vae_forward.8} parent=0 // pred_fallthru
    _
  // Predicated region
  $region18: #{vae_forward.8} parent=0 // pred_check
    _
  $region19: #{vae_forward.8} parent=0 // pred_check_branch
    %350 = sbr.rel (0) target = $region21
  $region20: #{vae_forward.8} parent=0 // pred_region
    _
  $region21: #{vae_forward.8} parent=0 // pred_fallthru
    _

// kernel: vae_forward.9
$region0: #{vae_forward.9}
  #allocation0 [shape = 'u32[]', space=smem, size = 0x4, offset = 0x4, fixed_abs, tag = 'smem constant byte address 0x4 - core index']
  #allocation1 [shape = 'u32[72,128]{1,0:T(1,128)}', space=vmem, size = 0x9000, scoped, tag = 'internal scratch']
  %s0 = inlined_call_operand.vmem [shape: bf16[32,288], index: 0, kind: input, shape index: {}]
  %s1 = inlined_call_operand.vmem [shape: bf16[288,98], index: 1, kind: input, shape index: {}]
  %s2 = inlined_call_operand.vmem [shape: f32[32,1], index: 2, kind: input, shape index: {}]
  %s3 = inlined_call_operand.vmem [shape: f32[32,98], index: 3, kind: output, shape index: {}]
  %s4 = sld [smem:[#allocation0]]
  $region22: #{vae_forward.9} parent=0
    _
  %s6 = ssub.s32 1, %s4
  %s7 = scalar_select 0, %s6, %s4
  // Predicated region
  $region2: #{vae_forward.9} parent=0 // pred_check
    _
  $region3: #{vae_forward.9} parent=0 // pred_check_branch
    %9 = sbr.rel (0) target = $region5
  $region4: #{vae_forward.9} parent=0 // pred_region
    _
  $region5: #{vae_forward.9} parent=0 // pred_fallthru
    _
  // Predicated region
  $region6: #{vae_forward.9} parent=0 // pred_check
    _
  $region7: #{vae_forward.9} parent=0 // pred_check_branch
    %11 = sbr.rel (0) target = $region9
  $region8: #{vae_forward.9} parent=0 // pred_region
    _
  $region9: #{vae_forward.9} parent=0 // pred_fallthru
    _
  // Predicated region
  $region10: #{vae_forward.9} parent=0 // pred_check
    _
  $region11: #{vae_forward.9} parent=0 // pred_check_branch
    %13 = sbr.rel (0) target = $region13
  $region12: #{vae_forward.9} parent=0 // pred_region
    _
  $region13: #{vae_forward.9} parent=0 // pred_fallthru
    _
  %v15 = vld [vmem:[%s0] sm:$0xff]
  %v16 = vld [vmem:[%s0 + $0x8] sm:$0xf]
  %v17 = vld [vmem:[%s0 + $0xc] sm:$0xff]
  %v18 = vld [vmem:[%s0 + $0x14] sm:$0xf]
  %v19 = vld [vmem:[%s0 + $0x18] sm:$0xff]
  %v20 = vld [vmem:[%s0 + $0x20] sm:$0xf]
  %v21 = vld [vmem:[%s0 + $0x24] sm:$0xff]
  %v22 = vld [vmem:[%s0 + $0x2c] sm:$0xf]
  %v23 = vld [vmem:[%s1] sm:$0xf]
  %v24 = vld [vmem:[%s1 + $0x4] sm:$0xf]
  %v25 = vld [vmem:[%s1 + $0x8] sm:$0xf]
  %v26 = vld [vmem:[%s1 + $0xc] sm:$0xf]
  %v27 = vld [vmem:[%s1 + $0x10] sm:$0xf]
  %v28 = vld [vmem:[%s1 + $0x14] sm:$0xf]
  %v29 = vld [vmem:[%s1 + $0x18] sm:$0xf]
  %v30 = vld [vmem:[%s1 + $0x1c] sm:$0xf]
  %v31 = vld [vmem:[%s1 + $0x20] sm:$0xf]
  %v32 = vld [vmem:[%s1 + $0x24] sm:$0xf]
  %v33 = vld [vmem:[%s1 + $0x28] sm:$0xf]
  %v34 = vld [vmem:[%s1 + $0x2c] sm:$0xf]
  %v35 = vld [vmem:[%s1 + $0x30] sm:$0xf]
  %v36 = vld [vmem:[%s1 + $0x34] sm:$0xf]
  %v37 = vld [vmem:[%s1 + $0x38] sm:$0xf]
  %v38 = vld [vmem:[%s1 + $0x3c] sm:$0xf]
  %v39 = vld [vmem:[%s1 + $0x40] sm:$0xf]
  %v40 = vld [vmem:[%s1 + $0x44] sm:$0xf]
  %v41 = vld [vmem:[%s1 + $0x48] sm:$0xf]
  %v42 = vld [vmem:[%s1 + $0x4c] sm:$0xf]
  %v43 = vld [vmem:[%s1 + $0x50] sm:$0xf]
  %v44 = vld [vmem:[%s1 + $0x54] sm:$0xf]
  %v45 = vld [vmem:[%s1 + $0x58] sm:$0xf]
  %v46 = vld [vmem:[%s1 + $0x5c] sm:$0xf]
  %v47 = vld [vmem:[%s1 + $0x60] sm:$0xf]
  %v48 = vld [vmem:[%s1 + $0x64] sm:$0xf]
  %v49 = vld [vmem:[%s1 + $0x68] sm:$0xf]
  %v50 = vld [vmem:[%s1 + $0x6c] sm:$0xf]
  %v51 = vld [vmem:[%s1 + $0x70] sm:$0xf]
  %v52 = vld [vmem:[%s1 + $0x74] sm:$0xf]
  %v53 = vld [vmem:[%s1 + $0x78] sm:$0xf]
  %v54 = vld [vmem:[%s1 + $0x7c] sm:$0xf]
  %v55 = vld [vmem:[%s1 + $0x80] sm:$0xf]
  %v56 = vld [vmem:[%s1 + $0x84] sm:$0xf]
  %v57 = vld [vmem:[%s1 + $0x88] sm:$0xf]
  %v58 = vld [vmem:[%s1 + $0x8c] sm:$0xf]
  %v59 = vld [vmem:[%s2] sm:$0xff]
  %v60 = vld [vmem:[%s2 + $0x8] sm:$0xff]
  %v61 = vld [vmem:[%s2 + $0x10] sm:$0xff]
  %v62 = vld [vmem:[%s2 + $0x18] sm:$0xff]
  %64 = vset.pattern.permute.xlu0 0
  %65 = vperm.xlu0 %64, %v59
  %v66 = vpop.permute.xlu0 %65
  %69 = vset.pattern.permute.xlu0 0
  %70 = vperm.xlu0 %69, %v60
  %v71 = vpop.permute.xlu0 %70
  %74 = vset.pattern.permute.xlu0 0
  %75 = vperm.xlu0 %74, %v61
  %v76 = vpop.permute.xlu0 %75
  %79 = vset.pattern.permute.xlu0 0
  %80 = vperm.xlu0 %79, %v62
  %v81 = vpop.permute.xlu0 %80
  %v91 = vunpack.c.l.b16 %v15
  %v92 = vunpack.c.h.b16 %v15
  %v93 = vunpack.c.l.b16 %v16
  %v94 = vunpack.c.l.b16 %v17
  %v95 = vunpack.c.h.b16 %v17
  %v96 = vunpack.c.l.b16 %v18
  %v97 = vunpack.c.l.b16 %v19
  %v98 = vunpack.c.h.b16 %v19
  %v99 = vunpack.c.l.b16 %v20
  %v100 = vunpack.c.l.b16 %v21
  %v101 = vunpack.c.h.b16 %v21
  %v102 = vunpack.c.l.b16 %v22
  %v103 = vpack.c.b16 %v94, %v91
  %v104 = vpack.c.b16 %v95, %v92
  %v105 = vpack.c.b16 %v96, %v93
  %v106 = vpack.c.b16 %v100, %v97
  %v107 = vpack.c.b16 %v101, %v98
  %v108 = vpack.c.b16 %v102, %v99
  %v149 = vunpack.c.l.b16 %v23
  %v150 = vunpack.c.l.b16 %v24
  %v151 = vunpack.c.l.b16 %v25
  %v152 = vunpack.c.l.b16 %v26
  %v153 = vunpack.c.l.b16 %v27
  %v154 = vunpack.c.l.b16 %v28
  %v155 = vunpack.c.l.b16 %v29
  %v156 = vunpack.c.l.b16 %v30
  %v157 = vunpack.c.l.b16 %v31
  %v158 = vunpack.c.l.b16 %v32
  %v159 = vunpack.c.l.b16 %v33
  %v160 = vunpack.c.l.b16 %v34
  %v161 = vunpack.c.l.b16 %v35
  %v162 = vunpack.c.l.b16 %v36
  %v163 = vunpack.c.l.b16 %v37
  %v164 = vunpack.c.l.b16 %v38
  %v165 = vunpack.c.l.b16 %v39
  %v166 = vunpack.c.l.b16 %v40
  %v167 = vunpack.c.l.b16 %v41
  %v168 = vunpack.c.l.b16 %v42
  %v169 = vunpack.c.l.b16 %v43
  %v170 = vunpack.c.l.b16 %v44
  %v171 = vunpack.c.l.b16 %v45
  %v172 = vunpack.c.l.b16 %v46
  %v173 = vunpack.c.l.b16 %v47
  %v174 = vunpack.c.l.b16 %v48
  %v175 = vunpack.c.l.b16 %v49
  %v176 = vunpack.c.l.b16 %v50
  %v177 = vunpack.c.l.b16 %v51
  %v178 = vunpack.c.l.b16 %v52
  %v179 = vunpack.c.l.b16 %v53
  %v180 = vunpack.c.l.b16 %v54
  %v181 = vunpack.c.l.b16 %v55
  %v182 = vunpack.c.l.b16 %v56
  %v183 = vunpack.c.l.b16 %v57
  %v184 = vunpack.c.l.b16 %v58
  %v185 = vpack.c.b16 %v150, %v149
  %v186 = vpack.c.b16 %v152, %v151
  %v187 = vpack.c.b16 %v154, %v153
  %v188 = vpack.c.b16 %v156, %v155
  %v189 = vpack.c.b16 %v158, %v157
  %v190 = vpack.c.b16 %v160, %v159
  %v191 = vpack.c.b16 %v162, %v161
  %v192 = vpack.c.b16 %v164, %v163
  %v193 = vpack.c.b16 %v166, %v165
  %v194 = vpack.c.b16 %v168, %v167
  %v195 = vpack.c.b16 %v170, %v169
  %v196 = vpack.c.b16 %v172, %v171
  %v197 = vpack.c.b16 %v174, %v173
  %v198 = vpack.c.b16 %v176, %v175
  %v199 = vpack.c.b16 %v178, %v177
  %v200 = vpack.c.b16 %v180, %v179
  %v201 = vpack.c.b16 %v182, %v181
  %v202 = vpack.c.b16 %v184, %v183
  %vm221 = vcmask 261120
  %v223 = vsel %vm221, %v105, 0
  %v226 = vsel %vm221, %v108, 0
  %228 = vmatpush.bf16.msra.mxu0 %v192
  %229 = vmatpush.bf16.msra.mxu0 %v191
  %230 = vmatpush.bf16.msra.mxu0 %v190
  %231 = vmatpush.bf16.msra.mxu0 %v189
  %232 = vmatpush.bf16.msra.mxu0 %v188
  %233 = vmatpush.bf16.msra.mxu0 %v187
  %234 = vmatpush.bf16.msra.mxu0 %v186
  %235 = vmatpush.bf16.msra.mxu0 %v185
  %236 = vmatmul.bf16.gmra.mxu0 %v103
  %v237 = vpop.f32.mrf.mxu0
  %v238 = vadd.f32 %v66, %v237
  %v239 = vpop.f32.mrf.mxu0
  %v240 = vadd.f32 %v71, %v239
  %241 = vmatmul.bf16.gmra.mxu0 %v106
  %v242 = vpop.f32.mrf.mxu0
  %v243 = vadd.f32 %v76, %v242
  %v244 = vpop.f32.mrf.mxu0
  %v245 = vadd.f32 %v81, %v244
  %246 = vdwg.mxu0
  %247 = vmatpush.bf16.msra.mxu0 %v200
  %248 = vmatpush.bf16.msra.mxu0 %v199
  %249 = vmatpush.bf16.msra.mxu0 %v198
  %250 = vmatpush.bf16.msra.mxu0 %v197
  %251 = vmatpush.bf16.msra.mxu0 %v196
  %252 = vmatpush.bf16.msra.mxu0 %v195
  %253 = vmatpush.bf16.msra.mxu0 %v194
  %254 = vmatpush.bf16.msra.mxu0 %v193
  %255 = vmatmul.bf16.gmra.mxu0 %v104
  %v256 = vpop.f32.mrf.mxu0
  %v257 = vadd.f32 %v238, %v256
  %v258 = vpop.f32.mrf.mxu0
  %v259 = vadd.f32 %v240, %v258
  %260 = vmatmul.bf16.gmra.mxu0 %v107
  %v261 = vpop.f32.mrf.mxu0
  %v262 = vadd.f32 %v243, %v261
  %v263 = vpop.f32.mrf.mxu0
  %v264 = vadd.f32 %v245, %v263
  %265 = vdwg.mxu0
  %266 = vmatpush.bf16.msra.mxu0 0
  %267 = vmatpush.bf16.msra.mxu0 0
  %268 = vmatpush.bf16.msra.mxu0 0
  %269 = vmatpush.bf16.msra.mxu0 0
  %270 = vmatpush.bf16.msra.mxu0 0
  %271 = vmatpush.bf16.msra.mxu0 0
  %272 = vmatpush.bf16.msra.mxu0 %v202
  %273 = vmatpush.bf16.msra.mxu0 %v201
  %274 = vmatmul.bf16.gmra.mxu0 %v223
  %v275 = vpop.f32.mrf.mxu0
  %v276 = vadd.f32 %v257, %v275
  %v277 = vpop.f32.mrf.mxu0
  %v278 = vadd.f32 %v259, %v277
  %279 = vmatmul.bf16.gmra.mxu0 %v226
  %v280 = vpop.f32.mrf.mxu0
  %v281 = vadd.f32 %v262, %v280
  %v282 = vpop.f32.mrf.mxu0
  %v283 = vadd.f32 %v264, %v282
  %284 = vdwg.mxu0
  %v285 = vmax.f32 %v276, 0.0
  %v286 = vmax.f32 %v278, 0.0
  %v287 = vmax.f32 %v281, 0.0
  %v288 = vmax.f32 %v283, 0.0
  %vm289 = vcmask 801792
  %290 = vst.msk [vmem:[%s3] sm:$0xff] %vm289, %v285
  %291 = vst.msk [vmem:[%s3 + $0x8] sm:$0xff] %vm289, %v286
  %292 = vst.msk [vmem:[%s3 + $0x10] sm:$0xff] %vm289, %v287
  %293 = vst.msk [vmem:[%s3 + $0x18] sm:$0xff] %vm289, %v288
  // Predicated region
  $region14: #{vae_forward.9} parent=0 // pred_check
    _
  $region15: #{vae_forward.9} parent=0 // pred_check_branch
    %295 = sbr.rel (0) target = $region17
  $region16: #{vae_forward.9} parent=0 // pred_region
    _
  $region17: #{vae_forward.9} parent=0 // pred_fallthru
    _
  // Predicated region
  $region18: #{vae_forward.9} parent=0 // pred_check
    _
  $region19: #{vae_forward.9} parent=0 // pred_check_branch
    %297 = sbr.rel (0) target = $region21
  $region20: #{vae_forward.9} parent=0 // pred_region
    _
  $region21: #{vae_forward.9} parent=0 // pred_fallthru
    _

// kernel: vae_forward.10
$region0: #{vae_forward.10}
  #allocation0 [shape = 'u32[]', space=smem, size = 0x4, offset = 0x4, fixed_abs, tag = 'smem constant byte address 0x4 - core index']
  #allocation1 [shape = 'u32[72,128]{1,0:T(1,128)}', space=vmem, size = 0x9000, scoped, tag = 'internal scratch']
  %s0 = inlined_call_operand.vmem [shape: bf16[2,1568], index: 0, kind: input, shape index: {}]
  %s1 = inlined_call_operand.vmem [shape: bf16[1568,32], index: 1, kind: input, shape index: {}]
  %s2 = inlined_call_operand.vmem [shape: f32[1,32], index: 2, kind: input, shape index: {}]
  %s3 = inlined_call_operand.vmem [shape: bf16[1568,32], index: 3, kind: input, shape index: {}]
  %s4 = inlined_call_operand.vmem [shape: f32[1,32], index: 4, kind: input, shape index: {}]
  %s5 = inlined_call_operand.vmem [shape: f32[2,32], index: 5, kind: input, shape index: {}]
  %s6 = inlined_call_operand.vmem [shape: bf16[32,1568], index: 6, kind: input, shape index: {}]
  %s7 = inlined_call_operand.vmem [shape: f32[1,1568], index: 7, kind: input, shape index: {}]
  %s8 = inlined_call_operand.hbm [shape: f32[2,32], index: 8, kind: output, shape index: {0}]
  %s9 = inlined_call_operand.hbm [shape: f32[2,32], index: 9, kind: output, shape index: {1}]
  %s10 = inlined_call_operand.hbm [shape: f32[2,32], index: 10, kind: output, shape index: {2}]
  %s11 = inlined_call_operand.vmem [shape: f32[2,1568], index: 11, kind: output, shape index: {3}]
  %12 = xla_tuple %s8, %s9, %s10, %s11
  %s13 = sld [smem:[#allocation0]]
  $region66: #{vae_forward.10} parent=0
    _
  %s15 = ssub.s32 1, %s13
  %s16 = scalar_select 0, %s15, %s13
  $region1: #{vae_forward.10} parent=0
    #allocation2 [shape = 'u8[1024]{0}', space=vmem, size = 0x400, scoped, tag = 'output window, operand 0, single buffered']
    #allocation3 [shape = 's32[1]{0}', space=sflag, size = 0x4, scoped, tag = 'scoped memory for vae_forward.10']
    #allocation4 [shape = 'u8[1024]{0}', space=vmem, size = 0x400, scoped, tag = 'output window, operand 1, single buffered']
    #allocation5 [shape = 's32[1]{0}', space=sflag, size = 0x4, scoped, tag = 'scoped memory for vae_forward.10']
    #allocation6 [shape = 'u8[1024]{0}', space=vmem, size = 0x400, scoped, tag = 'output window, operand 2, single buffered']
    %17 = vsyncpa [#allocation3], 0
    %18 = vsyncpa [#allocation5], 0
    // Predicated region
    $region2: #{vae_forward.10} parent=1 // pred_check
      _
    $region3: #{vae_forward.10} parent=1 // pred_check_branch
      %20 = sbr.rel (0) target = $region5
    $region4: #{vae_forward.10} parent=1 // pred_region
      _
    $region5: #{vae_forward.10} parent=1 // pred_fallthru
      _
    // Predicated region
    $region6: #{vae_forward.10} parent=1 // pred_check
      _
    $region7: #{vae_forward.10} parent=1 // pred_check_branch
      %22 = sbr.rel (0) target = $region9
    $region8: #{vae_forward.10} parent=1 // pred_region
      _
    $region9: #{vae_forward.10} parent=1 // pred_fallthru
      _
    // Predicated region
    $region10: #{vae_forward.10} parent=1 // pred_check
      _
    $region11: #{vae_forward.10} parent=1 // pred_check_branch
      %24 = sbr.rel (0) target = $region13
    $region12: #{vae_forward.10} parent=1 // pred_region
      _
    $region13: #{vae_forward.10} parent=1 // pred_fallthru
      _
    // Predicated region
    $region14: #{vae_forward.10} parent=1 // pred_check
      _
    $region15: #{vae_forward.10} parent=1 // pred_check_branch
      %26 = sbr.rel (0) target = $region17
    $region16: #{vae_forward.10} parent=1 // pred_region
      _
    $region17: #{vae_forward.10} parent=1 // pred_fallthru
      _
    // Predicated region
    $region18: #{vae_forward.10} parent=1 // pred_check
      _
    $region19: #{vae_forward.10} parent=1 // pred_check_branch
      %28 = sbr.rel (0) target = $region21
    $region20: #{vae_forward.10} parent=1 // pred_region
      _
    $region21: #{vae_forward.10} parent=1 // pred_fallthru
      _
    // Predicated region
    $region22: #{vae_forward.10} parent=1 // pred_check
      _
    $region23: #{vae_forward.10} parent=1 // pred_check_branch
      %30 = sbr.rel (0) target = $region25
    $region24: #{vae_forward.10} parent=1 // pred_region
      _
    $region25: #{vae_forward.10} parent=1 // pred_fallthru
      _
    // Predicated region
    $region26: #{vae_forward.10} parent=1 // pred_check
      _
    $region27: #{vae_forward.10} parent=1 // pred_check_branch
      %32 = sbr.rel (0) target = $region29
    $region28: #{vae_forward.10} parent=1 // pred_region
      _
    $region29: #{vae_forward.10} parent=1 // pred_fallthru
      _
    // Predicated region
    $region30: #{vae_forward.10} parent=1 // pred_check
      _
    $region31: #{vae_forward.10} parent=1 // pred_check_branch
      %34 = sbr.rel (0) target = $region33
    $region32: #{vae_forward.10} parent=1 // pred_region
      _
    $region33: #{vae_forward.10} parent=1 // pred_fallthru
      _
    %v36 = vld [vmem:[%s0] sm:$0xff]
    %v37 = vld [vmem:[%s0 + $0x8] sm:$0x1f]
    %v38 = vld [vmem:[%s1] sm:$0xf]
    %v39 = vld [vmem:[%s1 + $0x4] sm:$0xf]
    %v40 = vld [vmem:[%s1 + $0x8] sm:$0xf]
    %v41 = vld [vmem:[%s1 + $0xc] sm:$0xf]
    %v42 = vld [vmem:[%s1 + $0x10] sm:$0xf]
    %v43 = vld [vmem:[%s1 + $0x14] sm:$0xf]
    %v44 = vld [vmem:[%s1 + $0x18] sm:$0xf]
    %v45 = vld [vmem:[%s1 + $0x1c] sm:$0xf]
    %v46 = vld [vmem:[%s1 + $0x20] sm:$0xf]
    %v47 = vld [vmem:[%s1 + $0x24] sm:$0xf]
    %v48 = vld [vmem:[%s1 + $0x28] sm:$0xf]
    %v49 = vld [vmem:[%s1 + $0x2c] sm:$0xf]
    %v50 = vld [vmem:[%s1 + $0x30] sm:$0xf]
    %v51 = vld [vmem:[%s1 + $0x34] sm:$0xf]
    %v52 = vld [vmem:[%s1 + $0x38] sm:$0xf]
    %v53 = vld [vmem:[%s1 + $0x3c] sm:$0xf]
    %v54 = vld [vmem:[%s1 + $0x40] sm:$0xf]
    %v55 = vld [vmem:[%s1 + $0x44] sm:$0xf]
    %v56 = vld [vmem:[%s1 + $0x48] sm:$0xf]
    %v57 = vld [vmem:[%s1 + $0x4c] sm:$0xf]
    %v58 = vld [vmem:[%s1 + $0x50] sm:$0xf]
    %v59 = vld [vmem:[%s1 + $0x54] sm:$0xf]
    %v60 = vld [vmem:[%s1 + $0x58] sm:$0xf]
    %v61 = vld [vmem:[%s1 + $0x5c] sm:$0xf]
    %v62 = vld [vmem:[%s1 + $0x60] sm:$0xf]
    %v63 = vld [vmem:[%s1 + $0x64] sm:$0xf]
    %v64 = vld [vmem:[%s1 + $0x68] sm:$0xf]
    %v65 = vld [vmem:[%s1 + $0x6c] sm:$0xf]
    %v66 = vld [vmem:[%s1 + $0x70] sm:$0xf]
    %v67 = vld [vmem:[%s1 + $0x74] sm:$0xf]
    %v68 = vld [vmem:[%s1 + $0x78] sm:$0xf]
    %v69 = vld [vmem:[%s1 + $0x7c] sm:$0xf]
    %v70 = vld [vmem:[%s1 + $0x80] sm:$0xf]
    %v71 = vld [vmem:[%s1 + $0x84] sm:$0xf]
    %v72 = vld [vmem:[%s1 + $0x88] sm:$0xf]
    %v73 = vld [vmem:[%s1 + $0x8c] sm:$0xf]
    %v74 = vld [vmem:[%s1 + $0x90] sm:$0xf]
    %v75 = vld [vmem:[%s1 + $0x94] sm:$0xf]
    %v76 = vld [vmem:[%s1 + $0x98] sm:$0xf]
    %v77 = vld [vmem:[%s1 + $0x9c] sm:$0xf]
    %v78 = vld [vmem:[%s1 + $0xa0] sm:$0xf]
    %v79 = vld [vmem:[%s1 + $0xa4] sm:$0xf]
    %v80 = vld [vmem:[%s1 + $0xa8] sm:$0xf]
    %v81 = vld [vmem:[%s1 + $0xac] sm:$0xf]
    %v82 = vld [vmem:[%s1 + $0xb0] sm:$0xf]
    %v83 = vld [vmem:[%s1 + $0xb4] sm:$0xf]
    %v84 = vld [vmem:[%s1 + $0xb8] sm:$0xf]
    %v85 = vld [vmem:[%s1 + $0xbc] sm:$0xf]
    %v86 = vld [vmem:[%s1 + $0xc0] sm:$0xf]
    %v87 = vld [vmem:[%s1 + $0xc4] sm:$0xf]
    %v88 = vld [vmem:[%s1 + $0xc8] sm:$0xf]
    %v89 = vld [vmem:[%s1 + $0xcc] sm:$0xf]
    %v90 = vld [vmem:[%s1 + $0xd0] sm:$0xf]
    %v91 = vld [vmem:[%s1 + $0xd4] sm:$0xf]
    %v92 = vld [vmem:[%s1 + $0xd8] sm:$0xf]
    %v93 = vld [vmem:[%s1 + $0xdc] sm:$0xf]
    %v94 = vld [vmem:[%s1 + $0xe0] sm:$0xf]
    %v95 = vld [vmem:[%s1 + $0xe4] sm:$0xf]
    %v96 = vld [vmem:[%s1 + $0xe8] sm:$0xf]
    %v97 = vld [vmem:[%s1 + $0xec] sm:$0xf]
    %v98 = vld [vmem:[%s1 + $0xf0] sm:$0xf]
    %v99 = vld [vmem:[%s1 + $0xf4] sm:$0xf]
    %v100 = vld [vmem:[%s1 + $0xf8] sm:$0xf]
    %v101 = vld [vmem:[%s1 + $0xfc] sm:$0xf]
    %v102 = vld [vmem:[%s1 + $0x100] sm:$0xf]
    %v103 = vld [vmem:[%s1 + $0x104] sm:$0xf]
    %v104 = vld [vmem:[%s1 + $0x108] sm:$0xf]
    %v105 = vld [vmem:[%s1 + $0x10c] sm:$0xf]
    %v106 = vld [vmem:[%s1 + $0x110] sm:$0xf]
    %v107 = vld [vmem:[%s1 + $0x114] sm:$0xf]
    %v108 = vld [vmem:[%s1 + $0x118] sm:$0xf]
    %v109 = vld [vmem:[%s1 + $0x11c] sm:$0xf]
    %v110 = vld [vmem:[%s1 + $0x120] sm:$0xf]
    %v111 = vld [vmem:[%s1 + $0x124] sm:$0xf]
    %v112 = vld [vmem:[%s1 + $0x128] sm:$0xf]
    %v113 = vld [vmem:[%s1 + $0x12c] sm:$0xf]
    %v114 = vld [vmem:[%s1 + $0x130] sm:$0xf]
    %v115 = vld [vmem:[%s1 + $0x134] sm:$0xf]
    %v116 = vld [vmem:[%s1 + $0x138] sm:$0xf]
    %v117 = vld [vmem:[%s1 + $0x13c] sm:$0xf]
    %v118 = vld [vmem:[%s1 + $0x140] sm:$0xf]
    %v119 = vld [vmem:[%s1 + $0x144] sm:$0xf]
    %v120 = vld [vmem:[%s1 + $0x148] sm:$0xf]
    %v121 = vld [vmem:[%s1 + $0x14c] sm:$0xf]
    %v122 = vld [vmem:[%s1 + $0x150] sm:$0xf]
    %v123 = vld [vmem:[%s1 + $0x154] sm:$0xf]
    %v124 = vld [vmem:[%s1 + $0x158] sm:$0xf]
    %v125 = vld [vmem:[%s1 + $0x15c] sm:$0xf]
    %v126 = vld [vmem:[%s1 + $0x160] sm:$0xf]
    %v127 = vld [vmem:[%s1 + $0x164] sm:$0xf]
    %v128 = vld [vmem:[%s1 + $0x168] sm:$0xf]
    %v129 = vld [vmem:[%s1 + $0x16c] sm:$0xf]
    %v130 = vld [vmem:[%s1 + $0x170] sm:$0xf]
    %v131 = vld [vmem:[%s1 + $0x174] sm:$0xf]
    %v132 = vld [vmem:[%s1 + $0x178] sm:$0xf]
    %v133 = vld [vmem:[%s1 + $0x17c] sm:$0xf]
    %v134 = vld [vmem:[%s1 + $0x180] sm:$0xf]
    %v135 = vld [vmem:[%s1 + $0x184] sm:$0xf]
    %v136 = vld [vmem:[%s1 + $0x188] sm:$0xf]
    %v137 = vld [vmem:[%s1 + $0x18c] sm:$0xf]
    %v138 = vld [vmem:[%s1 + $0x190] sm:$0xf]
    %v139 = vld [vmem:[%s1 + $0x194] sm:$0xf]
    %v140 = vld [vmem:[%s1 + $0x198] sm:$0xf]
    %v141 = vld [vmem:[%s1 + $0x19c] sm:$0xf]
    %v142 = vld [vmem:[%s1 + $0x1a0] sm:$0xf]
    %v143 = vld [vmem:[%s1 + $0x1a4] sm:$0xf]
    %v144 = vld [vmem:[%s1 + $0x1a8] sm:$0xf]
    %v145 = vld [vmem:[%s1 + $0x1ac] sm:$0xf]
    %v146 = vld [vmem:[%s1 + $0x1b0] sm:$0xf]
    %v147 = vld [vmem:[%s1 + $0x1b4] sm:$0xf]
    %v148 = vld [vmem:[%s1 + $0x1b8] sm:$0xf]
    %v149 = vld [vmem:[%s1 + $0x1bc] sm:$0xf]
    %v150 = vld [vmem:[%s1 + $0x1c0] sm:$0xf]
    %v151 = vld [vmem:[%s1 + $0x1c4] sm:$0xf]
    %v152 = vld [vmem:[%s1 + $0x1c8] sm:$0xf]
    %v153 = vld [vmem:[%s1 + $0x1cc] sm:$0xf]
    %v154 = vld [vmem:[%s1 + $0x1d0] sm:$0xf]
    %v155 = vld [vmem:[%s1 + $0x1d4] sm:$0xf]
    %v156 = vld [vmem:[%s1 + $0x1d8] sm:$0xf]
    %v157 = vld [vmem:[%s1 + $0x1dc] sm:$0xf]
    %v158 = vld [vmem:[%s1 + $0x1e0] sm:$0xf]
    %v159 = vld [vmem:[%s1 + $0x1e4] sm:$0xf]
    %v160 = vld [vmem:[%s1 + $0x1e8] sm:$0xf]
    %v161 = vld [vmem:[%s1 + $0x1ec] sm:$0xf]
    %v162 = vld [vmem:[%s1 + $0x1f0] sm:$0xf]
    %v163 = vld [vmem:[%s1 + $0x1f4] sm:$0xf]
    %v164 = vld [vmem:[%s1 + $0x1f8] sm:$0xf]
    %v165 = vld [vmem:[%s1 + $0x1fc] sm:$0xf]
    %v166 = vld [vmem:[%s1 + $0x200] sm:$0xf]
    %v167 = vld [vmem:[%s1 + $0x204] sm:$0xf]
    %v168 = vld [vmem:[%s1 + $0x208] sm:$0xf]
    %v169 = vld [vmem:[%s1 + $0x20c] sm:$0xf]
    %v170 = vld [vmem:[%s1 + $0x210] sm:$0xf]
    %v171 = vld [vmem:[%s1 + $0x214] sm:$0xf]
    %v172 = vld [vmem:[%s1 + $0x218] sm:$0xf]
    %v173 = vld [vmem:[%s1 + $0x21c] sm:$0xf]
    %v174 = vld [vmem:[%s1 + $0x220] sm:$0xf]
    %v175 = vld [vmem:[%s1 + $0x224] sm:$0xf]
    %v176 = vld [vmem:[%s1 + $0x228] sm:$0xf]
    %v177 = vld [vmem:[%s1 + $0x22c] sm:$0xf]
    %v178 = vld [vmem:[%s1 + $0x230] sm:$0xf]
    %v179 = vld [vmem:[%s1 + $0x234] sm:$0xf]
    %v180 = vld [vmem:[%s1 + $0x238] sm:$0xf]
    %v181 = vld [vmem:[%s1 + $0x23c] sm:$0xf]
    %v182 = vld [vmem:[%s1 + $0x240] sm:$0xf]
    %v183 = vld [vmem:[%s1 + $0x244] sm:$0xf]
    %v184 = vld [vmem:[%s1 + $0x248] sm:$0xf]
    %v185 = vld [vmem:[%s1 + $0x24c] sm:$0xf]
    %v186 = vld [vmem:[%s1 + $0x250] sm:$0xf]
    %v187 = vld [vmem:[%s1 + $0x254] sm:$0xf]
    %v188 = vld [vmem:[%s1 + $0x258] sm:$0xf]
    %v189 = vld [vmem:[%s1 + $0x25c] sm:$0xf]
    %v190 = vld [vmem:[%s1 + $0x260] sm:$0xf]
    %v191 = vld [vmem:[%s1 + $0x264] sm:$0xf]
    %v192 = vld [vmem:[%s1 + $0x268] sm:$0xf]
    %v193 = vld [vmem:[%s1 + $0x26c] sm:$0xf]
    %v194 = vld [vmem:[%s1 + $0x270] sm:$0xf]
    %v195 = vld [vmem:[%s1 + $0x274] sm:$0xf]
    %v196 = vld [vmem:[%s1 + $0x278] sm:$0xf]
    %v197 = vld [vmem:[%s1 + $0x27c] sm:$0xf]
    %v198 = vld [vmem:[%s1 + $0x280] sm:$0xf]
    %v199 = vld [vmem:[%s1 + $0x284] sm:$0xf]
    %v200 = vld [vmem:[%s1 + $0x288] sm:$0xf]
    %v201 = vld [vmem:[%s1 + $0x28c] sm:$0xf]
    %v202 = vld [vmem:[%s1 + $0x290] sm:$0xf]
    %v203 = vld [vmem:[%s1 + $0x294] sm:$0xf]
    %v204 = vld [vmem:[%s1 + $0x298] sm:$0xf]
    %v205 = vld [vmem:[%s1 + $0x29c] sm:$0xf]
    %v206 = vld [vmem:[%s1 + $0x2a0] sm:$0xf]
    %v207 = vld [vmem:[%s1 + $0x2a4] sm:$0xf]
    %v208 = vld [vmem:[%s1 + $0x2a8] sm:$0xf]
    %v209 = vld [vmem:[%s1 + $0x2ac] sm:$0xf]
    %v210 = vld [vmem:[%s1 + $0x2b0] sm:$0xf]
    %v211 = vld [vmem:[%s1 + $0x2b4] sm:$0xf]
    %v212 = vld [vmem:[%s1 + $0x2b8] sm:$0xf]
    %v213 = vld [vmem:[%s1 + $0x2bc] sm:$0xf]
    %v214 = vld [vmem:[%s1 + $0x2c0] sm:$0xf]
    %v215 = vld [vmem:[%s1 + $0x2c4] sm:$0xf]
    %v216 = vld [vmem:[%s1 + $0x2c8] sm:$0xf]
    %v217 = vld [vmem:[%s1 + $0x2cc] sm:$0xf]
    %v218 = vld [vmem:[%s1 + $0x2d0] sm:$0xf]
    %v219 = vld [vmem:[%s1 + $0x2d4] sm:$0xf]
    %v220 = vld [vmem:[%s1 + $0x2d8] sm:$0xf]
    %v221 = vld [vmem:[%s1 + $0x2dc] sm:$0xf]
    %v222 = vld [vmem:[%s1 + $0x2e0] sm:$0xf]
    %v223 = vld [vmem:[%s1 + $0x2e4] sm:$0xf]
    %v224 = vld [vmem:[%s1 + $0x2e8] sm:$0xf]
    %v225 = vld [vmem:[%s1 + $0x2ec] sm:$0xf]
    %v226 = vld [vmem:[%s1 + $0x2f0] sm:$0xf]
    %v227 = vld [vmem:[%s1 + $0x2f4] sm:$0xf]
    %v228 = vld [vmem:[%s1 + $0x2f8] sm:$0xf]
    %v229 = vld [vmem:[%s1 + $0x2fc] sm:$0xf]
    %v230 = vld [vmem:[%s1 + $0x300] sm:$0xf]
    %v231 = vld [vmem:[%s1 + $0x304] sm:$0xf]
    %v232 = vld [vmem:[%s1 + $0x308] sm:$0xf]
    %v233 = vld [vmem:[%s1 + $0x30c] sm:$0xf]
    %v234 = vld [vmem:[%s2] sm:$0x1]
    %v236 = vperm.slane %v234, 0
    %239 = vst [vmem:[#allocation1] ss:$9 sm:$0xff] %v36
    %v240 = vld [vmem:[#allocation1] sm:$0xff]
    %v241 = vld [vmem:[#allocation1 + $0x9] sm:$0xff]
    %v242 = vld [vmem:[#allocation1 + $0x12] sm:$0xff]
    %v243 = vld [vmem:[#allocation1 + $0x1b] sm:$0xff]
    %v244 = vld [vmem:[#allocation1 + $0x24] sm:$0xff]
    %v245 = vld [vmem:[#allocation1 + $0x2d] sm:$0xff]
    %v246 = vld [vmem:[#allocation1 + $0x36] sm:$0xff]
    %v247 = vld [vmem:[#allocation1 + $0x3f] sm:$0xff]
    %249 = vst [vmem:[#allocation1] ss:$9 sm:$0xff] %v37
    %v250 = vld [vmem:[#allocation1] sm:$0xff]
    %v251 = vld [vmem:[#allocation1 + $0x9] sm:$0xff]
    %v252 = vld [vmem:[#allocation1 + $0x12] sm:$0xff]
    %v253 = vld [vmem:[#allocation1 + $0x1b] sm:$0xff]
    %v254 = vld [vmem:[#allocation1 + $0x24] sm:$0xff]
    %v463 = vunpack.c.l.b16 %v38
    %v464 = vunpack.c.l.b16 %v39
    %v465 = vunpack.c.l.b16 %v40
    %v466 = vunpack.c.l.b16 %v41
    %v467 = vunpack.c.l.b16 %v42
    %v468 = vunpack.c.l.b16 %v43
    %v469 = vunpack.c.l.b16 %v44
    %v470 = vunpack.c.l.b16 %v45
    %v471 = vunpack.c.l.b16 %v46
    %v472 = vunpack.c.l.b16 %v47
    %v473 = vunpack.c.l.b16 %v48
    %v474 = vunpack.c.l.b16 %v49
    %v475 = vunpack.c.l.b16 %v50
    %v476 = vunpack.c.l.b16 %v51
    %v477 = vunpack.c.l.b16 %v52
    %v478 = vunpack.c.l.b16 %v53
    %v479 = vunpack.c.l.b16 %v54
    %v480 = vunpack.c.l.b16 %v55
    %v481 = vunpack.c.l.b16 %v56
    %v482 = vunpack.c.l.b16 %v57
    %v483 = vunpack.c.l.b16 %v58
    %v484 = vunpack.c.l.b16 %v59
    %v485 = vunpack.c.l.b16 %v60
    %v486 = vunpack.c.l.b16 %v61
    %v487 = vunpack.c.l.b16 %v62
    %v488 = vunpack.c.l.b16 %v63
    %v489 = vunpack.c.l.b16 %v64
    %v490 = vunpack.c.l.b16 %v65
    %v491 = vunpack.c.l.b16 %v66
    %v492 = vunpack.c.l.b16 %v67
    %v493 = vunpack.c.l.b16 %v68
    %v494 = vunpack.c.l.b16 %v69
    %v495 = vunpack.c.l.b16 %v70
    %v496 = vunpack.c.l.b16 %v71
    %v497 = vunpack.c.l.b16 %v72
    %v498 = vunpack.c.l.b16 %v73
    %v499 = vunpack.c.l.b16 %v74
    %v500 = vunpack.c.l.b16 %v75
    %v501 = vunpack.c.l.b16 %v76
    %v502 = vunpack.c.l.b16 %v77
    %v503 = vunpack.c.l.b16 %v78
    %v504 = vunpack.c.l.b16 %v79
    %v505 = vunpack.c.l.b16 %v80
    %v506 = vunpack.c.l.b16 %v81
    %v507 = vunpack.c.l.b16 %v82
    %v508 = vunpack.c.l.b16 %v83
    %v509 = vunpack.c.l.b16 %v84
    %v510 = vunpack.c.l.b16 %v85
    %v511 = vunpack.c.l.b16 %v86
    %v512 = vunpack.c.l.b16 %v87
    %v513 = vunpack.c.l.b16 %v88
    %v514 = vunpack.c.l.b16 %v89
    %v515 = vunpack.c.l.b16 %v90
    %v516 = vunpack.c.l.b16 %v91
    %v517 = vunpack.c.l.b16 %v92
    %v518 = vunpack.c.l.b16 %v93
    %v519 = vunpack.c.l.b16 %v94
    %v520 = vunpack.c.l.b16 %v95
    %v521 = vunpack.c.l.b16 %v96
    %v522 = vunpack.c.l.b16 %v97
    %v523 = vunpack.c.l.b16 %v98
    %v524 = vunpack.c.l.b16 %v99
    %v525 = vunpack.c.l.b16 %v100
    %v526 = vunpack.c.l.b16 %v101
    %v527 = vunpack.c.l.b16 %v102
    %v528 = vunpack.c.l.b16 %v103
    %v529 = vunpack.c.l.b16 %v104
    %v530 = vunpack.c.l.b16 %v105
    %v531 = vunpack.c.l.b16 %v106
    %v532 = vunpack.c.l.b16 %v107
    %v533 = vunpack.c.l.b16 %v108
    %v534 = vunpack.c.l.b16 %v109
    %v535 = vunpack.c.l.b16 %v110
    %v536 = vunpack.c.l.b16 %v111
    %v537 = vunpack.c.l.b16 %v112
    %v538 = vunpack.c.l.b16 %v113
    %v539 = vunpack.c.l.b16 %v114
    %v540 = vunpack.c.l.b16 %v115
    %v541 = vunpack.c.l.b16 %v116
    %v542 = vunpack.c.l.b16 %v117
    %v543 = vunpack.c.l.b16 %v118
    %v544 = vunpack.c.l.b16 %v119
    %v545 = vunpack.c.l.b16 %v120
    %v546 = vunpack.c.l.b16 %v121
    %v547 = vunpack.c.l.b16 %v122
    %v548 = vunpack.c.l.b16 %v123
    %v549 = vunpack.c.l.b16 %v124
    %v550 = vunpack.c.l.b16 %v125
    %v551 = vunpack.c.l.b16 %v126
    %v552 = vunpack.c.l.b16 %v127
    %v553 = vunpack.c.l.b16 %v128
    %v554 = vunpack.c.l.b16 %v129
    %v555 = vunpack.c.l.b16 %v130
    %v556 = vunpack.c.l.b16 %v131
    %v557 = vunpack.c.l.b16 %v132
    %v558 = vunpack.c.l.b16 %v133
    %v559 = vunpack.c.l.b16 %v134
    %v560 = vunpack.c.l.b16 %v135
    %v561 = vunpack.c.l.b16 %v136
    %v562 = vunpack.c.l.b16 %v137
    %v563 = vunpack.c.l.b16 %v138
    %v564 = vunpack.c.l.b16 %v139
    %v565 = vunpack.c.l.b16 %v140
    %v566 = vunpack.c.l.b16 %v141
    %v567 = vunpack.c.l.b16 %v142
    %v568 = vunpack.c.l.b16 %v143
    %v569 = vunpack.c.l.b16 %v144
    %v570 = vunpack.c.l.b16 %v145
    %v571 = vunpack.c.l.b16 %v146
    %v572 = vunpack.c.l.b16 %v147
    %v573 = vunpack.c.l.b16 %v148
    %v574 = vunpack.c.l.b16 %v149
    %v575 = vunpack.c.l.b16 %v150
    %v576 = vunpack.c.l.b16 %v151
    %v577 = vunpack.c.l.b16 %v152
    %v578 = vunpack.c.l.b16 %v153
    %v579 = vunpack.c.l.b16 %v154
    %v580 = vunpack.c.l.b16 %v155
    %v581 = vunpack.c.l.b16 %v156
    %v582 = vunpack.c.l.b16 %v157
    %v583 = vunpack.c.l.b16 %v158
    %v584 = vunpack.c.l.b16 %v159
    %v585 = vunpack.c.l.b16 %v160
    %v586 = vunpack.c.l.b16 %v161
    %v587 = vunpack.c.l.b16 %v162
    %v588 = vunpack.c.l.b16 %v163
    %v589 = vunpack.c.l.b16 %v164
    %v590 = vunpack.c.l.b16 %v165
    %v591 = vunpack.c.l.b16 %v166
    %v592 = vunpack.c.l.b16 %v167
    %v593 = vunpack.c.l.b16 %v168
    %v594 = vunpack.c.l.b16 %v169
    %v595 = vunpack.c.l.b16 %v170
    %v596 = vunpack.c.l.b16 %v171
    %v597 = vunpack.c.l.b16 %v172
    %v598 = vunpack.c.l.b16 %v173
    %v599 = vunpack.c.l.b16 %v174
    %v600 = vunpack.c.l.b16 %v175
    %v601 = vunpack.c.l.b16 %v176
    %v602 = vunpack.c.l.b16 %v177
    %v603 = vunpack.c.l.b16 %v178
    %v604 = vunpack.c.l.b16 %v179
    %v605 = vunpack.c.l.b16 %v180
    %v606 = vunpack.c.l.b16 %v181
    %v607 = vunpack.c.l.b16 %v182
    %v608 = vunpack.c.l.b16 %v183
    %v609 = vunpack.c.l.b16 %v184
    %v610 = vunpack.c.l.b16 %v185
    %v611 = vunpack.c.l.b16 %v186
    %v612 = vunpack.c.l.b16 %v187
    %v613 = vunpack.c.l.b16 %v188
    %v614 = vunpack.c.l.b16 %v189
    %v615 = vunpack.c.l.b16 %v190
    %v616 = vunpack.c.l.b16 %v191
    %v617 = vunpack.c.l.b16 %v192
    %v618 = vunpack.c.l.b16 %v193
    %v619 = vunpack.c.l.b16 %v194
    %v620 = vunpack.c.l.b16 %v195
    %v621 = vunpack.c.l.b16 %v196
    %v622 = vunpack.c.l.b16 %v197
    %v623 = vunpack.c.l.b16 %v198
    %v624 = vunpack.c.l.b16 %v199
    %v625 = vunpack.c.l.b16 %v200
    %v626 = vunpack.c.l.b16 %v201
    %v627 = vunpack.c.l.b16 %v202
    %v628 = vunpack.c.l.b16 %v203
    %v629 = vunpack.c.l.b16 %v204
    %v630 = vunpack.c.l.b16 %v205
    %v631 = vunpack.c.l.b16 %v206
    %v632 = vunpack.c.l.b16 %v207
    %v633 = vunpack.c.l.b16 %v208
    %v634 = vunpack.c.l.b16 %v209
    %v635 = vunpack.c.l.b16 %v210
    %v636 = vunpack.c.l.b16 %v211
    %v637 = vunpack.c.l.b16 %v212
    %v638 = vunpack.c.l.b16 %v213
    %v639 = vunpack.c.l.b16 %v214
    %v640 = vunpack.c.l.b16 %v215
    %v641 = vunpack.c.l.b16 %v216
    %v642 = vunpack.c.l.b16 %v217
    %v643 = vunpack.c.l.b16 %v218
    %v644 = vunpack.c.l.b16 %v219
    %v645 = vunpack.c.l.b16 %v220
    %v646 = vunpack.c.l.b16 %v221
    %v647 = vunpack.c.l.b16 %v222
    %v648 = vunpack.c.l.b16 %v223
    %v649 = vunpack.c.l.b16 %v224
    %v650 = vunpack.c.l.b16 %v225
    %v651 = vunpack.c.l.b16 %v226
    %v652 = vunpack.c.l.b16 %v227
    %v653 = vunpack.c.l.b16 %v228
    %v654 = vunpack.c.l.b16 %v229
    %v655 = vunpack.c.l.b16 %v230
    %v656 = vunpack.c.l.b16 %v231
    %v657 = vunpack.c.l.b16 %v232
    %v658 = vunpack.c.l.b16 %v233
    %v659 = vpack.c.b16 %v464, %v463
    %v660 = vpack.c.b16 %v466, %v465
    %v661 = vpack.c.b16 %v468, %v467
    %v662 = vpack.c.b16 %v470, %v469
    %v663 = vpack.c.b16 %v472, %v471
    %v664 = vpack.c.b16 %v474, %v473
    %v665 = vpack.c.b16 %v476, %v475
    %v666 = vpack.c.b16 %v478, %v477
    %v667 = vpack.c.b16 %v480, %v479
    %v668 = vpack.c.b16 %v482, %v481
    %v669 = vpack.c.b16 %v484, %v483
    %v670 = vpack.c.b16 %v486, %v485
    %v671 = vpack.c.b16 %v488, %v487
    %v672 = vpack.c.b16 %v490, %v489
    %v673 = vpack.c.b16 %v492, %v491
    %v674 = vpack.c.b16 %v494, %v493
    %v675 = vpack.c.b16 %v496, %v495
    %v676 = vpack.c.b16 %v498, %v497
    %v677 = vpack.c.b16 %v500, %v499
    %v678 = vpack.c.b16 %v502, %v501
    %v679 = vpack.c.b16 %v504, %v503
    %v680 = vpack.c.b16 %v506, %v505
    %v681 = vpack.c.b16 %v508, %v507
    %v682 = vpack.c.b16 %v510, %v509
    %v683 = vpack.c.b16 %v512, %v511
    %v684 = vpack.c.b16 %v514, %v513
    %v685 = vpack.c.b16 %v516, %v515
    %v686 = vpack.c.b16 %v518, %v517
    %v687 = vpack.c.b16 %v520, %v519
    %v688 = vpack.c.b16 %v522, %v521
    %v689 = vpack.c.b16 %v524, %v523
    %v690 = vpack.c.b16 %v526, %v525
    %v691 = vpack.c.b16 %v528, %v527
    %v692 = vpack.c.b16 %v530, %v529
    %v693 = vpack.c.b16 %v532, %v531
    %v694 = vpack.c.b16 %v534, %v533
    %v695 = vpack.c.b16 %v536, %v535
    %v696 = vpack.c.b16 %v538, %v537
    %v697 = vpack.c.b16 %v540, %v539
    %v698 = vpack.c.b16 %v542, %v541
    %v699 = vpack.c.b16 %v544, %v543
    %v700 = vpack.c.b16 %v546, %v545
    %v701 = vpack.c.b16 %v548, %v547
    %v702 = vpack.c.b16 %v550, %v549
    %v703 = vpack.c.b16 %v552, %v551
    %v704 = vpack.c.b16 %v554, %v553
    %v705 = vpack.c.b16 %v556, %v555
    %v706 = vpack.c.b16 %v558, %v557
    %v707 = vpack.c.b16 %v560, %v559
    %v708 = vpack.c.b16 %v562, %v561
    %v709 = vpack.c.b16 %v564, %v563
    %v710 = vpack.c.b16 %v566, %v565
    %v711 = vpack.c.b16 %v568, %v567
    %v712 = vpack.c.b16 %v570, %v569
    %v713 = vpack.c.b16 %v572, %v571
    %v714 = vpack.c.b16 %v574, %v573
    %v715 = vpack.c.b16 %v576, %v575
    %v716 = vpack.c.b16 %v578, %v577
    %v717 = vpack.c.b16 %v580, %v579
    %v718 = vpack.c.b16 %v582, %v581
    %v719 = vpack.c.b16 %v584, %v583
    %v720 = vpack.c.b16 %v586, %v585
    %v721 = vpack.c.b16 %v588, %v587
    %v722 = vpack.c.b16 %v590, %v589
    %v723 = vpack.c.b16 %v592, %v591
    %v724 = vpack.c.b16 %v594, %v593
    %v725 = vpack.c.b16 %v596, %v595
    %v726 = vpack.c.b16 %v598, %v597
    %v727 = vpack.c.b16 %v600, %v599
    %v728 = vpack.c.b16 %v602, %v601
    %v729 = vpack.c.b16 %v604, %v603
    %v730 = vpack.c.b16 %v606, %v605
    %v731 = vpack.c.b16 %v608, %v607
    %v732 = vpack.c.b16 %v610, %v609
    %v733 = vpack.c.b16 %v612, %v611
    %v734 = vpack.c.b16 %v614, %v613
    %v735 = vpack.c.b16 %v616, %v615
    %v736 = vpack.c.b16 %v618, %v617
    %v737 = vpack.c.b16 %v620, %v619
    %v738 = vpack.c.b16 %v622, %v621
    %v739 = vpack.c.b16 %v624, %v623
    %v740 = vpack.c.b16 %v626, %v625
    %v741 = vpack.c.b16 %v628, %v627
    %v742 = vpack.c.b16 %v630, %v629
    %v743 = vpack.c.b16 %v632, %v631
    %v744 = vpack.c.b16 %v634, %v633
    %v745 = vpack.c.b16 %v636, %v635
    %v746 = vpack.c.b16 %v638, %v637
    %v747 = vpack.c.b16 %v640, %v639
    %v748 = vpack.c.b16 %v642, %v641
    %v749 = vpack.c.b16 %v644, %v643
    %v750 = vpack.c.b16 %v646, %v645
    %v751 = vpack.c.b16 %v648, %v647
    %v752 = vpack.c.b16 %v650, %v649
    %v753 = vpack.c.b16 %v652, %v651
    %v754 = vpack.c.b16 %v654, %v653
    %v755 = vpack.c.b16 %v656, %v655
    %v756 = vpack.c.b16 %v658, %v657
    %vm855 = vcmask 261120
    %v856 = vsel %vm855, %v254, 0
    %858 = vmatpush.bf16.msra.mxu0 %v666
    %859 = vmatpush.bf16.msra.mxu0 %v665
    %860 = vmatpush.bf16.msra.mxu0 %v664
    %861 = vmatpush.bf16.msra.mxu0 %v663
    %862 = vmatpush.bf16.msra.mxu0 %v662
    %863 = vmatpush.bf16.msra.mxu0 %v661
    %864 = vmatpush.bf16.msra.mxu0 %v660
    %865 = vmatpush.bf16.msra.mxu0 %v659
    %866 = vmatmul.bf16.gmra.mxu0 %v240
    %v867 = vpop.f32.mrf.mxu0
    %v868 = vadd.f32 %v236, %v867
    %v869 = vpop.f32.mrf.mxu0
    %870 = vdwg.mxu0
    %871 = vmatpush.bf16.msra.mxu0 %v674
    %872 = vmatpush.bf16.msra.mxu0 %v673
    %873 = vmatpush.bf16.msra.mxu0 %v672
    %874 = vmatpush.bf16.msra.mxu0 %v671
    %875 = vmatpush.bf16.msra.mxu0 %v670
    %876 = vmatpush.bf16.msra.mxu0 %v669
    %877 = vmatpush.bf16.msra.mxu0 %v668
    %878 = vmatpush.bf16.msra.mxu0 %v667
    %879 = vmatmul.bf16.gmra.mxu0 %v241
    %v880 = vpop.f32.mrf.mxu0
    %v881 = vadd.f32 %v868, %v880
    %v882 = vpop.f32.mrf.mxu0
    %883 = vdwg.mxu0
    %884 = vmatpush.bf16.msra.mxu0 %v682
    %885 = vmatpush.bf16.msra.mxu0 %v681
    %886 = vmatpush.bf16.msra.mxu0 %v680
    %887 = vmatpush.bf16.msra.mxu0 %v679
    %888 = vmatpush.bf16.msra.mxu0 %v678
    %889 = vmatpush.bf16.msra.mxu0 %v677
    %890 = vmatpush.bf16.msra.mxu0 %v676
    %891 = vmatpush.bf16.msra.mxu0 %v675
    %892 = vmatmul.bf16.gmra.mxu0 %v242
    %v893 = vpop.f32.mrf.mxu0
    %v894 = vadd.f32 %v881, %v893
    %v895 = vpop.f32.mrf.mxu0
    %896 = vdwg.mxu0
    %897 = vmatpush.bf16.msra.mxu0 %v690
    %898 = vmatpush.bf16.msra.mxu0 %v689
    %899 = vmatpush.bf16.msra.mxu0 %v688
    %900 = vmatpush.bf16.msra.mxu0 %v687
    %901 = vmatpush.bf16.msra.mxu0 %v686
    %902 = vmatpush.bf16.msra.mxu0 %v685
    %903 = vmatpush.bf16.msra.mxu0 %v684
    %904 = vmatpush.bf16.msra.mxu0 %v683
    %905 = vmatmul.bf16.gmra.mxu0 %v243
    %v906 = vpop.f32.mrf.mxu0
    %v907 = vadd.f32 %v894, %v906
    %v908 = vpop.f32.mrf.mxu0
    %909 = vdwg.mxu0
    %910 = vmatpush.bf16.msra.mxu0 %v698
    %911 = vmatpush.bf16.msra.mxu0 %v697
    %912 = vmatpush.bf16.msra.mxu0 %v696
    %913 = vmatpush.bf16.msra.mxu0 %v695
    %914 = vmatpush.bf16.msra.mxu0 %v694
    %915 = vmatpush.bf16.msra.mxu0 %v693
    %916 = vmatpush.bf16.msra.mxu0 %v692
    %917 = vmatpush.bf16.msra.mxu0 %v691
    %918 = vmatmul.bf16.gmra.mxu0 %v244
    %v919 = vpop.f32.mrf.mxu0
    %v920 = vadd.f32 %v907, %v919
    %v921 = vpop.f32.mrf.mxu0
    %922 = vdwg.mxu0
    %923 = vmatpush.bf16.msra.mxu0 %v706
    %924 = vmatpush.bf16.msra.mxu0 %v705
    %925 = vmatpush.bf16.msra.mxu0 %v704
    %926 = vmatpush.bf16.msra.mxu0 %v703
    %927 = vmatpush.bf16.msra.mxu0 %v702
    %928 = vmatpush.bf16.msra.mxu0 %v701
    %929 = vmatpush.bf16.msra.mxu0 %v700
    %930 = vmatpush.bf16.msra.mxu0 %v699
    %931 = vmatmul.bf16.gmra.mxu0 %v245
    %v932 = vpop.f32.mrf.mxu0
    %v933 = vadd.f32 %v920, %v932
    %v934 = vpop.f32.mrf.mxu0
    %935 = vdwg.mxu0
    %936 = vmatpush.bf16.msra.mxu0 %v714
    %937 = vmatpush.bf16.msra.mxu0 %v713
    %938 = vmatpush.bf16.msra.mxu0 %v712
    %939 = vmatpush.bf16.msra.mxu0 %v711
    %940 = vmatpush.bf16.msra.mxu0 %v710
    %941 = vmatpush.bf16.msra.mxu0 %v709
    %942 = vmatpush.bf16.msra.mxu0 %v708
    %943 = vmatpush.bf16.msra.mxu0 %v707
    %944 = vmatmul.bf16.gmra.mxu0 %v246
    %v945 = vpop.f32.mrf.mxu0
    %v946 = vadd.f32 %v933, %v945
    %v947 = vpop.f32.mrf.mxu0
    %948 = vdwg.mxu0
    %949 = vmatpush.bf16.msra.mxu0 %v722
    %950 = vmatpush.bf16.msra.mxu0 %v721
    %951 = vmatpush.bf16.msra.mxu0 %v720
    %952 = vmatpush.bf16.msra.mxu0 %v719
    %953 = vmatpush.bf16.msra.mxu0 %v718
    %954 = vmatpush.bf16.msra.mxu0 %v717
    %955 = vmatpush.bf16.msra.mxu0 %v716
    %956 = vmatpush.bf16.msra.mxu0 %v715
    %957 = vmatmul.bf16.gmra.mxu0 %v247
    %v958 = vpop.f32.mrf.mxu0
    %v959 = vadd.f32 %v946, %v958
    %v960 = vpop.f32.mrf.mxu0
    %961 = vdwg.mxu0
    %962 = vmatpush.bf16.msra.mxu0 %v730
    %963 = vmatpush.bf16.msra.mxu0 %v729
    %964 = vmatpush.bf16.msra.mxu0 %v728
    %965 = vmatpush.bf16.msra.mxu0 %v727
    %966 = vmatpush.bf16.msra.mxu0 %v726
    %967 = vmatpush.bf16.msra.mxu0 %v725
    %968 = vmatpush.bf16.msra.mxu0 %v724
    %969 = vmatpush.bf16.msra.mxu0 %v723
    %970 = vmatmul.bf16.gmra.mxu0 %v250
    %v971 = vpop.f32.mrf.mxu0
    %v972 = vadd.f32 %v959, %v971
    %v973 = vpop.f32.mrf.mxu0
    %974 = vdwg.mxu0
    %975 = vmatpush.bf16.msra.mxu0 %v738
    %976 = vmatpush.bf16.msra.mxu0 %v737
    %977 = vmatpush.bf16.msra.mxu0 %v736
    %978 = vmatpush.bf16.msra.mxu0 %v735
    %979 = vmatpush.bf16.msra.mxu0 %v734
    %980 = vmatpush.bf16.msra.mxu0 %v733
    %981 = vmatpush.bf16.msra.mxu0 %v732
    %982 = vmatpush.bf16.msra.mxu0 %v731
    %983 = vmatmul.bf16.gmra.mxu0 %v251
    %v984 = vpop.f32.mrf.mxu0
    %v985 = vadd.f32 %v972, %v984
    %v986 = vpop.f32.mrf.mxu0
    %987 = vdwg.mxu0
    %988 = vmatpush.bf16.msra.mxu0 %v746
    %989 = vmatpush.bf16.msra.mxu0 %v745
    %990 = vmatpush.bf16.msra.mxu0 %v744
    %991 = vmatpush.bf16.msra.mxu0 %v743
    %992 = vmatpush.bf16.msra.mxu0 %v742
    %993 = vmatpush.bf16.msra.mxu0 %v741
    %994 = vmatpush.bf16.msra.mxu0 %v740
    %995 = vmatpush.bf16.msra.mxu0 %v739
    %996 = vmatmul.bf16.gmra.mxu0 %v252
    %v997 = vpop.f32.mrf.mxu0
    %v998 = vadd.f32 %v985, %v997
    %v999 = vpop.f32.mrf.mxu0
    %1000 = vdwg.mxu0
    %1001 = vmatpush.bf16.msra.mxu0 %v754
    %1002 = vmatpush.bf16.msra.mxu0 %v753
    %1003 = vmatpush.bf16.msra.mxu0 %v752
    %1004 = vmatpush.bf16.msra.mxu0 %v751
    %1005 = vmatpush.bf16.msra.mxu0 %v750
    %1006 = vmatpush.bf16.msra.mxu0 %v749
    %1007 = vmatpush.bf16.msra.mxu0 %v748
    %1008 = vmatpush.bf16.msra.mxu0 %v747
    %1009 = vmatmul.bf16.gmra.mxu0 %v253
    %v1010 = vpop.f32.mrf.mxu0
    %v1011 = vadd.f32 %v998, %v1010
    %v1012 = vpop.f32.mrf.mxu0
    %1013 = vdwg.mxu0
    %1014 = vmatpush.bf16.msra.mxu0 0
    %1015 = vmatpush.bf16.msra.mxu0 0
    %1016 = vmatpush.bf16.msra.mxu0 0
    %1017 = vmatpush.bf16.msra.mxu0 0
    %1018 = vmatpush.bf16.msra.mxu0 0
    %1019 = vmatpush.bf16.msra.mxu0 0
    %1020 = vmatpush.bf16.msra.mxu0 %v756
    %1021 = vmatpush.bf16.msra.mxu0 %v755
    %1022 = vmatmul.bf16.gmra.mxu0 %v856
    %v1023 = vpop.f32.mrf.mxu0
    %v1024 = vadd.f32 %v1011, %v1023
    %v1025 = vpop.f32.mrf.mxu0
    %1026 = vdwg.mxu0
    %v1027 = vld [vmem:[%s3] sm:$0xf]
    %v1028 = vld [vmem:[%s3 + $0x4] sm:$0xf]
    %v1029 = vld [vmem:[%s3 + $0x8] sm:$0xf]
    %v1030 = vld [vmem:[%s3 + $0xc] sm:$0xf]
    %v1031 = vld [vmem:[%s3 + $0x10] sm:$0xf]
    %v1032 = vld [vmem:[%s3 + $0x14] sm:$0xf]
    %v1033 = vld [vmem:[%s3 + $0x18] sm:$0xf]
    %v1034 = vld [vmem:[%s3 + $0x1c] sm:$0xf]
    %v1035 = vld [vmem:[%s3 + $0x20] sm:$0xf]
    %v1036 = vld [vmem:[%s3 + $0x24] sm:$0xf]
    %v1037 = vld [vmem:[%s3 + $0x28] sm:$0xf]
    %v1038 = vld [vmem:[%s3 + $0x2c] sm:$0xf]
    %v1039 = vld [vmem:[%s3 + $0x30] sm:$0xf]
    %v1040 = vld [vmem:[%s3 + $0x34] sm:$0xf]
    %v1041 = vld [vmem:[%s3 + $0x38] sm:$0xf]
    %v1042 = vld [vmem:[%s3 + $0x3c] sm:$0xf]
    %v1043 = vld [vmem:[%s3 + $0x40] sm:$0xf]
    %v1044 = vld [vmem:[%s3 + $0x44] sm:$0xf]
    %v1045 = vld [vmem:[%s3 + $0x48] sm:$0xf]
    %v1046 = vld [vmem:[%s3 + $0x4c] sm:$0xf]
    %v1047 = vld [vmem:[%s3 + $0x50] sm:$0xf]
    %v1048 = vld [vmem:[%s3 + $0x54] sm:$0xf]
    %v1049 = vld [vmem:[%s3 + $0x58] sm:$0xf]
    %v1050 = vld [vmem:[%s3 + $0x5c] sm:$0xf]
    %v1051 = vld [vmem:[%s3 + $0x60] sm:$0xf]
    %v1052 = vld [vmem:[%s3 + $0x64] sm:$0xf]
    %v1053 = vld [vmem:[%s3 + $0x68] sm:$0xf]
    %v1054 = vld [vmem:[%s3 + $0x6c] sm:$0xf]
    %v1055 = vld [vmem:[%s3 + $0x70] sm:$0xf]
    %v1056 = vld [vmem:[%s3 + $0x74] sm:$0xf]
    %v1057 = vld [vmem:[%s3 + $0x78] sm:$0xf]
    %v1058 = vld [vmem:[%s3 + $0x7c] sm:$0xf]
    %v1059 = vld [vmem:[%s3 + $0x80] sm:$0xf]
    %v1060 = vld [vmem:[%s3 + $0x84] sm:$0xf]
    %v1061 = vld [vmem:[%s3 + $0x88] sm:$0xf]
    %v1062 = vld [vmem:[%s3 + $0x8c] sm:$0xf]
    %v1063 = vld [vmem:[%s3 + $0x90] sm:$0xf]
    %v1064 = vld [vmem:[%s3 + $0x94] sm:$0xf]
    %v1065 = vld [vmem:[%s3 + $0x98] sm:$0xf]
    %v1066 = vld [vmem:[%s3 + $0x9c] sm:$0xf]
    %v1067 = vld [vmem:[%s3 + $0xa0] sm:$0xf]
    %v1068 = vld [vmem:[%s3 + $0xa4] sm:$0xf]
    %v1069 = vld [vmem:[%s3 + $0xa8] sm:$0xf]
    %v1070 = vld [vmem:[%s3 + $0xac] sm:$0xf]
    %v1071 = vld [vmem:[%s3 + $0xb0] sm:$0xf]
    %v1072 = vld [vmem:[%s3 + $0xb4] sm:$0xf]
    %v1073 = vld [vmem:[%s3 + $0xb8] sm:$0xf]
    %v1074 = vld [vmem:[%s3 + $0xbc] sm:$0xf]
    %v1075 = vld [vmem:[%s3 + $0xc0] sm:$0xf]
    %v1076 = vld [vmem:[%s3 + $0xc4] sm:$0xf]
    %v1077 = vld [vmem:[%s3 + $0xc8] sm:$0xf]
    %v1078 = vld [vmem:[%s3 + $0xcc] sm:$0xf]
    %v1079 = vld [vmem:[%s3 + $0xd0] sm:$0xf]
    %v1080 = vld [vmem:[%s3 + $0xd4] sm:$0xf]
    %v1081 = vld [vmem:[%s3 + $0xd8] sm:$0xf]
    %v1082 = vld [vmem:[%s3 + $0xdc] sm:$0xf]
    %v1083 = vld [vmem:[%s3 + $0xe0] sm:$0xf]
    %v1084 = vld [vmem:[%s3 + $0xe4] sm:$0xf]
    %v1085 = vld [vmem:[%s3 + $0xe8] sm:$0xf]
    %v1086 = vld [vmem:[%s3 + $0xec] sm:$0xf]
    %v1087 = vld [vmem:[%s3 + $0xf0] sm:$0xf]
    %v1088 = vld [vmem:[%s3 + $0xf4] sm:$0xf]
    %v1089 = vld [vmem:[%s3 + $0xf8] sm:$0xf]
    %v1090 = vld [vmem:[%s3 + $0xfc] sm:$0xf]
    %v1091 = vld [vmem:[%s3 + $0x100] sm:$0xf]
    %v1092 = vld [vmem:[%s3 + $0x104] sm:$0xf]
    %v1093 = vld [vmem:[%s3 + $0x108] sm:$0xf]
    %v1094 = vld [vmem:[%s3 + $0x10c] sm:$0xf]
    %v1095 = vld [vmem:[%s3 + $0x110] sm:$0xf]
    %v1096 = vld [vmem:[%s3 + $0x114] sm:$0xf]
    %v1097 = vld [vmem:[%s3 + $0x118] sm:$0xf]
    %v1098 = vld [vmem:[%s3 + $0x11c] sm:$0xf]
    %v1099 = vld [vmem:[%s3 + $0x120] sm:$0xf]
    %v1100 = vld [vmem:[%s3 + $0x124] sm:$0xf]
    %v1101 = vld [vmem:[%s3 + $0x128] sm:$0xf]
    %v1102 = vld [vmem:[%s3 + $0x12c] sm:$0xf]
    %v1103 = vld [vmem:[%s3 + $0x130] sm:$0xf]
    %v1104 = vld [vmem:[%s3 + $0x134] sm:$0xf]
    %v1105 = vld [vmem:[%s3 + $0x138] sm:$0xf]
    %v1106 = vld [vmem:[%s3 + $0x13c] sm:$0xf]
    %v1107 = vld [vmem:[%s3 + $0x140] sm:$0xf]
    %v1108 = vld [vmem:[%s3 + $0x144] sm:$0xf]
    %v1109 = vld [vmem:[%s3 + $0x148] sm:$0xf]
    %v1110 = vld [vmem:[%s3 + $0x14c] sm:$0xf]
    %v1111 = vld [vmem:[%s3 + $0x150] sm:$0xf]
    %v1112 = vld [vmem:[%s3 + $0x154] sm:$0xf]
    %v1113 = vld [vmem:[%s3 + $0x158] sm:$0xf]
    %v1114 = vld [vmem:[%s3 + $0x15c] sm:$0xf]
    %v1115 = vld [vmem:[%s3 + $0x160] sm:$0xf]
    %v1116 = vld [vmem:[%s3 + $0x164] sm:$0xf]
    %v1117 = vld [vmem:[%s3 + $0x168] sm:$0xf]
    %v1118 = vld [vmem:[%s3 + $0x16c] sm:$0xf]
    %v1119 = vld [vmem:[%s3 + $0x170] sm:$0xf]
    %v1120 = vld [vmem:[%s3 + $0x174] sm:$0xf]
    %v1121 = vld [vmem:[%s3 + $0x178] sm:$0xf]
    %v1122 = vld [vmem:[%s3 + $0x17c] sm:$0xf]
    %v1123 = vld [vmem:[%s3 + $0x180] sm:$0xf]
    %v1124 = vld [vmem:[%s3 + $0x184] sm:$0xf]
    %v1125 = vld [vmem:[%s3 + $0x188] sm:$0xf]
    %v1126 = vld [vmem:[%s3 + $0x18c] sm:$0xf]
    %v1127 = vld [vmem:[%s3 + $0x190] sm:$0xf]
    %v1128 = vld [vmem:[%s3 + $0x194] sm:$0xf]
    %v1129 = vld [vmem:[%s3 + $0x198] sm:$0xf]
    %v1130 = vld [vmem:[%s3 + $0x19c] sm:$0xf]
    %v1131 = vld [vmem:[%s3 + $0x1a0] sm:$0xf]
    %v1132 = vld [vmem:[%s3 + $0x1a4] sm:$0xf]
    %v1133 = vld [vmem:[%s3 + $0x1a8] sm:$0xf]
    %v1134 = vld [vmem:[%s3 + $0x1ac] sm:$0xf]
    %v1135 = vld [vmem:[%s3 + $0x1b0] sm:$0xf]
    %v1136 = vld [vmem:[%s3 + $0x1b4] sm:$0xf]
    %v1137 = vld [vmem:[%s3 + $0x1b8] sm:$0xf]
    %v1138 = vld [vmem:[%s3 + $0x1bc] sm:$0xf]
    %v1139 = vld [vmem:[%s3 + $0x1c0] sm:$0xf]
    %v1140 = vld [vmem:[%s3 + $0x1c4] sm:$0xf]
    %v1141 = vld [vmem:[%s3 + $0x1c8] sm:$0xf]
    %v1142 = vld [vmem:[%s3 + $0x1cc] sm:$0xf]
    %v1143 = vld [vmem:[%s3 + $0x1d0] sm:$0xf]
    %v1144 = vld [vmem:[%s3 + $0x1d4] sm:$0xf]
    %v1145 = vld [vmem:[%s3 + $0x1d8] sm:$0xf]
    %v1146 = vld [vmem:[%s3 + $0x1dc] sm:$0xf]
    %v1147 = vld [vmem:[%s3 + $0x1e0] sm:$0xf]
    %v1148 = vld [vmem:[%s3 + $0x1e4] sm:$0xf]
    %v1149 = vld [vmem:[%s3 + $0x1e8] sm:$0xf]
    %v1150 = vld [vmem:[%s3 + $0x1ec] sm:$0xf]
    %v1151 = vld [vmem:[%s3 + $0x1f0] sm:$0xf]
    %v1152 = vld [vmem:[%s3 + $0x1f4] sm:$0xf]
    %v1153 = vld [vmem:[%s3 + $0x1f8] sm:$0xf]
    %v1154 = vld [vmem:[%s3 + $0x1fc] sm:$0xf]
    %v1155 = vld [vmem:[%s3 + $0x200] sm:$0xf]
    %v1156 = vld [vmem:[%s3 + $0x204] sm:$0xf]
    %v1157 = vld [vmem:[%s3 + $0x208] sm:$0xf]
    %v1158 = vld [vmem:[%s3 + $0x20c] sm:$0xf]
    %v1159 = vld [vmem:[%s3 + $0x210] sm:$0xf]
    %v1160 = vld [vmem:[%s3 + $0x214] sm:$0xf]
    %v1161 = vld [vmem:[%s3 + $0x218] sm:$0xf]
    %v1162 = vld [vmem:[%s3 + $0x21c] sm:$0xf]
    %v1163 = vld [vmem:[%s3 + $0x220] sm:$0xf]
    %v1164 = vld [vmem:[%s3 + $0x224] sm:$0xf]
    %v1165 = vld [vmem:[%s3 + $0x228] sm:$0xf]
    %v1166 = vld [vmem:[%s3 + $0x22c] sm:$0xf]
    %v1167 = vld [vmem:[%s3 + $0x230] sm:$0xf]
    %v1168 = vld [vmem:[%s3 + $0x234] sm:$0xf]
    %v1169 = vld [vmem:[%s3 + $0x238] sm:$0xf]
    %v1170 = vld [vmem:[%s3 + $0x23c] sm:$0xf]
    %v1171 = vld [vmem:[%s3 + $0x240] sm:$0xf]
    %v1172 = vld [vmem:[%s3 + $0x244] sm:$0xf]
    %v1173 = vld [vmem:[%s3 + $0x248] sm:$0xf]
    %v1174 = vld [vmem:[%s3 + $0x24c] sm:$0xf]
    %v1175 = vld [vmem:[%s3 + $0x250] sm:$0xf]
    %v1176 = vld [vmem:[%s3 + $0x254] sm:$0xf]
    %v1177 = vld [vmem:[%s3 + $0x258] sm:$0xf]
    %v1178 = vld [vmem:[%s3 + $0x25c] sm:$0xf]
    %v1179 = vld [vmem:[%s3 + $0x260] sm:$0xf]
    %v1180 = vld [vmem:[%s3 + $0x264] sm:$0xf]
    %v1181 = vld [vmem:[%s3 + $0x268] sm:$0xf]
    %v1182 = vld [vmem:[%s3 + $0x26c] sm:$0xf]
    %v1183 = vld [vmem:[%s3 + $0x270] sm:$0xf]
    %v1184 = vld [vmem:[%s3 + $0x274] sm:$0xf]
    %v1185 = vld [vmem:[%s3 + $0x278] sm:$0xf]
    %v1186 = vld [vmem:[%s3 + $0x27c] sm:$0xf]
    %v1187 = vld [vmem:[%s3 + $0x280] sm:$0xf]
    %v1188 = vld [vmem:[%s3 + $0x284] sm:$0xf]
    %v1189 = vld [vmem:[%s3 + $0x288] sm:$0xf]
    %v1190 = vld [vmem:[%s3 + $0x28c] sm:$0xf]
    %v1191 = vld [vmem:[%s3 + $0x290] sm:$0xf]
    %v1192 = vld [vmem:[%s3 + $0x294] sm:$0xf]
    %v1193 = vld [vmem:[%s3 + $0x298] sm:$0xf]
    %v1194 = vld [vmem:[%s3 + $0x29c] sm:$0xf]
    %v1195 = vld [vmem:[%s3 + $0x2a0] sm:$0xf]
    %v1196 = vld [vmem:[%s3 + $0x2a4] sm:$0xf]
    %v1197 = vld [vmem:[%s3 + $0x2a8] sm:$0xf]
    %v1198 = vld [vmem:[%s3 + $0x2ac] sm:$0xf]
    %v1199 = vld [vmem:[%s3 + $0x2b0] sm:$0xf]
    %v1200 = vld [vmem:[%s3 + $0x2b4] sm:$0xf]
    %v1201 = vld [vmem:[%s3 + $0x2b8] sm:$0xf]
    %v1202 = vld [vmem:[%s3 + $0x2bc] sm:$0xf]
    %v1203 = vld [vmem:[%s3 + $0x2c0] sm:$0xf]
    %v1204 = vld [vmem:[%s3 + $0x2c4] sm:$0xf]
    %v1205 = vld [vmem:[%s3 + $0x2c8] sm:$0xf]
    %v1206 = vld [vmem:[%s3 + $0x2cc] sm:$0xf]
    %v1207 = vld [vmem:[%s3 + $0x2d0] sm:$0xf]
    %v1208 = vld [vmem:[%s3 + $0x2d4] sm:$0xf]
    %v1209 = vld [vmem:[%s3 + $0x2d8] sm:$0xf]
    %v1210 = vld [vmem:[%s3 + $0x2dc] sm:$0xf]
    %v1211 = vld [vmem:[%s3 + $0x2e0] sm:$0xf]
    %v1212 = vld [vmem:[%s3 + $0x2e4] sm:$0xf]
    %v1213 = vld [vmem:[%s3 + $0x2e8] sm:$0xf]
    %v1214 = vld [vmem:[%s3 + $0x2ec] sm:$0xf]
    %v1215 = vld [vmem:[%s3 + $0x2f0] sm:$0xf]
    %v1216 = vld [vmem:[%s3 + $0x2f4] sm:$0xf]
    %v1217 = vld [vmem:[%s3 + $0x2f8] sm:$0xf]
    %v1218 = vld [vmem:[%s3 + $0x2fc] sm:$0xf]
    %v1219 = vld [vmem:[%s3 + $0x300] sm:$0xf]
    %v1220 = vld [vmem:[%s3 + $0x304] sm:$0xf]
    %v1221 = vld [vmem:[%s3 + $0x308] sm:$0xf]
    %v1222 = vld [vmem:[%s3 + $0x30c] sm:$0xf]
    %v1223 = vld [vmem:[%s4] sm:$0x1]
    %v1225 = vperm.slane %v1223, 0
    %1227 = vst [vmem:[#allocation1] ss:$9 sm:$0xff] %v36
    %v1228 = vld [vmem:[#allocation1] sm:$0xff]
    %v1229 = vld [vmem:[#allocation1 + $0x9] sm:$0xff]
    %v1230 = vld [vmem:[#allocation1 + $0x12] sm:$0xff]
    %v1231 = vld [vmem:[#allocation1 + $0x1b] sm:$0xff]
    %v1232 = vld [vmem:[#allocation1 + $0x24] sm:$0xff]
    %v1233 = vld [vmem:[#allocation1 + $0x2d] sm:$0xff]
    %v1234 = vld [vmem:[#allocation1 + $0x36] sm:$0xff]
    %v1235 = vld [vmem:[#allocation1 + $0x3f] sm:$0xff]
    %1236 = vst [vmem:[#allocation1] ss:$9 sm:$0xff] %v37
    %v1237 = vld [vmem:[#allocation1] sm:$0xff]
    %v1238 = vld [vmem:[#allocation1 + $0x9] sm:$0xff]
    %v1239 = vld [vmem:[#allocation1 + $0x12] sm:$0xff]
    %v1240 = vld [vmem:[#allocation1 + $0x1b] sm:$0xff]
    %v1241 = vld [vmem:[#allocation1 + $0x24] sm:$0xff]
    %v1450 = vunpack.c.l.b16 %v1027
    %v1451 = vunpack.c.l.b16 %v1028
    %v1452 = vunpack.c.l.b16 %v1029
    %v1453 = vunpack.c.l.b16 %v1030
    %v1454 = vunpack.c.l.b16 %v1031
    %v1455 = vunpack.c.l.b16 %v1032
    %v1456 = vunpack.c.l.b16 %v1033
    %v1457 = vunpack.c.l.b16 %v1034
    %v1458 = vunpack.c.l.b16 %v1035
    %v1459 = vunpack.c.l.b16 %v1036
    %v1460 = vunpack.c.l.b16 %v1037
    %v1461 = vunpack.c.l.b16 %v1038
    %v1462 = vunpack.c.l.b16 %v1039
    %v1463 = vunpack.c.l.b16 %v1040
    %v1464 = vunpack.c.l.b16 %v1041
    %v1465 = vunpack.c.l.b16 %v1042
    %v1466 = vunpack.c.l.b16 %v1043
    %v1467 = vunpack.c.l.b16 %v1044
    %v1468 = vunpack.c.l.b16 %v1045
    %v1469 = vunpack.c.l.b16 %v1046
    %v1470 = vunpack.c.l.b16 %v1047
    %v1471 = vunpack.c.l.b16 %v1048
    %v1472 = vunpack.c.l.b16 %v1049
    %v1473 = vunpack.c.l.b16 %v1050
    %v1474 = vunpack.c.l.b16 %v1051
    %v1475 = vunpack.c.l.b16 %v1052
    %v1476 = vunpack.c.l.b16 %v1053
    %v1477 = vunpack.c.l.b16 %v1054
    %v1478 = vunpack.c.l.b16 %v1055
    %v1479 = vunpack.c.l.b16 %v1056
    %v1480 = vunpack.c.l.b16 %v1057
    %v1481 = vunpack.c.l.b16 %v1058
    %v1482 = vunpack.c.l.b16 %v1059
    %v1483 = vunpack.c.l.b16 %v1060
    %v1484 = vunpack.c.l.b16 %v1061
    %v1485 = vunpack.c.l.b16 %v1062
    %v1486 = vunpack.c.l.b16 %v1063
    %v1487 = vunpack.c.l.b16 %v1064
    %v1488 = vunpack.c.l.b16 %v1065
    %v1489 = vunpack.c.l.b16 %v1066
    %v1490 = vunpack.c.l.b16 %v1067
    %v1491 = vunpack.c.l.b16 %v1068
    %v1492 = vunpack.c.l.b16 %v1069
    %v1493 = vunpack.c.l.b16 %v1070
    %v1494 = vunpack.c.l.b16 %v1071
    %v1495 = vunpack.c.l.b16 %v1072
    %v1496 = vunpack.c.l.b16 %v1073
    %v1497 = vunpack.c.l.b16 %v1074
    %v1498 = vunpack.c.l.b16 %v1075
    %v1499 = vunpack.c.l.b16 %v1076
    %v1500 = vunpack.c.l.b16 %v1077
    %v1501 = vunpack.c.l.b16 %v1078
    %v1502 = vunpack.c.l.b16 %v1079
    %v1503 = vunpack.c.l.b16 %v1080
    %v1504 = vunpack.c.l.b16 %v1081
    %v1505 = vunpack.c.l.b16 %v1082
    %v1506 = vunpack.c.l.b16 %v1083
    %v1507 = vunpack.c.l.b16 %v1084
    %v1508 = vunpack.c.l.b16 %v1085
    %v1509 = vunpack.c.l.b16 %v1086
    %v1510 = vunpack.c.l.b16 %v1087
    %v1511 = vunpack.c.l.b16 %v1088
    %v1512 = vunpack.c.l.b16 %v1089
    %v1513 = vunpack.c.l.b16 %v1090
    %v1514 = vunpack.c.l.b16 %v1091
    %v1515 = vunpack.c.l.b16 %v1092
    %v1516 = vunpack.c.l.b16 %v1093
    %v1517 = vunpack.c.l.b16 %v1094
    %v1518 = vunpack.c.l.b16 %v1095
    %v1519 = vunpack.c.l.b16 %v1096
    %v1520 = vunpack.c.l.b16 %v1097
    %v1521 = vunpack.c.l.b16 %v1098
    %v1522 = vunpack.c.l.b16 %v1099
    %v1523 = vunpack.c.l.b16 %v1100
    %v1524 = vunpack.c.l.b16 %v1101
    %v1525 = vunpack.c.l.b16 %v1102
    %v1526 = vunpack.c.l.b16 %v1103
    %v1527 = vunpack.c.l.b16 %v1104
    %v1528 = vunpack.c.l.b16 %v1105
    %v1529 = vunpack.c.l.b16 %v1106
    %v1530 = vunpack.c.l.b16 %v1107
    %v1531 = vunpack.c.l.b16 %v1108
    %v1532 = vunpack.c.l.b16 %v1109
    %v1533 = vunpack.c.l.b16 %v1110
    %v1534 = vunpack.c.l.b16 %v1111
    %v1535 = vunpack.c.l.b16 %v1112
    %v1536 = vunpack.c.l.b16 %v1113
    %v1537 = vunpack.c.l.b16 %v1114
    %v1538 = vunpack.c.l.b16 %v1115
    %v1539 = vunpack.c.l.b16 %v1116
    %v1540 = vunpack.c.l.b16 %v1117
    %v1541 = vunpack.c.l.b16 %v1118
    %v1542 = vunpack.c.l.b16 %v1119
    %v1543 = vunpack.c.l.b16 %v1120
    %v1544 = vunpack.c.l.b16 %v1121
    %v1545 = vunpack.c.l.b16 %v1122
    %v1546 = vunpack.c.l.b16 %v1123
    %v1547 = vunpack.c.l.b16 %v1124
    %v1548 = vunpack.c.l.b16 %v1125
    %v1549 = vunpack.c.l.b16 %v1126
    %v1550 = vunpack.c.l.b16 %v1127
    %v1551 = vunpack.c.l.b16 %v1128
    %v1552 = vunpack.c.l.b16 %v1129
    %v1553 = vunpack.c.l.b16 %v1130
    %v1554 = vunpack.c.l.b16 %v1131
    %v1555 = vunpack.c.l.b16 %v1132
    %v1556 = vunpack.c.l.b16 %v1133
    %v1557 = vunpack.c.l.b16 %v1134
    %v1558 = vunpack.c.l.b16 %v1135
    %v1559 = vunpack.c.l.b16 %v1136
    %v1560 = vunpack.c.l.b16 %v1137
    %v1561 = vunpack.c.l.b16 %v1138
    %v1562 = vunpack.c.l.b16 %v1139
    %v1563 = vunpack.c.l.b16 %v1140
    %v1564 = vunpack.c.l.b16 %v1141
    %v1565 = vunpack.c.l.b16 %v1142
    %v1566 = vunpack.c.l.b16 %v1143
    %v1567 = vunpack.c.l.b16 %v1144
    %v1568 = vunpack.c.l.b16 %v1145
    %v1569 = vunpack.c.l.b16 %v1146
    %v1570 = vunpack.c.l.b16 %v1147
    %v1571 = vunpack.c.l.b16 %v1148
    %v1572 = vunpack.c.l.b16 %v1149
    %v1573 = vunpack.c.l.b16 %v1150
    %v1574 = vunpack.c.l.b16 %v1151
    %v1575 = vunpack.c.l.b16 %v1152
    %v1576 = vunpack.c.l.b16 %v1153
    %v1577 = vunpack.c.l.b16 %v1154
    %v1578 = vunpack.c.l.b16 %v1155
    %v1579 = vunpack.c.l.b16 %v1156
    %v1580 = vunpack.c.l.b16 %v1157
    %v1581 = vunpack.c.l.b16 %v1158
    %v1582 = vunpack.c.l.b16 %v1159
    %v1583 = vunpack.c.l.b16 %v1160
    %v1584 = vunpack.c.l.b16 %v1161
    %v1585 = vunpack.c.l.b16 %v1162
    %v1586 = vunpack.c.l.b16 %v1163
    %v1587 = vunpack.c.l.b16 %v1164
    %v1588 = vunpack.c.l.b16 %v1165
    %v1589 = vunpack.c.l.b16 %v1166
    %v1590 = vunpack.c.l.b16 %v1167
    %v1591 = vunpack.c.l.b16 %v1168
    %v1592 = vunpack.c.l.b16 %v1169
    %v1593 = vunpack.c.l.b16 %v1170
    %v1594 = vunpack.c.l.b16 %v1171
    %v1595 = vunpack.c.l.b16 %v1172
    %v1596 = vunpack.c.l.b16 %v1173
    %v1597 = vunpack.c.l.b16 %v1174
    %v1598 = vunpack.c.l.b16 %v1175
    %v1599 = vunpack.c.l.b16 %v1176
    %v1600 = vunpack.c.l.b16 %v1177
    %v1601 = vunpack.c.l.b16 %v1178
    %v1602 = vunpack.c.l.b16 %v1179
    %v1603 = vunpack.c.l.b16 %v1180
    %v1604 = vunpack.c.l.b16 %v1181
    %v1605 = vunpack.c.l.b16 %v1182
    %v1606 = vunpack.c.l.b16 %v1183
    %v1607 = vunpack.c.l.b16 %v1184
    %v1608 = vunpack.c.l.b16 %v1185
    %v1609 = vunpack.c.l.b16 %v1186
    %v1610 = vunpack.c.l.b16 %v1187
    %v1611 = vunpack.c.l.b16 %v1188
    %v1612 = vunpack.c.l.b16 %v1189
    %v1613 = vunpack.c.l.b16 %v1190
    %v1614 = vunpack.c.l.b16 %v1191
    %v1615 = vunpack.c.l.b16 %v1192
    %v1616 = vunpack.c.l.b16 %v1193
    %v1617 = vunpack.c.l.b16 %v1194
    %v1618 = vunpack.c.l.b16 %v1195
    %v1619 = vunpack.c.l.b16 %v1196
    %v1620 = vunpack.c.l.b16 %v1197
    %v1621 = vunpack.c.l.b16 %v1198
    %v1622 = vunpack.c.l.b16 %v1199
    %v1623 = vunpack.c.l.b16 %v1200
    %v1624 = vunpack.c.l.b16 %v1201
    %v1625 = vunpack.c.l.b16 %v1202
    %v1626 = vunpack.c.l.b16 %v1203
    %v1627 = vunpack.c.l.b16 %v1204
    %v1628 = vunpack.c.l.b16 %v1205
    %v1629 = vunpack.c.l.b16 %v1206
    %v1630 = vunpack.c.l.b16 %v1207
    %v1631 = vunpack.c.l.b16 %v1208
    %v1632 = vunpack.c.l.b16 %v1209
    %v1633 = vunpack.c.l.b16 %v1210
    %v1634 = vunpack.c.l.b16 %v1211
    %v1635 = vunpack.c.l.b16 %v1212
    %v1636 = vunpack.c.l.b16 %v1213
    %v1637 = vunpack.c.l.b16 %v1214
    %v1638 = vunpack.c.l.b16 %v1215
    %v1639 = vunpack.c.l.b16 %v1216
    %v1640 = vunpack.c.l.b16 %v1217
    %v1641 = vunpack.c.l.b16 %v1218
    %v1642 = vunpack.c.l.b16 %v1219
    %v1643 = vunpack.c.l.b16 %v1220
    %v1644 = vunpack.c.l.b16 %v1221
    %v1645 = vunpack.c.l.b16 %v1222
    %v1646 = vpack.c.b16 %v1451, %v1450
    %v1647 = vpack.c.b16 %v1453, %v1452
    %v1648 = vpack.c.b16 %v1455, %v1454
    %v1649 = vpack.c.b16 %v1457, %v1456
    %v1650 = vpack.c.b16 %v1459, %v1458
    %v1651 = vpack.c.b16 %v1461, %v1460
    %v1652 = vpack.c.b16 %v1463, %v1462
    %v1653 = vpack.c.b16 %v1465, %v1464
    %v1654 = vpack.c.b16 %v1467, %v1466
    %v1655 = vpack.c.b16 %v1469, %v1468
    %v1656 = vpack.c.b16 %v1471, %v1470
    %v1657 = vpack.c.b16 %v1473, %v1472
    %v1658 = vpack.c.b16 %v1475, %v1474
    %v1659 = vpack.c.b16 %v1477, %v1476
    %v1660 = vpack.c.b16 %v1479, %v1478
    %v1661 = vpack.c.b16 %v1481, %v1480
    %v1662 = vpack.c.b16 %v1483, %v1482
    %v1663 = vpack.c.b16 %v1485, %v1484
    %v1664 = vpack.c.b16 %v1487, %v1486
    %v1665 = vpack.c.b16 %v1489, %v1488
    %v1666 = vpack.c.b16 %v1491, %v1490
    %v1667 = vpack.c.b16 %v1493, %v1492
    %v1668 = vpack.c.b16 %v1495, %v1494
    %v1669 = vpack.c.b16 %v1497, %v1496
    %v1670 = vpack.c.b16 %v1499, %v1498
    %v1671 = vpack.c.b16 %v1501, %v1500
    %v1672 = vpack.c.b16 %v1503, %v1502
    %v1673 = vpack.c.b16 %v1505, %v1504
    %v1674 = vpack.c.b16 %v1507, %v1506
    %v1675 = vpack.c.b16 %v1509, %v1508
    %v1676 = vpack.c.b16 %v1511, %v1510
    %v1677 = vpack.c.b16 %v1513, %v1512
    %v1678 = vpack.c.b16 %v1515, %v1514
    %v1679 = vpack.c.b16 %v1517, %v1516
    %v1680 = vpack.c.b16 %v1519, %v1518
    %v1681 = vpack.c.b16 %v1521, %v1520
    %v1682 = vpack.c.b16 %v1523, %v1522
    %v1683 = vpack.c.b16 %v1525, %v1524
    %v1684 = vpack.c.b16 %v1527, %v1526
    %v1685 = vpack.c.b16 %v1529, %v1528
    %v1686 = vpack.c.b16 %v1531, %v1530
    %v1687 = vpack.c.b16 %v1533, %v1532
    %v1688 = vpack.c.b16 %v1535, %v1534
    %v1689 = vpack.c.b16 %v1537, %v1536
    %v1690 = vpack.c.b16 %v1539, %v1538
    %v1691 = vpack.c.b16 %v1541, %v1540
    %v1692 = vpack.c.b16 %v1543, %v1542
    %v1693 = vpack.c.b16 %v1545, %v1544
    %v1694 = vpack.c.b16 %v1547, %v1546
    %v1695 = vpack.c.b16 %v1549, %v1548
    %v1696 = vpack.c.b16 %v1551, %v1550
    %v1697 = vpack.c.b16 %v1553, %v1552
    %v1698 = vpack.c.b16 %v1555, %v1554
    %v1699 = vpack.c.b16 %v1557, %v1556
    %v1700 = vpack.c.b16 %v1559, %v1558
    %v1701 = vpack.c.b16 %v1561, %v1560
    %v1702 = vpack.c.b16 %v1563, %v1562
    %v1703 = vpack.c.b16 %v1565, %v1564
    %v1704 = vpack.c.b16 %v1567, %v1566
    %v1705 = vpack.c.b16 %v1569, %v1568
    %v1706 = vpack.c.b16 %v1571, %v1570
    %v1707 = vpack.c.b16 %v1573, %v1572
    %v1708 = vpack.c.b16 %v1575, %v1574
    %v1709 = vpack.c.b16 %v1577, %v1576
    %v1710 = vpack.c.b16 %v1579, %v1578
    %v1711 = vpack.c.b16 %v1581, %v1580
    %v1712 = vpack.c.b16 %v1583, %v1582
    %v1713 = vpack.c.b16 %v1585, %v1584
    %v1714 = vpack.c.b16 %v1587, %v1586
    %v1715 = vpack.c.b16 %v1589, %v1588
    %v1716 = vpack.c.b16 %v1591, %v1590
    %v1717 = vpack.c.b16 %v1593, %v1592
    %v1718 = vpack.c.b16 %v1595, %v1594
    %v1719 = vpack.c.b16 %v1597, %v1596
    %v1720 = vpack.c.b16 %v1599, %v1598
    %v1721 = vpack.c.b16 %v1601, %v1600
    %v1722 = vpack.c.b16 %v1603, %v1602
    %v1723 = vpack.c.b16 %v1605, %v1604
    %v1724 = vpack.c.b16 %v1607, %v1606
    %v1725 = vpack.c.b16 %v1609, %v1608
    %v1726 = vpack.c.b16 %v1611, %v1610
    %v1727 = vpack.c.b16 %v1613, %v1612
    %v1728 = vpack.c.b16 %v1615, %v1614
    %v1729 = vpack.c.b16 %v1617, %v1616
    %v1730 = vpack.c.b16 %v1619, %v1618
    %v1731 = vpack.c.b16 %v1621, %v1620
    %v1732 = vpack.c.b16 %v1623, %v1622
    %v1733 = vpack.c.b16 %v1625, %v1624
    %v1734 = vpack.c.b16 %v1627, %v1626
    %v1735 = vpack.c.b16 %v1629, %v1628
    %v1736 = vpack.c.b16 %v1631, %v1630
    %v1737 = vpack.c.b16 %v1633, %v1632
    %v1738 = vpack.c.b16 %v1635, %v1634
    %v1739 = vpack.c.b16 %v1637, %v1636
    %v1740 = vpack.c.b16 %v1639, %v1638
    %v1741 = vpack.c.b16 %v1641, %v1640
    %v1742 = vpack.c.b16 %v1643, %v1642
    %v1743 = vpack.c.b16 %v1645, %v1644
    %v1842 = vsel %vm855, %v1241, 0
    %1844 = vmatpush.bf16.msra.mxu0 %v1653
    %1845 = vmatpush.bf16.msra.mxu0 %v1652
    %1846 = vmatpush.bf16.msra.mxu0 %v1651
    %1847 = vmatpush.bf16.msra.mxu0 %v1650
    %1848 = vmatpush.bf16.msra.mxu0 %v1649
    %1849 = vmatpush.bf16.msra.mxu0 %v1648
    %1850 = vmatpush.bf16.msra.mxu0 %v1647
    %1851 = vmatpush.bf16.msra.mxu0 %v1646
    %1852 = vmatmul.bf16.gmra.mxu0 %v1228
    %v1853 = vpop.f32.mrf.mxu0
    %v1854 = vadd.f32 %v1225, %v1853
    %v1855 = vpop.f32.mrf.mxu0
    %1856 = vdwg.mxu0
    %1857 = vmatpush.bf16.msra.mxu0 %v1661
    %1858 = vmatpush.bf16.msra.mxu0 %v1660
    %1859 = vmatpush.bf16.msra.mxu0 %v1659
    %1860 = vmatpush.bf16.msra.mxu0 %v1658
    %1861 = vmatpush.bf16.msra.mxu0 %v1657
    %1862 = vmatpush.bf16.msra.mxu0 %v1656
    %1863 = vmatpush.bf16.msra.mxu0 %v1655
    %1864 = vmatpush.bf16.msra.mxu0 %v1654
    %1865 = vmatmul.bf16.gmra.mxu0 %v1229
    %v1866 = vpop.f32.mrf.mxu0
    %v1867 = vadd.f32 %v1854, %v1866
    %v1868 = vpop.f32.mrf.mxu0
    %1869 = vdwg.mxu0
    %1870 = vmatpush.bf16.msra.mxu0 %v1669
    %1871 = vmatpush.bf16.msra.mxu0 %v1668
    %1872 = vmatpush.bf16.msra.mxu0 %v1667
    %1873 = vmatpush.bf16.msra.mxu0 %v1666
    %1874 = vmatpush.bf16.msra.mxu0 %v1665
    %1875 = vmatpush.bf16.msra.mxu0 %v1664
    %1876 = vmatpush.bf16.msra.mxu0 %v1663
    %1877 = vmatpush.bf16.msra.mxu0 %v1662
    %1878 = vmatmul.bf16.gmra.mxu0 %v1230
    %v1879 = vpop.f32.mrf.mxu0
    %v1880 = vadd.f32 %v1867, %v1879
    %v1881 = vpop.f32.mrf.mxu0
    %1882 = vdwg.mxu0
    %1883 = vmatpush.bf16.msra.mxu0 %v1677
    %1884 = vmatpush.bf16.msra.mxu0 %v1676
    %1885 = vmatpush.bf16.msra.mxu0 %v1675
    %1886 = vmatpush.bf16.msra.mxu0 %v1674
    %1887 = vmatpush.bf16.msra.mxu0 %v1673
    %1888 = vmatpush.bf16.msra.mxu0 %v1672
    %1889 = vmatpush.bf16.msra.mxu0 %v1671
    %1890 = vmatpush.bf16.msra.mxu0 %v1670
    %1891 = vmatmul.bf16.gmra.mxu0 %v1231
    %v1892 = vpop.f32.mrf.mxu0
    %v1893 = vadd.f32 %v1880, %v1892
    %v1894 = vpop.f32.mrf.mxu0
    %1895 = vdwg.mxu0
    %1896 = vmatpush.bf16.msra.mxu0 %v1685
    %1897 = vmatpush.bf16.msra.mxu0 %v1684
    %1898 = vmatpush.bf16.msra.mxu0 %v1683
    %1899 = vmatpush.bf16.msra.mxu0 %v1682
    %1900 = vmatpush.bf16.msra.mxu0 %v1681
    %1901 = vmatpush.bf16.msra.mxu0 %v1680
    %1902 = vmatpush.bf16.msra.mxu0 %v1679
    %1903 = vmatpush.bf16.msra.mxu0 %v1678
    %1904 = vmatmul.bf16.gmra.mxu0 %v1232
    %v1905 = vpop.f32.mrf.mxu0
    %v1906 = vadd.f32 %v1893, %v1905
    %v1907 = vpop.f32.mrf.mxu0
    %1908 = vdwg.mxu0
    %1909 = vmatpush.bf16.msra.mxu0 %v1693
    %1910 = vmatpush.bf16.msra.mxu0 %v1692
    %1911 = vmatpush.bf16.msra.mxu0 %v1691
    %1912 = vmatpush.bf16.msra.mxu0 %v1690
    %1913 = vmatpush.bf16.msra.mxu0 %v1689
    %1914 = vmatpush.bf16.msra.mxu0 %v1688
    %1915 = vmatpush.bf16.msra.mxu0 %v1687
    %1916 = vmatpush.bf16.msra.mxu0 %v1686
    %1917 = vmatmul.bf16.gmra.mxu0 %v1233
    %v1918 = vpop.f32.mrf.mxu0
    %v1919 = vadd.f32 %v1906, %v1918
    %v1920 = vpop.f32.mrf.mxu0
    %1921 = vdwg.mxu0
    %1922 = vmatpush.bf16.msra.mxu0 %v1701
    %1923 = vmatpush.bf16.msra.mxu0 %v1700
    %1924 = vmatpush.bf16.msra.mxu0 %v1699
    %1925 = vmatpush.bf16.msra.mxu0 %v1698
    %1926 = vmatpush.bf16.msra.mxu0 %v1697
    %1927 = vmatpush.bf16.msra.mxu0 %v1696
    %1928 = vmatpush.bf16.msra.mxu0 %v1695
    %1929 = vmatpush.bf16.msra.mxu0 %v1694
    %1930 = vmatmul.bf16.gmra.mxu0 %v1234
    %v1931 = vpop.f32.mrf.mxu0
    %v1932 = vadd.f32 %v1919, %v1931
    %v1933 = vpop.f32.mrf.mxu0
    %1934 = vdwg.mxu0
    %1935 = vmatpush.bf16.msra.mxu0 %v1709
    %1936 = vmatpush.bf16.msra.mxu0 %v1708
    %1937 = vmatpush.bf16.msra.mxu0 %v1707
    %1938 = vmatpush.bf16.msra.mxu0 %v1706
    %1939 = vmatpush.bf16.msra.mxu0 %v1705
    %1940 = vmatpush.bf16.msra.mxu0 %v1704
    %1941 = vmatpush.bf16.msra.mxu0 %v1703
    %1942 = vmatpush.bf16.msra.mxu0 %v1702
    %1943 = vmatmul.bf16.gmra.mxu0 %v1235
    %v1944 = vpop.f32.mrf.mxu0
    %v1945 = vadd.f32 %v1932, %v1944
    %v1946 = vpop.f32.mrf.mxu0
    %1947 = vdwg.mxu0
    %1948 = vmatpush.bf16.msra.mxu0 %v1717
    %1949 = vmatpush.bf16.msra.mxu0 %v1716
    %1950 = vmatpush.bf16.msra.mxu0 %v1715
    %1951 = vmatpush.bf16.msra.mxu0 %v1714
    %1952 = vmatpush.bf16.msra.mxu0 %v1713
    %1953 = vmatpush.bf16.msra.mxu0 %v1712
    %1954 = vmatpush.bf16.msra.mxu0 %v1711
    %1955 = vmatpush.bf16.msra.mxu0 %v1710
    %1956 = vmatmul.bf16.gmra.mxu0 %v1237
    %v1957 = vpop.f32.mrf.mxu0
    %v1958 = vadd.f32 %v1945, %v1957
    %v1959 = vpop.f32.mrf.mxu0
    %1960 = vdwg.mxu0
    %1961 = vmatpush.bf16.msra.mxu0 %v1725
    %1962 = vmatpush.bf16.msra.mxu0 %v1724
    %1963 = vmatpush.bf16.msra.mxu0 %v1723
    %1964 = vmatpush.bf16.msra.mxu0 %v1722
    %1965 = vmatpush.bf16.msra.mxu0 %v1721
    %1966 = vmatpush.bf16.msra.mxu0 %v1720
    %1967 = vmatpush.bf16.msra.mxu0 %v1719
    %1968 = vmatpush.bf16.msra.mxu0 %v1718
    %1969 = vmatmul.bf16.gmra.mxu0 %v1238
    %v1970 = vpop.f32.mrf.mxu0
    %v1971 = vadd.f32 %v1958, %v1970
    %v1972 = vpop.f32.mrf.mxu0
    %1973 = vdwg.mxu0
    %1974 = vmatpush.bf16.msra.mxu0 %v1733
    %1975 = vmatpush.bf16.msra.mxu0 %v1732
    %1976 = vmatpush.bf16.msra.mxu0 %v1731
    %1977 = vmatpush.bf16.msra.mxu0 %v1730
    %1978 = vmatpush.bf16.msra.mxu0 %v1729
    %1979 = vmatpush.bf16.msra.mxu0 %v1728
    %1980 = vmatpush.bf16.msra.mxu0 %v1727
    %1981 = vmatpush.bf16.msra.mxu0 %v1726
    %1982 = vmatmul.bf16.gmra.mxu0 %v1239
    %v1983 = vpop.f32.mrf.mxu0
    %v1984 = vadd.f32 %v1971, %v1983
    %v1985 = vpop.f32.mrf.mxu0
    %1986 = vdwg.mxu0
    %1987 = vmatpush.bf16.msra.mxu0 %v1741
    %1988 = vmatpush.bf16.msra.mxu0 %v1740
    %1989 = vmatpush.bf16.msra.mxu0 %v1739
    %1990 = vmatpush.bf16.msra.mxu0 %v1738
    %1991 = vmatpush.bf16.msra.mxu0 %v1737
    %1992 = vmatpush.bf16.msra.mxu0 %v1736
    %1993 = vmatpush.bf16.msra.mxu0 %v1735
    %1994 = vmatpush.bf16.msra.mxu0 %v1734
    %1995 = vmatmul.bf16.gmra.mxu0 %v1240
    %v1996 = vpop.f32.mrf.mxu0
    %v1997 = vadd.f32 %v1984, %v1996
    %v1998 = vpop.f32.mrf.mxu0
    %1999 = vdwg.mxu0
    %2000 = vmatpush.bf16.msra.mxu0 0
    %2001 = vmatpush.bf16.msra.mxu0 0
    %2002 = vmatpush.bf16.msra.mxu0 0
    %2003 = vmatpush.bf16.msra.mxu0 0
    %2004 = vmatpush.bf16.msra.mxu0 0
    %2005 = vmatpush.bf16.msra.mxu0 0
    %2006 = vmatpush.bf16.msra.mxu0 %v1743
    %2007 = vmatpush.bf16.msra.mxu0 %v1742
    %2008 = vmatmul.bf16.gmra.mxu0 %v1842
    %v2009 = vpop.f32.mrf.mxu0
    %v2010 = vadd.f32 %v1997, %v2009
    %v2011 = vpop.f32.mrf.mxu0
    %2012 = vdwg.mxu0
    %v2013 = vld [vmem:[%s5] sm:$0x3]
    %v2014 = vmul.f32 %v2010, 0.5
    %v2015 = vmul.f32 %v2014, 1.442695
    %v2016 = vpow.pop %v2015
    %v2017 = vmul.f32 %v2013, %v2016
    %v2018 = vadd.f32 %v1024, %v2017
    %v2019 = vpack.c.bf16 %v2018, %v2018
    %v2020 = vld [vmem:[%s6] sm:$0xff]
    %v2021 = vld [vmem:[%s6 + $0x8] sm:$0xff]
    %v2022 = vld [vmem:[%s6 + $0x10] sm:$0xff]
    %v2023 = vld [vmem:[%s6 + $0x18] sm:$0xff]
    %v2024 = vld [vmem:[%s6 + $0x20] sm:$0xff]
    %v2025 = vld [vmem:[%s6 + $0x28] sm:$0xff]
    %v2026 = vld [vmem:[%s6 + $0x30] sm:$0xf]
    %v2027 = vld [vmem:[%s6 + $0x34] sm:$0xff]
    %v2028 = vld [vmem:[%s6 + $0x3c] sm:$0xff]
    %v2029 = vld [vmem:[%s6 + $0x44] sm:$0xff]
    %v2030 = vld [vmem:[%s6 + $0x4c] sm:$0xff]
    %v2031 = vld [vmem:[%s6 + $0x54] sm:$0xff]
    %v2032 = vld [vmem:[%s6 + $0x5c] sm:$0xff]
    %v2033 = vld [vmem:[%s6 + $0x64] sm:$0xf]
    %v2034 = vld [vmem:[%s6 + $0x68] sm:$0xff]
    %v2035 = vld [vmem:[%s6 + $0x70] sm:$0xff]
    %v2036 = vld [vmem:[%s6 + $0x78] sm:$0xff]
    %v2037 = vld [vmem:[%s6 + $0x80] sm:$0xff]
    %v2038 = vld [vmem:[%s6 + $0x88] sm:$0xff]
    %v2039 = vld [vmem:[%s6 + $0x90] sm:$0xff]
    %v2040 = vld [vmem:[%s6 + $0x98] sm:$0xf]
    %v2041 = vld [vmem:[%s6 + $0x9c] sm:$0xff]
    %v2042 = vld [vmem:[%s6 + $0xa4] sm:$0xff]
    %v2043 = vld [vmem:[%s6 + $0xac] sm:$0xff]
    %v2044 = vld [vmem:[%s6 + $0xb4] sm:$0xff]
    %v2045 = vld [vmem:[%s6 + $0xbc] sm:$0xff]
    %v2046 = vld [vmem:[%s6 + $0xc4] sm:$0xff]
    %v2047 = vld [vmem:[%s6 + $0xcc] sm:$0xf]
    %v2048 = vld [vmem:[%s7] sm:$0xff]
    %v2049 = vld [vmem:[%s7 + $0x8] sm:$0x1f]
    %v2052 = vperm.slane %v2048, 0
    %v2053 = vperm.slane %v2048, 1
    %v2054 = vperm.slane %v2048, 2
    %v2055 = vperm.slane %v2048, 3
    %v2056 = vperm.slane %v2048, 4
    %v2057 = vperm.slane %v2048, 5
    %v2058 = vperm.slane %v2048, 6
    %v2059 = vperm.slane %v2048, 7
    %v2060 = vperm.slane %v2049, 0
    %v2061 = vperm.slane %v2049, 1
    %v2062 = vperm.slane %v2049, 2
    %v2063 = vperm.slane %v2049, 3
    %v2064 = vperm.slane %v2049, 4
    %v2106 = vunpack.c.l.b16 %v2020
    %v2107 = vunpack.c.h.b16 %v2020
    %v2108 = vunpack.c.l.b16 %v2021
    %v2109 = vunpack.c.h.b16 %v2021
    %v2110 = vunpack.c.l.b16 %v2022
    %v2111 = vunpack.c.h.b16 %v2022
    %v2112 = vunpack.c.l.b16 %v2023
    %v2113 = vunpack.c.h.b16 %v2023
    %v2114 = vunpack.c.l.b16 %v2024
    %v2115 = vunpack.c.h.b16 %v2024
    %v2116 = vunpack.c.l.b16 %v2025
    %v2117 = vunpack.c.h.b16 %v2025
    %v2118 = vunpack.c.l.b16 %v2026
    %v2119 = vunpack.c.l.b16 %v2027
    %v2120 = vunpack.c.h.b16 %v2027
    %v2121 = vunpack.c.l.b16 %v2028
    %v2122 = vunpack.c.h.b16 %v2028
    %v2123 = vunpack.c.l.b16 %v2029
    %v2124 = vunpack.c.h.b16 %v2029
    %v2125 = vunpack.c.l.b16 %v2030
    %v2126 = vunpack.c.h.b16 %v2030
    %v2127 = vunpack.c.l.b16 %v2031
    %v2128 = vunpack.c.h.b16 %v2031
    %v2129 = vunpack.c.l.b16 %v2032
    %v2130 = vunpack.c.h.b16 %v2032
    %v2131 = vunpack.c.l.b16 %v2033
    %v2132 = vunpack.c.l.b16 %v2034
    %v2133 = vunpack.c.h.b16 %v2034
    %v2134 = vunpack.c.l.b16 %v2035
    %v2135 = vunpack.c.h.b16 %v2035
    %v2136 = vunpack.c.l.b16 %v2036
    %v2137 = vunpack.c.h.b16 %v2036
    %v2138 = vunpack.c.l.b16 %v2037
    %v2139 = vunpack.c.h.b16 %v2037
    %v2140 = vunpack.c.l.b16 %v2038
    %v2141 = vunpack.c.h.b16 %v2038
    %v2142 = vunpack.c.l.b16 %v2039
    %v2143 = vunpack.c.h.b16 %v2039
    %v2144 = vunpack.c.l.b16 %v2040
    %v2145 = vunpack.c.l.b16 %v2041
    %v2146 = vunpack.c.h.b16 %v2041
    %v2147 = vunpack.c.l.b16 %v2042
    %v2148 = vunpack.c.h.b16 %v2042
    %v2149 = vunpack.c.l.b16 %v2043
    %v2150 = vunpack.c.h.b16 %v2043
    %v2151 = vunpack.c.l.b16 %v2044
    %v2152 = vunpack.c.h.b16 %v2044
    %v2153 = vunpack.c.l.b16 %v2045
    %v2154 = vunpack.c.h.b16 %v2045
    %v2155 = vunpack.c.l.b16 %v2046
    %v2156 = vunpack.c.h.b16 %v2046
    %v2157 = vunpack.c.l.b16 %v2047
    %v2158 = vpack.c.b16 %v2119, %v2106
    %v2159 = vpack.c.b16 %v2120, %v2107
    %v2160 = vpack.c.b16 %v2121, %v2108
    %v2161 = vpack.c.b16 %v2122, %v2109
    %v2162 = vpack.c.b16 %v2123, %v2110
    %v2163 = vpack.c.b16 %v2124, %v2111
    %v2164 = vpack.c.b16 %v2125, %v2112
    %v2165 = vpack.c.b16 %v2126, %v2113
    %v2166 = vpack.c.b16 %v2127, %v2114
    %v2167 = vpack.c.b16 %v2128, %v2115
    %v2168 = vpack.c.b16 %v2129, %v2116
    %v2169 = vpack.c.b16 %v2130, %v2117
    %v2170 = vpack.c.b16 %v2131, %v2118
    %v2171 = vpack.c.b16 %v2145, %v2132
    %v2172 = vpack.c.b16 %v2146, %v2133
    %v2173 = vpack.c.b16 %v2147, %v2134
    %v2174 = vpack.c.b16 %v2148, %v2135
    %v2175 = vpack.c.b16 %v2149, %v2136
    %v2176 = vpack.c.b16 %v2150, %v2137
    %v2177 = vpack.c.b16 %v2151, %v2138
    %v2178 = vpack.c.b16 %v2152, %v2139
    %v2179 = vpack.c.b16 %v2153, %v2140
    %v2180 = vpack.c.b16 %v2154, %v2141
    %v2181 = vpack.c.b16 %v2155, %v2142
    %v2182 = vpack.c.b16 %v2156, %v2143
    %v2183 = vpack.c.b16 %v2157, %v2144
    %v2211 = vsel %vm855, %v2019, 0
    %2213 = vmatpush.bf16.msra.mxu0 0
    %2214 = vmatpush.bf16.msra.mxu0 0
    %2215 = vmatpush.bf16.msra.mxu0 0
    %2216 = vmatpush.bf16.msra.mxu0 0
    %2217 = vmatpush.bf16.msra.mxu0 0
    %2218 = vmatpush.bf16.msra.mxu0 0
    %2219 = vmatpush.bf16.msra.mxu0 %v2171
    %2220 = vmatpush.bf16.msra.mxu0 %v2158
    %2221 = vmatmul.bf16.gmra.mxu0 %v2211
    %v2222 = vpop.f32.mrf.mxu0
    %v2223 = vadd.f32 %v2052, %v2222
    %v2224 = vpop.f32.mrf.mxu0
    %2225 = vdwg.mxu0
    %2226 = vmatpush.bf16.msra.mxu0 0
    %2227 = vmatpush.bf16.msra.mxu0 0
    %2228 = vmatpush.bf16.msra.mxu0 0
    %2229 = vmatpush.bf16.msra.mxu0 0
    %2230 = vmatpush.bf16.msra.mxu0 0
    %2231 = vmatpush.bf16.msra.mxu0 0
    %2232 = vmatpush.bf16.msra.mxu0 %v2172
    %2233 = vmatpush.bf16.msra.mxu0 %v2159
    %2234 = vmatmul.bf16.gmra.mxu0 %v2211
    %v2235 = vpop.f32.mrf.mxu0
    %v2236 = vadd.f32 %v2053, %v2235
    %v2237 = vpop.f32.mrf.mxu0
    %2238 = vdwg.mxu0
    %2239 = vmatpush.bf16.msra.mxu0 0
    %2240 = vmatpush.bf16.msra.mxu0 0
    %2241 = vmatpush.bf16.msra.mxu0 0
    %2242 = vmatpush.bf16.msra.mxu0 0
    %2243 = vmatpush.bf16.msra.mxu0 0
    %2244 = vmatpush.bf16.msra.mxu0 0
    %2245 = vmatpush.bf16.msra.mxu0 %v2173
    %2246 = vmatpush.bf16.msra.mxu0 %v2160
    %2247 = vmatmul.bf16.gmra.mxu0 %v2211
    %v2248 = vpop.f32.mrf.mxu0
    %v2249 = vadd.f32 %v2054, %v2248
    %v2250 = vpop.f32.mrf.mxu0
    %2251 = vdwg.mxu0
    %2252 = vmatpush.bf16.msra.mxu0 0
    %2253 = vmatpush.bf16.msra.mxu0 0
    %2254 = vmatpush.bf16.msra.mxu0 0
    %2255 = vmatpush.bf16.msra.mxu0 0
    %2256 = vmatpush.bf16.msra.mxu0 0
    %2257 = vmatpush.bf16.msra.mxu0 0
    %2258 = vmatpush.bf16.msra.mxu0 %v2174
    %2259 = vmatpush.bf16.msra.mxu0 %v2161
    %2260 = vmatmul.bf16.gmra.mxu0 %v2211
    %v2261 = vpop.f32.mrf.mxu0
    %v2262 = vadd.f32 %v2055, %v2261
    %v2263 = vpop.f32.mrf.mxu0
    %2264 = vdwg.mxu0
    %2265 = vmatpush.bf16.msra.mxu0 0
    %2266 = vmatpush.bf16.msra.mxu0 0
    %2267 = vmatpush.bf16.msra.mxu0 0
    %2268 = vmatpush.bf16.msra.mxu0 0
    %2269 = vmatpush.bf16.msra.mxu0 0
    %2270 = vmatpush.bf16.msra.mxu0 0
    %2271 = vmatpush.bf16.msra.mxu0 %v2175
    %2272 = vmatpush.bf16.msra.mxu0 %v2162
    %2273 = vmatmul.bf16.gmra.mxu0 %v2211
    %v2274 = vpop.f32.mrf.mxu0
    %v2275 = vadd.f32 %v2056, %v2274
    %v2276 = vpop.f32.mrf.mxu0
    %2277 = vdwg.mxu0
    %2278 = vmatpush.bf16.msra.mxu0 0
    %2279 = vmatpush.bf16.msra.mxu0 0
    %2280 = vmatpush.bf16.msra.mxu0 0
    %2281 = vmatpush.bf16.msra.mxu0 0
    %2282 = vmatpush.bf16.msra.mxu0 0
    %2283 = vmatpush.bf16.msra.mxu0 0
    %2284 = vmatpush.bf16.msra.mxu0 %v2176
    %2285 = vmatpush.bf16.msra.mxu0 %v2163
    %2286 = vmatmul.bf16.gmra.mxu0 %v2211
    %v2287 = vpop.f32.mrf.mxu0
    %v2288 = vadd.f32 %v2057, %v2287
    %v2289 = vpop.f32.mrf.mxu0
    %2290 = vdwg.mxu0
    %2291 = vmatpush.bf16.msra.mxu0 0
    %2292 = vmatpush.bf16.msra.mxu0 0
    %2293 = vmatpush.bf16.msra.mxu0 0
    %2294 = vmatpush.bf16.msra.mxu0 0
    %2295 = vmatpush.bf16.msra.mxu0 0
    %2296 = vmatpush.bf16.msra.mxu0 0
    %2297 = vmatpush.bf16.msra.mxu0 %v2177
    %2298 = vmatpush.bf16.msra.mxu0 %v2164
    %2299 = vmatmul.bf16.gmra.mxu0 %v2211
    %v2300 = vpop.f32.mrf.mxu0
    %v2301 = vadd.f32 %v2058, %v2300
    %v2302 = vpop.f32.mrf.mxu0
    %2303 = vdwg.mxu0
    %2304 = vmatpush.bf16.msra.mxu0 0
    %2305 = vmatpush.bf16.msra.mxu0 0
    %2306 = vmatpush.bf16.msra.mxu0 0
    %2307 = vmatpush.bf16.msra.mxu0 0
    %2308 = vmatpush.bf16.msra.mxu0 0
    %2309 = vmatpush.bf16.msra.mxu0 0
    %2310 = vmatpush.bf16.msra.mxu0 %v2178
    %2311 = vmatpush.bf16.msra.mxu0 %v2165
    %2312 = vmatmul.bf16.gmra.mxu0 %v2211
    %v2313 = vpop.f32.mrf.mxu0
    %v2314 = vadd.f32 %v2059, %v2313
    %v2315 = vpop.f32.mrf.mxu0
    %2316 = vdwg.mxu0
    %2317 = vmatpush.bf16.msra.mxu0 0
    %2318 = vmatpush.bf16.msra.mxu0 0
    %2319 = vmatpush.bf16.msra.mxu0 0
    %2320 = vmatpush.bf16.msra.mxu0 0
    %2321 = vmatpush.bf16.msra.mxu0 0
    %2322 = vmatpush.bf16.msra.mxu0 0
    %2323 = vmatpush.bf16.msra.mxu0 %v2179
    %2324 = vmatpush.bf16.msra.mxu0 %v2166
    %2325 = vmatmul.bf16.gmra.mxu0 %v2211
    %v2326 = vpop.f32.mrf.mxu0
    %v2327 = vadd.f32 %v2060, %v2326
    %v2328 = vpop.f32.mrf.mxu0
    %2329 = vdwg.mxu0
    %2330 = vmatpush.bf16.msra.mxu0 0
    %2331 = vmatpush.bf16.msra.mxu0 0
    %2332 = vmatpush.bf16.msra.mxu0 0
    %2333 = vmatpush.bf16.msra.mxu0 0
    %2334 = vmatpush.bf16.msra.mxu0 0
    %2335 = vmatpush.bf16.msra.mxu0 0
    %2336 = vmatpush.bf16.msra.mxu0 %v2180
    %2337 = vmatpush.bf16.msra.mxu0 %v2167
    %2338 = vmatmul.bf16.gmra.mxu0 %v2211
    %v2339 = vpop.f32.mrf.mxu0
    %v2340 = vadd.f32 %v2061, %v2339
    %v2341 = vpop.f32.mrf.mxu0
    %2342 = vdwg.mxu0
    %2343 = vmatpush.bf16.msra.mxu0 0
    %2344 = vmatpush.bf16.msra.mxu0 0
    %2345 = vmatpush.bf16.msra.mxu0 0
    %2346 = vmatpush.bf16.msra.mxu0 0
    %2347 = vmatpush.bf16.msra.mxu0 0
    %2348 = vmatpush.bf16.msra.mxu0 0
    %2349 = vmatpush.bf16.msra.mxu0 %v2181
    %2350 = vmatpush.bf16.msra.mxu0 %v2168
    %2351 = vmatmul.bf16.gmra.mxu0 %v2211
    %v2352 = vpop.f32.mrf.mxu0
    %v2353 = vadd.f32 %v2062, %v2352
    %v2354 = vpop.f32.mrf.mxu0
    %2355 = vdwg.mxu0
    %2356 = vmatpush.bf16.msra.mxu0 0
    %2357 = vmatpush.bf16.msra.mxu0 0
    %2358 = vmatpush.bf16.msra.mxu0 0
    %2359 = vmatpush.bf16.msra.mxu0 0
    %2360 = vmatpush.bf16.msra.mxu0 0
    %2361 = vmatpush.bf16.msra.mxu0 0
    %2362 = vmatpush.bf16.msra.mxu0 %v2182
    %2363 = vmatpush.bf16.msra.mxu0 %v2169
    %2364 = vmatmul.bf16.gmra.mxu0 %v2211
    %v2365 = vpop.f32.mrf.mxu0
    %v2366 = vadd.f32 %v2063, %v2365
    %v2367 = vpop.f32.mrf.mxu0
    %2368 = vdwg.mxu0
    %2369 = vmatpush.bf16.msra.mxu0 0
    %2370 = vmatpush.bf16.msra.mxu0 0
    %2371 = vmatpush.bf16.msra.mxu0 0
    %2372 = vmatpush.bf16.msra.mxu0 0
    %2373 = vmatpush.bf16.msra.mxu0 0
    %2374 = vmatpush.bf16.msra.mxu0 0
    %2375 = vmatpush.bf16.msra.mxu0 %v2183
    %2376 = vmatpush.bf16.msra.mxu0 %v2170
    %2377 = vmatmul.bf16.gmra.mxu0 %v2211
    %v2378 = vpop.f32.mrf.mxu0
    %v2379 = vadd.f32 %v2064, %v2378
    %v2380 = vpop.f32.mrf.mxu0
    %2381 = vdwg.mxu0
    %vm2382 = vcmask 254976
    %2383 = vst.msk [vmem:[#allocation2] sm:$0x3] %vm2382, %v1024
    %2384 = vst.msk [vmem:[#allocation4] sm:$0x3] %vm2382, %v2010
    %2385 = vst.msk [vmem:[#allocation6] sm:$0x3] %vm2382, %v2018
    %v2386 = vmax.f32 %v2223, 0.0
    %v2387 = vmax.f32 %v2236, 0.0
    %v2388 = vmax.f32 %v2249, 0.0
    %v2389 = vmax.f32 %v2262, 0.0
    %v2390 = vmax.f32 %v2275, 0.0
    %v2391 = vmax.f32 %v2288, 0.0
    %v2392 = vmax.f32 %v2301, 0.0
    %v2393 = vmax.f32 %v2314, 0.0
    %v2394 = vmax.f32 %v2327, 0.0
    %v2395 = vmax.f32 %v2340, 0.0
    %v2396 = vmax.f32 %v2353, 0.0
    %v2397 = vmax.f32 %v2366, 0.0
    %v2398 = vmax.f32 %v2379, 0.0
    %v2411 = vrot.slane %v2387, 6
    %v2412 = vrot.slane %v2388, 4
    %v2413 = vrot.slane %v2389, 2
    %v2414 = vrot.slane %v2391, 6
    %v2415 = vrot.slane %v2392, 4
    %v2416 = vrot.slane %v2393, 2
    %v2417 = vrot.slane %v2395, 6
    %v2418 = vrot.slane %v2396, 4
    %v2419 = vrot.slane %v2397, 2
    %vm2420 = vcmask 1041408
    %v2421 = vsel %vm2420, %v2386, %v2411
    %vm2422 = vcmask 1045508
    %v2423 = vsel %vm2422, %v2412, %v2413
    %vm2424 = vcmask 1043456
    %v2425 = vsel %vm2424, %v2421, %v2423
    %v2426 = vsel %vm2420, %v2390, %v2414
    %v2427 = vsel %vm2422, %v2415, %v2416
    %v2428 = vsel %vm2424, %v2426, %v2427
    %v2429 = vsel %vm2420, %v2394, %v2417
    %v2430 = vsel %vm2422, %v2418, %v2419
    %v2431 = vsel %vm2424, %v2429, %v2430
    %2435 = vst [vmem:[%s11] sm:$0xff] %v2425
    %2436 = vst [vmem:[%s11 + $0x8] sm:$0xff] %v2428
    %2437 = vst [vmem:[%s11 + $0x10] sm:$0xff] %v2431
    %2438 = vst.msk [vmem:[%s11 + $0x18] sm:$0x3] %vm2382, %v2398
    // Predicated region
    $region34: #{vae_forward.10} parent=1 // pred_check
      _
    $region35: #{vae_forward.10} parent=1 // pred_check_branch
      %2440 = sbr.rel (0) target = $region37
    $region36: #{vae_forward.10} parent=1 // pred_region
      %2442 = vsyncadd [#allocation3], 0
      %s2444 = sshll.u32 [#allocation2], 4
      %s2445 = int_to_ptr.vmem [resolvable:$true] %s2444
      %s2446 = sshll.u32 %s8, 4
      %s2447 = int_to_ptr.hbm [resolvable:$true] %s2446
      %2449 = dma.vmem_to_hbm [thread:$0]  %s2445, 32, %s2447, [#allocation3]
    $region37: #{vae_forward.10} parent=1 // pred_fallthru
      _
    // Predicated region
    $region38: #{vae_forward.10} parent=1 // pred_check
      _
    $region39: #{vae_forward.10} parent=1 // pred_check_branch
      %2451 = sbr.rel (0) target = $region41
    $region40: #{vae_forward.10} parent=1 // pred_region
      %2453 = vsyncadd [#allocation5], 0
      %s2455 = sshll.u32 [#allocation4], 4
      %s2456 = int_to_ptr.vmem [resolvable:$true] %s2455
      %s2457 = sshll.u32 %s9, 4
      %s2458 = int_to_ptr.hbm [resolvable:$true] %s2457
      %2460 = dma.vmem_to_hbm [thread:$0]  %s2456, 32, %s2458, [#allocation5]
    $region41: #{vae_forward.10} parent=1 // pred_fallthru
      _
    // Predicated region
    $region42: #{vae_forward.10} parent=1 // pred_check
      _
    $region43: #{vae_forward.10} parent=1 // pred_check_branch
      %2462 = sbr.rel (0) target = $region45
    $region44: #{vae_forward.10} parent=1 // pred_region
      %2464 = vsyncadd [#allocation5], 0
      %s2466 = sshll.u32 [#allocation6], 4
      %s2467 = int_to_ptr.vmem [resolvable:$true] %s2466
      %s2468 = sshll.u32 %s10, 4
      %s2469 = int_to_ptr.hbm [resolvable:$true] %s2468
      %2471 = dma.vmem_to_hbm [thread:$0]  %s2467, 32, %s2469, [#allocation5]
    $region45: #{vae_forward.10} parent=1 // pred_fallthru
      _
    // Predicated region
    $region46: #{vae_forward.10} parent=1 // pred_check
      _
    $region47: #{vae_forward.10} parent=1 // pred_check_branch
      %2473 = sbr.rel (0) target = $region49
    $region48: #{vae_forward.10} parent=1 // pred_region
      _
    $region49: #{vae_forward.10} parent=1 // pred_fallthru
      _
    // Predicated region
    $region50: #{vae_forward.10} parent=1 // pred_check
      _
    $region51: #{vae_forward.10} parent=1 // pred_check_branch
      %2475 = sbr.rel (0) target = $region53
    $region52: #{vae_forward.10} parent=1 // pred_region
      %2477 = dma.done [#allocation3], 32
    $region53: #{vae_forward.10} parent=1 // pred_fallthru
      _
    // Predicated region
    $region54: #{vae_forward.10} parent=1 // pred_check
      _
    $region55: #{vae_forward.10} parent=1 // pred_check_branch
      %2479 = sbr.rel (0) target = $region57
    $region56: #{vae_forward.10} parent=1 // pred_region
      %2481 = dma.done [#allocation5], 32
    $region57: #{vae_forward.10} parent=1 // pred_fallthru
      _
    // Predicated region
    $region58: #{vae_forward.10} parent=1 // pred_check
      _
    $region59: #{vae_forward.10} parent=1 // pred_check_branch
      %2483 = sbr.rel (0) target = $region61
    $region60: #{vae_forward.10} parent=1 // pred_region
      %2485 = dma.done [#allocation5], 32
    $region61: #{vae_forward.10} parent=1 // pred_fallthru
      _
    // Predicated region
    $region62: #{vae_forward.10} parent=1 // pred_check
      _
    $region63: #{vae_forward.10} parent=1 // pred_check_branch
      %2487 = sbr.rel (0) target = $region65
    $region64: #{vae_forward.10} parent=1 // pred_region
      _
    $region65: #{vae_forward.10} parent=1 // pred_fallthru
      _
    %2488 = vsyncpa [#allocation3], 1
    %2489 = vsyncpa [#allocation5], 1

// kernel: vae_forward.11
$region0: #{vae_forward.11}
  #allocation0 [shape = 'u32[]', space=smem, size = 0x4, offset = 0x4, fixed_abs, tag = 'smem constant byte address 0x4 - core index']
  #allocation1 [shape = 'u32[72,128]{1,0:T(1,128)}', space=vmem, size = 0x9000, scoped, tag = 'internal scratch']
  %s0 = inlined_call_operand.vmem [shape: bf16[32,288], index: 0, kind: input, shape index: {}]
  %s1 = inlined_call_operand.vmem [shape: bf16[288,162], index: 1, kind: input, shape index: {}]
  %s2 = inlined_call_operand.vmem [shape: f32[32,1], index: 2, kind: input, shape index: {}]
  %s3 = inlined_call_operand.vmem [shape: f32[32,162], index: 3, kind: output, shape index: {}]
  %s4 = sld [smem:[#allocation0]]
  $region22: #{vae_forward.11} parent=0
    _
  %s6 = ssub.s32 1, %s4
  %s7 = scalar_select 0, %s6, %s4
  // Predicated region
  $region2: #{vae_forward.11} parent=0 // pred_check
    _
  $region3: #{vae_forward.11} parent=0 // pred_check_branch
    %9 = sbr.rel (0) target = $region5
  $region4: #{vae_forward.11} parent=0 // pred_region
    _
  $region5: #{vae_forward.11} parent=0 // pred_fallthru
    _
  // Predicated region
  $region6: #{vae_forward.11} parent=0 // pred_check
    _
  $region7: #{vae_forward.11} parent=0 // pred_check_branch
    %11 = sbr.rel (0) target = $region9
  $region8: #{vae_forward.11} parent=0 // pred_region
    _
  $region9: #{vae_forward.11} parent=0 // pred_fallthru
    _
  // Predicated region
  $region10: #{vae_forward.11} parent=0 // pred_check
    _
  $region11: #{vae_forward.11} parent=0 // pred_check_branch
    %13 = sbr.rel (0) target = $region13
  $region12: #{vae_forward.11} parent=0 // pred_region
    _
  $region13: #{vae_forward.11} parent=0 // pred_fallthru
    _
  %v15 = vld [vmem:[%s0] sm:$0xff]
  %v16 = vld [vmem:[%s0 + $0x8] sm:$0xf]
  %v17 = vld [vmem:[%s0 + $0xc] sm:$0xff]
  %v18 = vld [vmem:[%s0 + $0x14] sm:$0xf]
  %v19 = vld [vmem:[%s0 + $0x18] sm:$0xff]
  %v20 = vld [vmem:[%s0 + $0x20] sm:$0xf]
  %v21 = vld [vmem:[%s0 + $0x24] sm:$0xff]
  %v22 = vld [vmem:[%s0 + $0x2c] sm:$0xf]
  %v23 = vld [vmem:[%s1] sm:$0xff]
  %v24 = vld [vmem:[%s1 + $0x8] sm:$0xff]
  %v25 = vld [vmem:[%s1 + $0x10] sm:$0xff]
  %v26 = vld [vmem:[%s1 + $0x18] sm:$0xff]
  %v27 = vld [vmem:[%s1 + $0x20] sm:$0xff]
  %v28 = vld [vmem:[%s1 + $0x28] sm:$0xff]
  %v29 = vld [vmem:[%s1 + $0x30] sm:$0xff]
  %v30 = vld [vmem:[%s1 + $0x38] sm:$0xff]
  %v31 = vld [vmem:[%s1 + $0x40] sm:$0xff]
  %v32 = vld [vmem:[%s1 + $0x48] sm:$0xff]
  %v33 = vld [vmem:[%s1 + $0x50] sm:$0xff]
  %v34 = vld [vmem:[%s1 + $0x58] sm:$0xff]
  %v35 = vld [vmem:[%s1 + $0x60] sm:$0xff]
  %v36 = vld [vmem:[%s1 + $0x68] sm:$0xff]
  %v37 = vld [vmem:[%s1 + $0x70] sm:$0xff]
  %v38 = vld [vmem:[%s1 + $0x78] sm:$0xff]
  %v39 = vld [vmem:[%s1 + $0x80] sm:$0xff]
  %v40 = vld [vmem:[%s1 + $0x88] sm:$0xff]
  %v41 = vld [vmem:[%s1 + $0x90] sm:$0xff]
  %v42 = vld [vmem:[%s1 + $0x98] sm:$0xff]
  %v43 = vld [vmem:[%s1 + $0xa0] sm:$0xff]
  %v44 = vld [vmem:[%s1 + $0xa8] sm:$0xff]
  %v45 = vld [vmem:[%s1 + $0xb0] sm:$0xff]
  %v46 = vld [vmem:[%s1 + $0xb8] sm:$0xff]
  %v47 = vld [vmem:[%s1 + $0xc0] sm:$0xff]
  %v48 = vld [vmem:[%s1 + $0xc8] sm:$0xff]
  %v49 = vld [vmem:[%s1 + $0xd0] sm:$0xff]
  %v50 = vld [vmem:[%s1 + $0xd8] sm:$0xff]
  %v51 = vld [vmem:[%s1 + $0xe0] sm:$0xff]
  %v52 = vld [vmem:[%s1 + $0xe8] sm:$0xff]
  %v53 = vld [vmem:[%s1 + $0xf0] sm:$0xff]
  %v54 = vld [vmem:[%s1 + $0xf8] sm:$0xff]
  %v55 = vld [vmem:[%s1 + $0x100] sm:$0xff]
  %v56 = vld [vmem:[%s1 + $0x108] sm:$0xff]
  %v57 = vld [vmem:[%s1 + $0x110] sm:$0xff]
  %v58 = vld [vmem:[%s1 + $0x118] sm:$0xff]
  %v59 = vld [vmem:[%s2] sm:$0xff]
  %v60 = vld [vmem:[%s2 + $0x8] sm:$0xff]
  %v61 = vld [vmem:[%s2 + $0x10] sm:$0xff]
  %v62 = vld [vmem:[%s2 + $0x18] sm:$0xff]
  %64 = vset.pattern.permute.xlu0 0
  %65 = vperm.xlu0 %64, %v59
  %v66 = vpop.permute.xlu0 %65
  %69 = vset.pattern.permute.xlu0 0
  %70 = vperm.xlu0 %69, %v60
  %v71 = vpop.permute.xlu0 %70
  %74 = vset.pattern.permute.xlu0 0
  %75 = vperm.xlu0 %74, %v61
  %v76 = vpop.permute.xlu0 %75
  %79 = vset.pattern.permute.xlu0 0
  %80 = vperm.xlu0 %79, %v62
  %v81 = vpop.permute.xlu0 %80
  %v91 = vunpack.c.l.b16 %v15
  %v92 = vunpack.c.h.b16 %v15
  %v93 = vunpack.c.l.b16 %v16
  %v94 = vunpack.c.l.b16 %v17
  %v95 = vunpack.c.h.b16 %v17
  %v96 = vunpack.c.l.b16 %v18
  %v97 = vunpack.c.l.b16 %v19
  %v98 = vunpack.c.h.b16 %v19
  %v99 = vunpack.c.l.b16 %v20
  %v100 = vunpack.c.l.b16 %v21
  %v101 = vunpack.c.h.b16 %v21
  %v102 = vunpack.c.l.b16 %v22
  %v103 = vpack.c.b16 %v94, %v91
  %v104 = vpack.c.b16 %v95, %v92
  %v105 = vpack.c.b16 %v96, %v93
  %v106 = vpack.c.b16 %v100, %v97
  %v107 = vpack.c.b16 %v101, %v98
  %v108 = vpack.c.b16 %v102, %v99
  %v149 = vunpack.c.l.b16 %v23
  %v150 = vunpack.c.h.b16 %v23
  %v151 = vunpack.c.l.b16 %v24
  %v152 = vunpack.c.h.b16 %v24
  %v153 = vunpack.c.l.b16 %v25
  %v154 = vunpack.c.h.b16 %v25
  %v155 = vunpack.c.l.b16 %v26
  %v156 = vunpack.c.h.b16 %v26
  %v157 = vunpack.c.l.b16 %v27
  %v158 = vunpack.c.h.b16 %v27
  %v159 = vunpack.c.l.b16 %v28
  %v160 = vunpack.c.h.b16 %v28
  %v161 = vunpack.c.l.b16 %v29
  %v162 = vunpack.c.h.b16 %v29
  %v163 = vunpack.c.l.b16 %v30
  %v164 = vunpack.c.h.b16 %v30
  %v165 = vunpack.c.l.b16 %v31
  %v166 = vunpack.c.h.b16 %v31
  %v167 = vunpack.c.l.b16 %v32
  %v168 = vunpack.c.h.b16 %v32
  %v169 = vunpack.c.l.b16 %v33
  %v170 = vunpack.c.h.b16 %v33
  %v171 = vunpack.c.l.b16 %v34
  %v172 = vunpack.c.h.b16 %v34
  %v173 = vunpack.c.l.b16 %v35
  %v174 = vunpack.c.h.b16 %v35
  %v175 = vunpack.c.l.b16 %v36
  %v176 = vunpack.c.h.b16 %v36
  %v177 = vunpack.c.l.b16 %v37
  %v178 = vunpack.c.h.b16 %v37
  %v179 = vunpack.c.l.b16 %v38
  %v180 = vunpack.c.h.b16 %v38
  %v181 = vunpack.c.l.b16 %v39
  %v182 = vunpack.c.h.b16 %v39
  %v183 = vunpack.c.l.b16 %v40
  %v184 = vunpack.c.h.b16 %v40
  %v185 = vunpack.c.l.b16 %v41
  %v186 = vunpack.c.h.b16 %v41
  %v187 = vunpack.c.l.b16 %v42
  %v188 = vunpack.c.h.b16 %v42
  %v189 = vunpack.c.l.b16 %v43
  %v190 = vunpack.c.h.b16 %v43
  %v191 = vunpack.c.l.b16 %v44
  %v192 = vunpack.c.h.b16 %v44
  %v193 = vunpack.c.l.b16 %v45
  %v194 = vunpack.c.h.b16 %v45
  %v195 = vunpack.c.l.b16 %v46
  %v196 = vunpack.c.h.b16 %v46
  %v197 = vunpack.c.l.b16 %v47
  %v198 = vunpack.c.h.b16 %v47
  %v199 = vunpack.c.l.b16 %v48
  %v200 = vunpack.c.h.b16 %v48
  %v201 = vunpack.c.l.b16 %v49
  %v202 = vunpack.c.h.b16 %v49
  %v203 = vunpack.c.l.b16 %v50
  %v204 = vunpack.c.h.b16 %v50
  %v205 = vunpack.c.l.b16 %v51
  %v206 = vunpack.c.h.b16 %v51
  %v207 = vunpack.c.l.b16 %v52
  %v208 = vunpack.c.h.b16 %v52
  %v209 = vunpack.c.l.b16 %v53
  %v210 = vunpack.c.h.b16 %v53
  %v211 = vunpack.c.l.b16 %v54
  %v212 = vunpack.c.h.b16 %v54
  %v213 = vunpack.c.l.b16 %v55
  %v214 = vunpack.c.h.b16 %v55
  %v215 = vunpack.c.l.b16 %v56
  %v216 = vunpack.c.h.b16 %v56
  %v217 = vunpack.c.l.b16 %v57
  %v218 = vunpack.c.h.b16 %v57
  %v219 = vunpack.c.l.b16 %v58
  %v220 = vunpack.c.h.b16 %v58
  %v221 = vpack.c.b16 %v151, %v149
  %v222 = vpack.c.b16 %v152, %v150
  %v223 = vpack.c.b16 %v155, %v153
  %v224 = vpack.c.b16 %v156, %v154
  %v225 = vpack.c.b16 %v159, %v157
  %v226 = vpack.c.b16 %v160, %v158
  %v227 = vpack.c.b16 %v163, %v161
  %v228 = vpack.c.b16 %v164, %v162
  %v229 = vpack.c.b16 %v167, %v165
  %v230 = vpack.c.b16 %v168, %v166
  %v231 = vpack.c.b16 %v171, %v169
  %v232 = vpack.c.b16 %v172, %v170
  %v233 = vpack.c.b16 %v175, %v173
  %v234 = vpack.c.b16 %v176, %v174
  %v235 = vpack.c.b16 %v179, %v177
  %v236 = vpack.c.b16 %v180, %v178
  %v237 = vpack.c.b16 %v183, %v181
  %v238 = vpack.c.b16 %v184, %v182
  %v239 = vpack.c.b16 %v187, %v185
  %v240 = vpack.c.b16 %v188, %v186
  %v241 = vpack.c.b16 %v191, %v189
  %v242 = vpack.c.b16 %v192, %v190
  %v243 = vpack.c.b16 %v195, %v193
  %v244 = vpack.c.b16 %v196, %v194
  %v245 = vpack.c.b16 %v199, %v197
  %v246 = vpack.c.b16 %v200, %v198
  %v247 = vpack.c.b16 %v203, %v201
  %v248 = vpack.c.b16 %v204, %v202
  %v249 = vpack.c.b16 %v207, %v205
  %v250 = vpack.c.b16 %v208, %v206
  %v251 = vpack.c.b16 %v211, %v209
  %v252 = vpack.c.b16 %v212, %v210
  %v253 = vpack.c.b16 %v215, %v213
  %v254 = vpack.c.b16 %v216, %v214
  %v255 = vpack.c.b16 %v219, %v217
  %v256 = vpack.c.b16 %v220, %v218
  %vm293 = vcmask 261120
  %v295 = vsel %vm293, %v105, 0
  %v298 = vsel %vm293, %v108, 0
  %300 = vmatpush.bf16.msra.mxu0 %v235
  %301 = vmatpush.bf16.msra.mxu0 %v233
  %302 = vmatpush.bf16.msra.mxu0 %v231
  %303 = vmatpush.bf16.msra.mxu0 %v229
  %304 = vmatpush.bf16.msra.mxu0 %v227
  %305 = vmatpush.bf16.msra.mxu0 %v225
  %306 = vmatpush.bf16.msra.mxu0 %v223
  %307 = vmatpush.bf16.msra.mxu0 %v221
  %308 = vmatmul.bf16.gmra.mxu0 %v103
  %v309 = vpop.f32.mrf.mxu0
  %v310 = vadd.f32 %v66, %v309
  %v311 = vpop.f32.mrf.mxu0
  %v312 = vadd.f32 %v71, %v311
  %313 = vmatmul.bf16.gmra.mxu0 %v106
  %v314 = vpop.f32.mrf.mxu0
  %v315 = vadd.f32 %v76, %v314
  %v316 = vpop.f32.mrf.mxu0
  %v317 = vadd.f32 %v81, %v316
  %318 = vdwg.mxu0
  %319 = vmatpush.bf16.msra.mxu0 %v251
  %320 = vmatpush.bf16.msra.mxu0 %v249
  %321 = vmatpush.bf16.msra.mxu0 %v247
  %322 = vmatpush.bf16.msra.mxu0 %v245
  %323 = vmatpush.bf16.msra.mxu0 %v243
  %324 = vmatpush.bf16.msra.mxu0 %v241
  %325 = vmatpush.bf16.msra.mxu0 %v239
  %326 = vmatpush.bf16.msra.mxu0 %v237
  %327 = vmatmul.bf16.gmra.mxu0 %v104
  %v328 = vpop.f32.mrf.mxu0
  %v329 = vadd.f32 %v310, %v328
  %v330 = vpop.f32.mrf.mxu0
  %v331 = vadd.f32 %v312, %v330
  %332 = vmatmul.bf16.gmra.mxu0 %v107
  %v333 = vpop.f32.mrf.mxu0
  %v334 = vadd.f32 %v315, %v333
  %v335 = vpop.f32.mrf.mxu0
  %v336 = vadd.f32 %v317, %v335
  %337 = vdwg.mxu0
  %338 = vmatpush.bf16.msra.mxu0 0
  %339 = vmatpush.bf16.msra.mxu0 0
  %340 = vmatpush.bf16.msra.mxu0 0
  %341 = vmatpush.bf16.msra.mxu0 0
  %342 = vmatpush.bf16.msra.mxu0 0
  %343 = vmatpush.bf16.msra.mxu0 0
  %344 = vmatpush.bf16.msra.mxu0 %v255
  %345 = vmatpush.bf16.msra.mxu0 %v253
  %346 = vmatmul.bf16.gmra.mxu0 %v295
  %v347 = vpop.f32.mrf.mxu0
  %v348 = vadd.f32 %v329, %v347
  %v349 = vpop.f32.mrf.mxu0
  %v350 = vadd.f32 %v331, %v349
  %351 = vmatmul.bf16.gmra.mxu0 %v298
  %v352 = vpop.f32.mrf.mxu0
  %v353 = vadd.f32 %v334, %v352
  %v354 = vpop.f32.mrf.mxu0
  %v355 = vadd.f32 %v336, %v354
  %356 = vdwg.mxu0
  %357 = vmatpush.bf16.msra.mxu0 %v236
  %358 = vmatpush.bf16.msra.mxu0 %v234
  %359 = vmatpush.bf16.msra.mxu0 %v232
  %360 = vmatpush.bf16.msra.mxu0 %v230
  %361 = vmatpush.bf16.msra.mxu0 %v228
  %362 = vmatpush.bf16.msra.mxu0 %v226
  %363 = vmatpush.bf16.msra.mxu0 %v224
  %364 = vmatpush.bf16.msra.mxu0 %v222
  %365 = vmatmul.bf16.gmra.mxu0 %v103
  %v366 = vpop.f32.mrf.mxu0
  %v367 = vadd.f32 %v66, %v366
  %v368 = vpop.f32.mrf.mxu0
  %v369 = vadd.f32 %v71, %v368
  %370 = vmatmul.bf16.gmra.mxu0 %v106
  %v371 = vpop.f32.mrf.mxu0
  %v372 = vadd.f32 %v76, %v371
  %v373 = vpop.f32.mrf.mxu0
  %v374 = vadd.f32 %v81, %v373
  %375 = vdwg.mxu0
  %376 = vmatpush.bf16.msra.mxu0 %v252
  %377 = vmatpush.bf16.msra.mxu0 %v250
  %378 = vmatpush.bf16.msra.mxu0 %v248
  %379 = vmatpush.bf16.msra.mxu0 %v246
  %380 = vmatpush.bf16.msra.mxu0 %v244
  %381 = vmatpush.bf16.msra.mxu0 %v242
  %382 = vmatpush.bf16.msra.mxu0 %v240
  %383 = vmatpush.bf16.msra.mxu0 %v238
  %384 = vmatmul.bf16.gmra.mxu0 %v104
  %v385 = vpop.f32.mrf.mxu0
  %v386 = vadd.f32 %v367, %v385
  %v387 = vpop.f32.mrf.mxu0
  %v388 = vadd.f32 %v369, %v387
  %389 = vmatmul.bf16.gmra.mxu0 %v107
  %v390 = vpop.f32.mrf.mxu0
  %v391 = vadd.f32 %v372, %v390
  %v392 = vpop.f32.mrf.mxu0
  %v393 = vadd.f32 %v374, %v392
  %394 = vdwg.mxu0
  %395 = vmatpush.bf16.msra.mxu0 0
  %396 = vmatpush.bf16.msra.mxu0 0
  %397 = vmatpush.bf16.msra.mxu0 0
  %398 = vmatpush.bf16.msra.mxu0 0
  %399 = vmatpush.bf16.msra.mxu0 0
  %400 = vmatpush.bf16.msra.mxu0 0
  %401 = vmatpush.bf16.msra.mxu0 %v256
  %402 = vmatpush.bf16.msra.mxu0 %v254
  %403 = vmatmul.bf16.gmra.mxu0 %v295
  %v404 = vpop.f32.mrf.mxu0
  %v405 = vadd.f32 %v386, %v404
  %v406 = vpop.f32.mrf.mxu0
  %v407 = vadd.f32 %v388, %v406
  %408 = vmatmul.bf16.gmra.mxu0 %v298
  %v409 = vpop.f32.mrf.mxu0
  %v410 = vadd.f32 %v391, %v409
  %v411 = vpop.f32.mrf.mxu0
  %v412 = vadd.f32 %v393, %v411
  %413 = vdwg.mxu0
  %v414 = vmax.f32 %v348, 0.0
  %v415 = vmax.f32 %v405, 0.0
  %v416 = vmax.f32 %v350, 0.0
  %v417 = vmax.f32 %v407, 0.0
  %v418 = vmax.f32 %v353, 0.0
  %v419 = vmax.f32 %v410, 0.0
  %v420 = vmax.f32 %v355, 0.0
  %v421 = vmax.f32 %v412, 0.0
  %422 = vst [vmem:[%s3] sm:$0xff] %v414
  %vm423 = vcmask 277504
  %424 = vst.msk [vmem:[%s3 + $0x8] sm:$0xff] %vm423, %v415
  %425 = vst [vmem:[%s3 + $0x10] sm:$0xff] %v416
  %426 = vst.msk [vmem:[%s3 + $0x18] sm:$0xff] %vm423, %v417
  %427 = vst [vmem:[%s3 + $0x20] sm:$0xff] %v418
  %428 = vst.msk [vmem:[%s3 + $0x28] sm:$0xff] %vm423, %v419
  %429 = vst [vmem:[%s3 + $0x30] sm:$0xff] %v420
  %430 = vst.msk [vmem:[%s3 + $0x38] sm:$0xff] %vm423, %v421
  // Predicated region
  $region14: #{vae_forward.11} parent=0 // pred_check
    _
  $region15: #{vae_forward.11} parent=0 // pred_check_branch
    %432 = sbr.rel (0) target = $region17
  $region16: #{vae_forward.11} parent=0 // pred_region
    _
  $region17: #{vae_forward.11} parent=0 // pred_fallthru
    _
  // Predicated region
  $region18: #{vae_forward.11} parent=0 // pred_check
    _
  $region19: #{vae_forward.11} parent=0 // pred_check_branch
    %434 = sbr.rel (0) target = $region21
  $region20: #{vae_forward.11} parent=0 // pred_region
    _
  $region21: #{vae_forward.11} parent=0 // pred_fallthru
    _

// kernel: vae_forward.12
$region0: #{vae_forward.12}
  #allocation0 [shape = 'u32[]', space=smem, size = 0x4, offset = 0x4, fixed_abs, tag = 'smem constant byte address 0x4 - core index']
  #allocation1 [shape = 'u32[72,128]{1,0:T(1,128)}', space=vmem, size = 0x9000, scoped, tag = 'internal scratch']
  %s0 = inlined_call_operand.vmem [shape: bf16[64,128], index: 0, kind: input, shape index: {}]
  %s1 = inlined_call_operand.vmem [shape: bf16[128,200], index: 1, kind: input, shape index: {}]
  %s2 = inlined_call_operand.vmem [shape: f32[64,1], index: 2, kind: input, shape index: {}]
  %s3 = inlined_call_operand.vmem [shape: f32[64,200], index: 3, kind: output, shape index: {}]
  %s4 = sld [smem:[#allocation0]]
  $region22: #{vae_forward.12} parent=0
    _
  %s6 = ssub.s32 1, %s4
  %s7 = scalar_select 0, %s6, %s4
  // Predicated region
  $region2: #{vae_forward.12} parent=0 // pred_check
    _
  $region3: #{vae_forward.12} parent=0 // pred_check_branch
    %9 = sbr.rel (0) target = $region5
  $region4: #{vae_forward.12} parent=0 // pred_region
    _
  $region5: #{vae_forward.12} parent=0 // pred_fallthru
    _
  // Predicated region
  $region6: #{vae_forward.12} parent=0 // pred_check
    _
  $region7: #{vae_forward.12} parent=0 // pred_check_branch
    %11 = sbr.rel (0) target = $region9
  $region8: #{vae_forward.12} parent=0 // pred_region
    _
  $region9: #{vae_forward.12} parent=0 // pred_fallthru
    _
  // Predicated region
  $region10: #{vae_forward.12} parent=0 // pred_check
    _
  $region11: #{vae_forward.12} parent=0 // pred_check_branch
    %13 = sbr.rel (0) target = $region13
  $region12: #{vae_forward.12} parent=0 // pred_region
    _
  $region13: #{vae_forward.12} parent=0 // pred_fallthru
    _
  %v14 = vld [vmem:[%s0] sm:$0xf]
  %v15 = vld [vmem:[%s0 + $0x4] sm:$0xf]
  %v16 = vld [vmem:[%s0 + $0x8] sm:$0xf]
  %v17 = vld [vmem:[%s0 + $0xc] sm:$0xf]
  %v18 = vld [vmem:[%s0 + $0x10] sm:$0xf]
  %v19 = vld [vmem:[%s0 + $0x14] sm:$0xf]
  %v20 = vld [vmem:[%s0 + $0x18] sm:$0xf]
  %v21 = vld [vmem:[%s0 + $0x1c] sm:$0xf]
  %v22 = vld [vmem:[%s1] sm:$0xff]
  %v23 = vld [vmem:[%s1 + $0x8] sm:$0xff]
  %v24 = vld [vmem:[%s1 + $0x10] sm:$0xff]
  %v25 = vld [vmem:[%s1 + $0x18] sm:$0xff]
  %v26 = vld [vmem:[%s1 + $0x20] sm:$0xff]
  %v27 = vld [vmem:[%s1 + $0x28] sm:$0xff]
  %v28 = vld [vmem:[%s1 + $0x30] sm:$0xff]
  %v29 = vld [vmem:[%s1 + $0x38] sm:$0xff]
  %v30 = vld [vmem:[%s1 + $0x40] sm:$0xff]
  %v31 = vld [vmem:[%s1 + $0x48] sm:$0xff]
  %v32 = vld [vmem:[%s1 + $0x50] sm:$0xff]
  %v33 = vld [vmem:[%s1 + $0x58] sm:$0xff]
  %v34 = vld [vmem:[%s1 + $0x60] sm:$0xff]
  %v35 = vld [vmem:[%s1 + $0x68] sm:$0xff]
  %v36 = vld [vmem:[%s1 + $0x70] sm:$0xff]
  %v37 = vld [vmem:[%s1 + $0x78] sm:$0xff]
  %v38 = vld [vmem:[%s2] sm:$0xff]
  %v39 = vld [vmem:[%s2 + $0x8] sm:$0xff]
  %v40 = vld [vmem:[%s2 + $0x10] sm:$0xff]
  %v41 = vld [vmem:[%s2 + $0x18] sm:$0xff]
  %v42 = vld [vmem:[%s2 + $0x20] sm:$0xff]
  %v43 = vld [vmem:[%s2 + $0x28] sm:$0xff]
  %v44 = vld [vmem:[%s2 + $0x30] sm:$0xff]
  %v45 = vld [vmem:[%s2 + $0x38] sm:$0xff]
  %47 = vset.pattern.permute.xlu0 0
  %48 = vperm.xlu0 %47, %v38
  %v49 = vpop.permute.xlu0 %48
  %52 = vset.pattern.permute.xlu0 0
  %53 = vperm.xlu0 %52, %v39
  %v54 = vpop.permute.xlu0 %53
  %57 = vset.pattern.permute.xlu0 0
  %58 = vperm.xlu0 %57, %v40
  %v59 = vpop.permute.xlu0 %58
  %62 = vset.pattern.permute.xlu0 0
  %63 = vperm.xlu0 %62, %v41
  %v64 = vpop.permute.xlu0 %63
  %67 = vset.pattern.permute.xlu0 0
  %68 = vperm.xlu0 %67, %v42
  %v69 = vpop.permute.xlu0 %68
  %72 = vset.pattern.permute.xlu0 0
  %73 = vperm.xlu0 %72, %v43
  %v74 = vpop.permute.xlu0 %73
  %77 = vset.pattern.permute.xlu0 0
  %78 = vperm.xlu0 %77, %v44
  %v79 = vpop.permute.xlu0 %78
  %82 = vset.pattern.permute.xlu0 0
  %83 = vperm.xlu0 %82, %v45
  %v84 = vpop.permute.xlu0 %83
  %v94 = vunpack.c.l.b16 %v14
  %v95 = vunpack.c.l.b16 %v15
  %v96 = vunpack.c.l.b16 %v16
  %v97 = vunpack.c.l.b16 %v17
  %v98 = vunpack.c.l.b16 %v18
  %v99 = vunpack.c.l.b16 %v19
  %v100 = vunpack.c.l.b16 %v20
  %v101 = vunpack.c.l.b16 %v21
  %v102 = vpack.c.b16 %v95, %v94
  %v103 = vpack.c.b16 %v97, %v96
  %v104 = vpack.c.b16 %v99, %v98
  %v105 = vpack.c.b16 %v101, %v100
  %v126 = vunpack.c.l.b16 %v22
  %v127 = vunpack.c.h.b16 %v22
  %v128 = vunpack.c.l.b16 %v23
  %v129 = vunpack.c.h.b16 %v23
  %v130 = vunpack.c.l.b16 %v24
  %v131 = vunpack.c.h.b16 %v24
  %v132 = vunpack.c.l.b16 %v25
  %v133 = vunpack.c.h.b16 %v25
  %v134 = vunpack.c.l.b16 %v26
  %v135 = vunpack.c.h.b16 %v26
  %v136 = vunpack.c.l.b16 %v27
  %v137 = vunpack.c.h.b16 %v27
  %v138 = vunpack.c.l.b16 %v28
  %v139 = vunpack.c.h.b16 %v28
  %v140 = vunpack.c.l.b16 %v29
  %v141 = vunpack.c.h.b16 %v29
  %v142 = vunpack.c.l.b16 %v30
  %v143 = vunpack.c.h.b16 %v30
  %v144 = vunpack.c.l.b16 %v31
  %v145 = vunpack.c.h.b16 %v31
  %v146 = vunpack.c.l.b16 %v32
  %v147 = vunpack.c.h.b16 %v32
  %v148 = vunpack.c.l.b16 %v33
  %v149 = vunpack.c.h.b16 %v33
  %v150 = vunpack.c.l.b16 %v34
  %v151 = vunpack.c.h.b16 %v34
  %v152 = vunpack.c.l.b16 %v35
  %v153 = vunpack.c.h.b16 %v35
  %v154 = vunpack.c.l.b16 %v36
  %v155 = vunpack.c.h.b16 %v36
  %v156 = vunpack.c.l.b16 %v37
  %v157 = vunpack.c.h.b16 %v37
  %v158 = vpack.c.b16 %v128, %v126
  %v159 = vpack.c.b16 %v129, %v127
  %v160 = vpack.c.b16 %v132, %v130
  %v161 = vpack.c.b16 %v133, %v131
  %v162 = vpack.c.b16 %v136, %v134
  %v163 = vpack.c.b16 %v137, %v135
  %v164 = vpack.c.b16 %v140, %v138
  %v165 = vpack.c.b16 %v141, %v139
  %v166 = vpack.c.b16 %v144, %v142
  %v167 = vpack.c.b16 %v145, %v143
  %v168 = vpack.c.b16 %v148, %v146
  %v169 = vpack.c.b16 %v149, %v147
  %v170 = vpack.c.b16 %v152, %v150
  %v171 = vpack.c.b16 %v153, %v151
  %v172 = vpack.c.b16 %v156, %v154
  %v173 = vpack.c.b16 %v157, %v155
  %190 = vmatpush.bf16.msra.mxu0 %v172
  %191 = vmatpush.bf16.msra.mxu0 %v170
  %192 = vmatpush.bf16.msra.mxu0 %v168
  %193 = vmatpush.bf16.msra.mxu0 %v166
  %194 = vmatpush.bf16.msra.mxu0 %v164
  %195 = vmatpush.bf16.msra.mxu0 %v162
  %196 = vmatpush.bf16.msra.mxu0 %v160
  %197 = vmatpush.bf16.msra.mxu0 %v158
  %198 = vmatmul.bf16.gmra.mxu0 %v102
  %v199 = vpop.f32.mrf.mxu0
  %v200 = vadd.f32 %v49, %v199
  %v201 = vpop.f32.mrf.mxu0
  %v202 = vadd.f32 %v54, %v201
  %203 = vmatmul.bf16.gmra.mxu0 %v103
  %v204 = vpop.f32.mrf.mxu0
  %v205 = vadd.f32 %v59, %v204
  %v206 = vpop.f32.mrf.mxu0
  %v207 = vadd.f32 %v64, %v206
  %208 = vmatmul.bf16.gmra.mxu0 %v104
  %v209 = vpop.f32.mrf.mxu0
  %v210 = vadd.f32 %v69, %v209
  %v211 = vpop.f32.mrf.mxu0
  %v212 = vadd.f32 %v74, %v211
  %213 = vmatmul.bf16.gmra.mxu0 %v105
  %v214 = vpop.f32.mrf.mxu0
  %v215 = vadd.f32 %v79, %v214
  %v216 = vpop.f32.mrf.mxu0
  %v217 = vadd.f32 %v84, %v216
  %218 = vdwg.mxu0
  %219 = vmatpush.bf16.msra.mxu0 %v173
  %220 = vmatpush.bf16.msra.mxu0 %v171
  %221 = vmatpush.bf16.msra.mxu0 %v169
  %222 = vmatpush.bf16.msra.mxu0 %v167
  %223 = vmatpush.bf16.msra.mxu0 %v165
  %224 = vmatpush.bf16.msra.mxu0 %v163
  %225 = vmatpush.bf16.msra.mxu0 %v161
  %226 = vmatpush.bf16.msra.mxu0 %v159
  %227 = vmatmul.bf16.gmra.mxu0 %v102
  %v228 = vpop.f32.mrf.mxu0
  %v229 = vadd.f32 %v49, %v228
  %v230 = vpop.f32.mrf.mxu0
  %v231 = vadd.f32 %v54, %v230
  %232 = vmatmul.bf16.gmra.mxu0 %v103
  %v233 = vpop.f32.mrf.mxu0
  %v234 = vadd.f32 %v59, %v233
  %v235 = vpop.f32.mrf.mxu0
  %v236 = vadd.f32 %v64, %v235
  %237 = vmatmul.bf16.gmra.mxu0 %v104
  %v238 = vpop.f32.mrf.mxu0
  %v239 = vadd.f32 %v69, %v238
  %v240 = vpop.f32.mrf.mxu0
  %v241 = vadd.f32 %v74, %v240
  %242 = vmatmul.bf16.gmra.mxu0 %v105
  %v243 = vpop.f32.mrf.mxu0
  %v244 = vadd.f32 %v79, %v243
  %v245 = vpop.f32.mrf.mxu0
  %v246 = vadd.f32 %v84, %v245
  %247 = vdwg.mxu0
  %v248 = vmax.f32 %v200, 0.0
  %v249 = vmax.f32 %v229, 0.0
  %v250 = vmax.f32 %v202, 0.0
  %v251 = vmax.f32 %v231, 0.0
  %v252 = vmax.f32 %v205, 0.0
  %v253 = vmax.f32 %v234, 0.0
  %v254 = vmax.f32 %v207, 0.0
  %v255 = vmax.f32 %v236, 0.0
  %v256 = vmax.f32 %v210, 0.0
  %v257 = vmax.f32 %v239, 0.0
  %v258 = vmax.f32 %v212, 0.0
  %v259 = vmax.f32 %v241, 0.0
  %v260 = vmax.f32 %v215, 0.0
  %v261 = vmax.f32 %v244, 0.0
  %v262 = vmax.f32 %v217, 0.0
  %v263 = vmax.f32 %v246, 0.0
  %264 = vst [vmem:[%s3] sm:$0xff] %v248
  %vm265 = vcmask 588800
  %266 = vst.msk [vmem:[%s3 + $0x8] sm:$0xff] %vm265, %v249
  %267 = vst [vmem:[%s3 + $0x10] sm:$0xff] %v250
  %268 = vst.msk [vmem:[%s3 + $0x18] sm:$0xff] %vm265, %v251
  %269 = vst [vmem:[%s3 + $0x20] sm:$0xff] %v252
  %270 = vst.msk [vmem:[%s3 + $0x28] sm:$0xff] %vm265, %v253
  %271 = vst [vmem:[%s3 + $0x30] sm:$0xff] %v254
  %272 = vst.msk [vmem:[%s3 + $0x38] sm:$0xff] %vm265, %v255
  %273 = vst [vmem:[%s3 + $0x40] sm:$0xff] %v256
  %274 = vst.msk [vmem:[%s3 + $0x48] sm:$0xff] %vm265, %v257
  %275 = vst [vmem:[%s3 + $0x50] sm:$0xff] %v258
  %276 = vst.msk [vmem:[%s3 + $0x58] sm:$0xff] %vm265, %v259
  %277 = vst [vmem:[%s3 + $0x60] sm:$0xff] %v260
  %278 = vst.msk [vmem:[%s3 + $0x68] sm:$0xff] %vm265, %v261
  %279 = vst [vmem:[%s3 + $0x70] sm:$0xff] %v262
  %280 = vst.msk [vmem:[%s3 + $0x78] sm:$0xff] %vm265, %v263
  // Predicated region
  $region14: #{vae_forward.12} parent=0 // pred_check
    _
  $region15: #{vae_forward.12} parent=0 // pred_check_branch
    %282 = sbr.rel (0) target = $region17
  $region16: #{vae_forward.12} parent=0 // pred_region
    _
  $region17: #{vae_forward.12} parent=0 // pred_fallthru
    _
  // Predicated region
  $region18: #{vae_forward.12} parent=0 // pred_check
    _
  $region19: #{vae_forward.12} parent=0 // pred_check_branch
    %284 = sbr.rel (0) target = $region21
  $region20: #{vae_forward.12} parent=0 // pred_region
    _
  $region21: #{vae_forward.12} parent=0 // pred_fallthru
    _

// kernel: vae_forward.13
$region0: #{vae_forward.13}
  #allocation0 [shape = 'u32[]', space=smem, size = 0x4, offset = 0x4, fixed_abs, tag = 'smem constant byte address 0x4 - core index']
  #allocation1 [shape = 'u32[72,128]{1,0:T(1,128)}', space=vmem, size = 0x9000, scoped, tag = 'internal scratch']
  %s0 = inlined_call_operand.vmem [shape: bf16[64,64], index: 0, kind: input, shape index: {}]
  %s1 = inlined_call_operand.vmem [shape: bf16[64,882], index: 1, kind: input, shape index: {}]
  %s2 = inlined_call_operand.vmem [shape: f32[64,1], index: 2, kind: input, shape index: {}]
  %s3 = inlined_call_operand.vmem [shape: f32[64,882], index: 3, kind: output, shape index: {}]
  %s4 = sld [smem:[#allocation0]]
  $region22: #{vae_forward.13} parent=0
    _
  %s6 = ssub.s32 1, %s4
  %s7 = scalar_select 0, %s6, %s4
  // Predicated region
  $region2: #{vae_forward.13} parent=0 // pred_check
    _
  $region3: #{vae_forward.13} parent=0 // pred_check_branch
    %9 = sbr.rel (0) target = $region5
  $region4: #{vae_forward.13} parent=0 // pred_region
    _
  $region5: #{vae_forward.13} parent=0 // pred_fallthru
    _
  // Predicated region
  $region6: #{vae_forward.13} parent=0 // pred_check
    _
  $region7: #{vae_forward.13} parent=0 // pred_check_branch
    %11 = sbr.rel (0) target = $region9
  $region8: #{vae_forward.13} parent=0 // pred_region
    _
  $region9: #{vae_forward.13} parent=0 // pred_fallthru
    _
  // Predicated region
  $region10: #{vae_forward.13} parent=0 // pred_check
    _
  $region11: #{vae_forward.13} parent=0 // pred_check_branch
    %13 = sbr.rel (0) target = $region13
  $region12: #{vae_forward.13} parent=0 // pred_region
    _
  $region13: #{vae_forward.13} parent=0 // pred_fallthru
    _
  %v15 = vld [vmem:[%s0] sm:$0xf]
  %v16 = vld [vmem:[%s0 + $0x4] sm:$0xf]
  %v17 = vld [vmem:[%s0 + $0x8] sm:$0xf]
  %v18 = vld [vmem:[%s0 + $0xc] sm:$0xf]
  %v19 = vld [vmem:[%s0 + $0x10] sm:$0xf]
  %v20 = vld [vmem:[%s0 + $0x14] sm:$0xf]
  %v21 = vld [vmem:[%s0 + $0x18] sm:$0xf]
  %v22 = vld [vmem:[%s0 + $0x1c] sm:$0xf]
  %v23 = vld [vmem:[%s1] sm:$0xff]
  %v24 = vld [vmem:[%s1 + $0x8] sm:$0xff]
  %v25 = vld [vmem:[%s1 + $0x10] sm:$0xff]
  %v26 = vld [vmem:[%s1 + $0x18] sm:$0xf]
  %v27 = vld [vmem:[%s1 + $0x1c] sm:$0xff]
  %v28 = vld [vmem:[%s1 + $0x24] sm:$0xff]
  %v29 = vld [vmem:[%s1 + $0x2c] sm:$0xff]
  %v30 = vld [vmem:[%s1 + $0x34] sm:$0xf]
  %v31 = vld [vmem:[%s1 + $0x38] sm:$0xff]
  %v32 = vld [vmem:[%s1 + $0x40] sm:$0xff]
  %v33 = vld [vmem:[%s1 + $0x48] sm:$0xff]
  %v34 = vld [vmem:[%s1 + $0x50] sm:$0xf]
  %v35 = vld [vmem:[%s1 + $0x54] sm:$0xff]
  %v36 = vld [vmem:[%s1 + $0x5c] sm:$0xff]
  %v37 = vld [vmem:[%s1 + $0x64] sm:$0xff]
  %v38 = vld [vmem:[%s1 + $0x6c] sm:$0xf]
  %v39 = vld [vmem:[%s1 + $0x70] sm:$0xff]
  %v40 = vld [vmem:[%s1 + $0x78] sm:$0xff]
  %v41 = vld [vmem:[%s1 + $0x80] sm:$0xff]
  %v42 = vld [vmem:[%s1 + $0x88] sm:$0xf]
  %v43 = vld [vmem:[%s1 + $0x8c] sm:$0xff]
  %v44 = vld [vmem:[%s1 + $0x94] sm:$0xff]
  %v45 = vld [vmem:[%s1 + $0x9c] sm:$0xff]
  %v46 = vld [vmem:[%s1 + $0xa4] sm:$0xf]
  %v47 = vld [vmem:[%s1 + $0xa8] sm:$0xff]
  %v48 = vld [vmem:[%s1 + $0xb0] sm:$0xff]
  %v49 = vld [vmem:[%s1 + $0xb8] sm:$0xff]
  %v50 = vld [vmem:[%s1 + $0xc0] sm:$0xf]
  %v51 = vld [vmem:[%s1 + $0xc4] sm:$0xff]
  %v52 = vld [vmem:[%s1 + $0xcc] sm:$0xff]
  %v53 = vld [vmem:[%s1 + $0xd4] sm:$0xff]
  %v54 = vld [vmem:[%s1 + $0xdc] sm:$0xf]
  %v55 = vld [vmem:[%s2] sm:$0xff]
  %v56 = vld [vmem:[%s2 + $0x8] sm:$0xff]
  %v57 = vld [vmem:[%s2 + $0x10] sm:$0xff]
  %v58 = vld [vmem:[%s2 + $0x18] sm:$0xff]
  %v59 = vld [vmem:[%s2 + $0x20] sm:$0xff]
  %v60 = vld [vmem:[%s2 + $0x28] sm:$0xff]
  %v61 = vld [vmem:[%s2 + $0x30] sm:$0xff]
  %v62 = vld [vmem:[%s2 + $0x38] sm:$0xff]
  %64 = vset.pattern.permute.xlu0 0
  %65 = vperm.xlu0 %64, %v55
  %v66 = vpop.permute.xlu0 %65
  %69 = vset.pattern.permute.xlu0 0
  %70 = vperm.xlu0 %69, %v56
  %v71 = vpop.permute.xlu0 %70
  %74 = vset.pattern.permute.xlu0 0
  %75 = vperm.xlu0 %74, %v57
  %v76 = vpop.permute.xlu0 %75
  %79 = vset.pattern.permute.xlu0 0
  %80 = vperm.xlu0 %79, %v58
  %v81 = vpop.permute.xlu0 %80
  %84 = vset.pattern.permute.xlu0 0
  %85 = vperm.xlu0 %84, %v59
  %v86 = vpop.permute.xlu0 %85
  %89 = vset.pattern.permute.xlu0 0
  %90 = vperm.xlu0 %89, %v60
  %v91 = vpop.permute.xlu0 %90
  %94 = vset.pattern.permute.xlu0 0
  %95 = vperm.xlu0 %94, %v61
  %v96 = vpop.permute.xlu0 %95
  %99 = vset.pattern.permute.xlu0 0
  %100 = vperm.xlu0 %99, %v62
  %v101 = vpop.permute.xlu0 %100
  %v111 = vunpack.c.l.b16 %v15
  %v112 = vunpack.c.l.b16 %v16
  %v113 = vunpack.c.l.b16 %v17
  %v114 = vunpack.c.l.b16 %v18
  %v115 = vunpack.c.l.b16 %v19
  %v116 = vunpack.c.l.b16 %v20
  %v117 = vunpack.c.l.b16 %v21
  %v118 = vunpack.c.l.b16 %v22
  %v119 = vpack.c.b16 %v112, %v111
  %v120 = vpack.c.b16 %v114, %v113
  %v121 = vpack.c.b16 %v116, %v115
  %v122 = vpack.c.b16 %v118, %v117
  %v155 = vunpack.c.l.b16 %v23
  %v156 = vunpack.c.h.b16 %v23
  %v157 = vunpack.c.l.b16 %v24
  %v158 = vunpack.c.h.b16 %v24
  %v159 = vunpack.c.l.b16 %v25
  %v160 = vunpack.c.h.b16 %v25
  %v161 = vunpack.c.l.b16 %v26
  %v162 = vunpack.c.l.b16 %v27
  %v163 = vunpack.c.h.b16 %v27
  %v164 = vunpack.c.l.b16 %v28
  %v165 = vunpack.c.h.b16 %v28
  %v166 = vunpack.c.l.b16 %v29
  %v167 = vunpack.c.h.b16 %v29
  %v168 = vunpack.c.l.b16 %v30
  %v169 = vunpack.c.l.b16 %v31
  %v170 = vunpack.c.h.b16 %v31
  %v171 = vunpack.c.l.b16 %v32
  %v172 = vunpack.c.h.b16 %v32
  %v173 = vunpack.c.l.b16 %v33
  %v174 = vunpack.c.h.b16 %v33
  %v175 = vunpack.c.l.b16 %v34
  %v176 = vunpack.c.l.b16 %v35
  %v177 = vunpack.c.h.b16 %v35
  %v178 = vunpack.c.l.b16 %v36
  %v179 = vunpack.c.h.b16 %v36
  %v180 = vunpack.c.l.b16 %v37
  %v181 = vunpack.c.h.b16 %v37
  %v182 = vunpack.c.l.b16 %v38
  %v183 = vunpack.c.l.b16 %v39
  %v184 = vunpack.c.h.b16 %v39
  %v185 = vunpack.c.l.b16 %v40
  %v186 = vunpack.c.h.b16 %v40
  %v187 = vunpack.c.l.b16 %v41
  %v188 = vunpack.c.h.b16 %v41
  %v189 = vunpack.c.l.b16 %v42
  %v190 = vunpack.c.l.b16 %v43
  %v191 = vunpack.c.h.b16 %v43
  %v192 = vunpack.c.l.b16 %v44
  %v193 = vunpack.c.h.b16 %v44
  %v194 = vunpack.c.l.b16 %v45
  %v195 = vunpack.c.h.b16 %v45
  %v196 = vunpack.c.l.b16 %v46
  %v197 = vunpack.c.l.b16 %v47
  %v198 = vunpack.c.h.b16 %v47
  %v199 = vunpack.c.l.b16 %v48
  %v200 = vunpack.c.h.b16 %v48
  %v201 = vunpack.c.l.b16 %v49
  %v202 = vunpack.c.h.b16 %v49
  %v203 = vunpack.c.l.b16 %v50
  %v204 = vunpack.c.l.b16 %v51
  %v205 = vunpack.c.h.b16 %v51
  %v206 = vunpack.c.l.b16 %v52
  %v207 = vunpack.c.h.b16 %v52
  %v208 = vunpack.c.l.b16 %v53
  %v209 = vunpack.c.h.b16 %v53
  %v210 = vunpack.c.l.b16 %v54
  %v211 = vpack.c.b16 %v162, %v155
  %v212 = vpack.c.b16 %v163, %v156
  %v213 = vpack.c.b16 %v164, %v157
  %v214 = vpack.c.b16 %v165, %v158
  %v215 = vpack.c.b16 %v166, %v159
  %v216 = vpack.c.b16 %v167, %v160
  %v217 = vpack.c.b16 %v168, %v161
  %v218 = vpack.c.b16 %v176, %v169
  %v219 = vpack.c.b16 %v177, %v170
  %v220 = vpack.c.b16 %v178, %v171
  %v221 = vpack.c.b16 %v179, %v172
  %v222 = vpack.c.b16 %v180, %v173
  %v223 = vpack.c.b16 %v181, %v174
  %v224 = vpack.c.b16 %v182, %v175
  %v225 = vpack.c.b16 %v190, %v183
  %v226 = vpack.c.b16 %v191, %v184
  %v227 = vpack.c.b16 %v192, %v185
  %v228 = vpack.c.b16 %v193, %v186
  %v229 = vpack.c.b16 %v194, %v187
  %v230 = vpack.c.b16 %v195, %v188
  %v231 = vpack.c.b16 %v196, %v189
  %v232 = vpack.c.b16 %v204, %v197
  %v233 = vpack.c.b16 %v205, %v198
  %v234 = vpack.c.b16 %v206, %v199
  %v235 = vpack.c.b16 %v207, %v200
  %v236 = vpack.c.b16 %v208, %v201
  %v237 = vpack.c.b16 %v209, %v202
  %v238 = vpack.c.b16 %v210, %v203
  %vm267 = vcmask 523264
  %v269 = vsel %vm267, %v119, 0
  %v272 = vsel %vm267, %v120, 0
  %v275 = vsel %vm267, %v121, 0
  %v278 = vsel %vm267, %v122, 0
  %280 = vmatpush.bf16.msra.mxu0 0
  %281 = vmatpush.bf16.msra.mxu0 0
  %282 = vmatpush.bf16.msra.mxu0 0
  %283 = vmatpush.bf16.msra.mxu0 0
  %284 = vmatpush.bf16.msra.mxu0 %v232
  %285 = vmatpush.bf16.msra.mxu0 %v225
  %286 = vmatpush.bf16.msra.mxu0 %v218
  %287 = vmatpush.bf16.msra.mxu0 %v211
  %288 = vmatmul.bf16.gmra.mxu0 %v269
  %v289 = vpop.f32.mrf.mxu0
  %v290 = vadd.f32 %v66, %v289
  %v291 = vpop.f32.mrf.mxu0
  %v292 = vadd.f32 %v71, %v291
  %293 = vmatmul.bf16.gmra.mxu0 %v272
  %v294 = vpop.f32.mrf.mxu0
  %v295 = vadd.f32 %v76, %v294
  %v296 = vpop.f32.mrf.mxu0
  %v297 = vadd.f32 %v81, %v296
  %298 = vmatmul.bf16.gmra.mxu0 %v275
  %v299 = vpop.f32.mrf.mxu0
  %v300 = vadd.f32 %v86, %v299
  %v301 = vpop.f32.mrf.mxu0
  %v302 = vadd.f32 %v91, %v301
  %303 = vmatmul.bf16.gmra.mxu0 %v278
  %v304 = vpop.f32.mrf.mxu0
  %v305 = vadd.f32 %v96, %v304
  %v306 = vpop.f32.mrf.mxu0
  %v307 = vadd.f32 %v101, %v306
  %308 = vdwg.mxu0
  %309 = vmatpush.bf16.msra.mxu0 0
  %310 = vmatpush.bf16.msra.mxu0 0
  %311 = vmatpush.bf16.msra.mxu0 0
  %312 = vmatpush.bf16.msra.mxu0 0
  %313 = vmatpush.bf16.msra.mxu0 %v233
  %314 = vmatpush.bf16.msra.mxu0 %v226
  %315 = vmatpush.bf16.msra.mxu0 %v219
  %316 = vmatpush.bf16.msra.mxu0 %v212
  %317 = vmatmul.bf16.gmra.mxu0 %v269
  %v318 = vpop.f32.mrf.mxu0
  %v319 = vadd.f32 %v66, %v318
  %v320 = vpop.f32.mrf.mxu0
  %v321 = vadd.f32 %v71, %v320
  %322 = vmatmul.bf16.gmra.mxu0 %v272
  %v323 = vpop.f32.mrf.mxu0
  %v324 = vadd.f32 %v76, %v323
  %v325 = vpop.f32.mrf.mxu0
  %v326 = vadd.f32 %v81, %v325
  %327 = vmatmul.bf16.gmra.mxu0 %v275
  %v328 = vpop.f32.mrf.mxu0
  %v329 = vadd.f32 %v86, %v328
  %v330 = vpop.f32.mrf.mxu0
  %v331 = vadd.f32 %v91, %v330
  %332 = vmatmul.bf16.gmra.mxu0 %v278
  %v333 = vpop.f32.mrf.mxu0
  %v334 = vadd.f32 %v96, %v333
  %v335 = vpop.f32.mrf.mxu0
  %v336 = vadd.f32 %v101, %v335
  %337 = vdwg.mxu0
  %338 = vmatpush.bf16.msra.mxu0 0
  %339 = vmatpush.bf16.msra.mxu0 0
  %340 = vmatpush.bf16.msra.mxu0 0
  %341 = vmatpush.bf16.msra.mxu0 0
  %342 = vmatpush.bf16.msra.mxu0 %v234
  %343 = vmatpush.bf16.msra.mxu0 %v227
  %344 = vmatpush.bf16.msra.mxu0 %v220
  %345 = vmatpush.bf16.msra.mxu0 %v213
  %346 = vmatmul.bf16.gmra.mxu0 %v269
  %v347 = vpop.f32.mrf.mxu0
  %v348 = vadd.f32 %v66, %v347
  %v349 = vpop.f32.mrf.mxu0
  %v350 = vadd.f32 %v71, %v349
  %351 = vmatmul.bf16.gmra.mxu0 %v272
  %v352 = vpop.f32.mrf.mxu0
  %v353 = vadd.f32 %v76, %v352
  %v354 = vpop.f32.mrf.mxu0
  %v355 = vadd.f32 %v81, %v354
  %356 = vmatmul.bf16.gmra.mxu0 %v275
  %v357 = vpop.f32.mrf.mxu0
  %v358 = vadd.f32 %v86, %v357
  %v359 = vpop.f32.mrf.mxu0
  %v360 = vadd.f32 %v91, %v359
  %361 = vmatmul.bf16.gmra.mxu0 %v278
  %v362 = vpop.f32.mrf.mxu0
  %v363 = vadd.f32 %v96, %v362
  %v364 = vpop.f32.mrf.mxu0
  %v365 = vadd.f32 %v101, %v364
  %366 = vdwg.mxu0
  %367 = vmatpush.bf16.msra.mxu0 0
  %368 = vmatpush.bf16.msra.mxu0 0
  %369 = vmatpush.bf16.msra.mxu0 0
  %370 = vmatpush.bf16.msra.mxu0 0
  %371 = vmatpush.bf16.msra.mxu0 %v235
  %372 = vmatpush.bf16.msra.mxu0 %v228
  %373 = vmatpush.bf16.msra.mxu0 %v221
  %374 = vmatpush.bf16.msra.mxu0 %v214
  %375 = vmatmul.bf16.gmra.mxu0 %v269
  %v376 = vpop.f32.mrf.mxu0
  %v377 = vadd.f32 %v66, %v376
  %v378 = vpop.f32.mrf.mxu0
  %v379 = vadd.f32 %v71, %v378
  %380 = vmatmul.bf16.gmra.mxu0 %v272
  %v381 = vpop.f32.mrf.mxu0
  %v382 = vadd.f32 %v76, %v381
  %v383 = vpop.f32.mrf.mxu0
  %v384 = vadd.f32 %v81, %v383
  %385 = vmatmul.bf16.gmra.mxu0 %v275
  %v386 = vpop.f32.mrf.mxu0
  %v387 = vadd.f32 %v86, %v386
  %v388 = vpop.f32.mrf.mxu0
  %v389 = vadd.f32 %v91, %v388
  %390 = vmatmul.bf16.gmra.mxu0 %v278
  %v391 = vpop.f32.mrf.mxu0
  %v392 = vadd.f32 %v96, %v391
  %v393 = vpop.f32.mrf.mxu0
  %v394 = vadd.f32 %v101, %v393
  %395 = vdwg.mxu0
  %396 = vmatpush.bf16.msra.mxu0 0
  %397 = vmatpush.bf16.msra.mxu0 0
  %398 = vmatpush.bf16.msra.mxu0 0
  %399 = vmatpush.bf16.msra.mxu0 0
  %400 = vmatpush.bf16.msra.mxu0 %v236
  %401 = vmatpush.bf16.msra.mxu0 %v229
  %402 = vmatpush.bf16.msra.mxu0 %v222
  %403 = vmatpush.bf16.msra.mxu0 %v215
  %404 = vmatmul.bf16.gmra.mxu0 %v269
  %v405 = vpop.f32.mrf.mxu0
  %v406 = vadd.f32 %v66, %v405
  %v407 = vpop.f32.mrf.mxu0
  %v408 = vadd.f32 %v71, %v407
  %409 = vmatmul.bf16.gmra.mxu0 %v272
  %v410 = vpop.f32.mrf.mxu0
  %v411 = vadd.f32 %v76, %v410
  %v412 = vpop.f32.mrf.mxu0
  %v413 = vadd.f32 %v81, %v412
  %414 = vmatmul.bf16.gmra.mxu0 %v275
  %v415 = vpop.f32.mrf.mxu0
  %v416 = vadd.f32 %v86, %v415
  %v417 = vpop.f32.mrf.mxu0
  %v418 = vadd.f32 %v91, %v417
  %419 = vmatmul.bf16.gmra.mxu0 %v278
  %v420 = vpop.f32.mrf.mxu0
  %v421 = vadd.f32 %v96, %v420
  %v422 = vpop.f32.mrf.mxu0
  %v423 = vadd.f32 %v101, %v422
  %424 = vdwg.mxu0
  %425 = vmatpush.bf16.msra.mxu0 0
  %426 = vmatpush.bf16.msra.mxu0 0
  %427 = vmatpush.bf16.msra.mxu0 0
  %428 = vmatpush.bf16.msra.mxu0 0
  %429 = vmatpush.bf16.msra.mxu0 %v237
  %430 = vmatpush.bf16.msra.mxu0 %v230
  %431 = vmatpush.bf16.msra.mxu0 %v223
  %432 = vmatpush.bf16.msra.mxu0 %v216
  %433 = vmatmul.bf16.gmra.mxu0 %v269
  %v434 = vpop.f32.mrf.mxu0
  %v435 = vadd.f32 %v66, %v434
  %v436 = vpop.f32.mrf.mxu0
  %v437 = vadd.f32 %v71, %v436
  %438 = vmatmul.bf16.gmra.mxu0 %v272
  %v439 = vpop.f32.mrf.mxu0
  %v440 = vadd.f32 %v76, %v439
  %v441 = vpop.f32.mrf.mxu0
  %v442 = vadd.f32 %v81, %v441
  %443 = vmatmul.bf16.gmra.mxu0 %v275
  %v444 = vpop.f32.mrf.mxu0
  %v445 = vadd.f32 %v86, %v444
  %v446 = vpop.f32.mrf.mxu0
  %v447 = vadd.f32 %v91, %v446
  %448 = vmatmul.bf16.gmra.mxu0 %v278
  %v449 = vpop.f32.mrf.mxu0
  %v450 = vadd.f32 %v96, %v449
  %v451 = vpop.f32.mrf.mxu0
  %v452 = vadd.f32 %v101, %v451
  %453 = vdwg.mxu0
  %454 = vmatpush.bf16.msra.mxu0 0
  %455 = vmatpush.bf16.msra.mxu0 0
  %456 = vmatpush.bf16.msra.mxu0 0
  %457 = vmatpush.bf16.msra.mxu0 0
  %458 = vmatpush.bf16.msra.mxu0 %v238
  %459 = vmatpush.bf16.msra.mxu0 %v231
  %460 = vmatpush.bf16.msra.mxu0 %v224
  %461 = vmatpush.bf16.msra.mxu0 %v217
  %462 = vmatmul.bf16.gmra.mxu0 %v269
  %v463 = vpop.f32.mrf.mxu0
  %v464 = vadd.f32 %v66, %v463
  %v465 = vpop.f32.mrf.mxu0
  %v466 = vadd.f32 %v71, %v465
  %467 = vmatmul.bf16.gmra.mxu0 %v272
  %v468 = vpop.f32.mrf.mxu0
  %v469 = vadd.f32 %v76, %v468
  %v470 = vpop.f32.mrf.mxu0
  %v471 = vadd.f32 %v81, %v470
  %472 = vmatmul.bf16.gmra.mxu0 %v275
  %v473 = vpop.f32.mrf.mxu0
  %v474 = vadd.f32 %v86, %v473
  %v475 = vpop.f32.mrf.mxu0
  %v476 = vadd.f32 %v91, %v475
  %477 = vmatmul.bf16.gmra.mxu0 %v278
  %v478 = vpop.f32.mrf.mxu0
  %v479 = vadd.f32 %v96, %v478
  %v480 = vpop.f32.mrf.mxu0
  %v481 = vadd.f32 %v101, %v480
  %482 = vdwg.mxu0
  %v483 = vsub.f32 0.0, %v290
  %v484 = vsub.f32 0.0, %v319
  %v485 = vsub.f32 0.0, %v348
  %v486 = vsub.f32 0.0, %v377
  %v487 = vsub.f32 0.0, %v406
  %v488 = vsub.f32 0.0, %v435
  %v489 = vsub.f32 0.0, %v464
  %v490 = vsub.f32 0.0, %v292
  %v491 = vsub.f32 0.0, %v321
  %v492 = vsub.f32 0.0, %v350
  %v493 = vsub.f32 0.0, %v379
  %v494 = vsub.f32 0.0, %v408
  %v495 = vsub.f32 0.0, %v437
  %v496 = vsub.f32 0.0, %v466
  %v497 = vsub.f32 0.0, %v295
  %v498 = vsub.f32 0.0, %v324
  %v499 = vsub.f32 0.0, %v353
  %v500 = vsub.f32 0.0, %v382
  %v501 = vsub.f32 0.0, %v411
  %v502 = vsub.f32 0.0, %v440
  %v503 = vsub.f32 0.0, %v469
  %v504 = vsub.f32 0.0, %v297
  %v505 = vsub.f32 0.0, %v326
  %v506 = vsub.f32 0.0, %v355
  %v507 = vsub.f32 0.0, %v384
  %v508 = vsub.f32 0.0, %v413
  %v509 = vsub.f32 0.0, %v442
  %v510 = vsub.f32 0.0, %v471
  %v511 = vsub.f32 0.0, %v300
  %v512 = vsub.f32 0.0, %v329
  %v513 = vsub.f32 0.0, %v358
  %v514 = vsub.f32 0.0, %v387
  %v515 = vsub.f32 0.0, %v416
  %v516 = vsub.f32 0.0, %v445
  %v517 = vsub.f32 0.0, %v474
  %v518 = vsub.f32 0.0, %v302
  %v519 = vsub.f32 0.0, %v331
  %v520 = vsub.f32 0.0, %v360
  %v521 = vsub.f32 0.0, %v389
  %v522 = vsub.f32 0.0, %v418
  %v523 = vsub.f32 0.0, %v447
  %v524 = vsub.f32 0.0, %v476
  %v525 = vsub.f32 0.0, %v305
  %v526 = vsub.f32 0.0, %v334
  %v527 = vsub.f32 0.0, %v363
  %v528 = vsub.f32 0.0, %v392
  %v529 = vsub.f32 0.0, %v421
  %v530 = vsub.f32 0.0, %v450
  %v531 = vsub.f32 0.0, %v479
  %v532 = vsub.f32 0.0, %v307
  %v533 = vsub.f32 0.0, %v336
  %v534 = vsub.f32 0.0, %v365
  %v535 = vsub.f32 0.0, %v394
  %v536 = vsub.f32 0.0, %v423
  %v537 = vsub.f32 0.0, %v452
  %v538 = vsub.f32 0.0, %v481
  %v539 = vmul.f32 %v483, 1.442695
  %v540 = vpow.pop %v539
  %v541 = vmul.f32 %v484, 1.442695
  %v542 = vpow.pop %v541
  %v543 = vmul.f32 %v485, 1.442695
  %v544 = vpow.pop %v543
  %v545 = vmul.f32 %v486, 1.442695
  %v546 = vpow.pop %v545
  %v547 = vmul.f32 %v487, 1.442695
  %v548 = vpow.pop %v547
  %v549 = vmul.f32 %v488, 1.442695
  %v550 = vpow.pop %v549
  %v551 = vmul.f32 %v489, 1.442695
  %v552 = vpow.pop %v551
  %v553 = vmul.f32 %v490, 1.442695
  %v554 = vpow.pop %v553
  %v555 = vmul.f32 %v491, 1.442695
  %v556 = vpow.pop %v555
  %v557 = vmul.f32 %v492, 1.442695
  %v558 = vpow.pop %v557
  %v559 = vmul.f32 %v493, 1.442695
  %v560 = vpow.pop %v559
  %v561 = vmul.f32 %v494, 1.442695
  %v562 = vpow.pop %v561
  %v563 = vmul.f32 %v495, 1.442695
  %v564 = vpow.pop %v563
  %v565 = vmul.f32 %v496, 1.442695
  %v566 = vpow.pop %v565
  %v567 = vmul.f32 %v497, 1.442695
  %v568 = vpow.pop %v567
  %v569 = vmul.f32 %v498, 1.442695
  %v570 = vpow.pop %v569
  %v571 = vmul.f32 %v499, 1.442695
  %v572 = vpow.pop %v571
  %v573 = vmul.f32 %v500, 1.442695
  %v574 = vpow.pop %v573
  %v575 = vmul.f32 %v501, 1.442695
  %v576 = vpow.pop %v575
  %v577 = vmul.f32 %v502, 1.442695
  %v578 = vpow.pop %v577
  %v579 = vmul.f32 %v503, 1.442695
  %v580 = vpow.pop %v579
  %v581 = vmul.f32 %v504, 1.442695
  %v582 = vpow.pop %v581
  %v583 = vmul.f32 %v505, 1.442695
  %v584 = vpow.pop %v583
  %v585 = vmul.f32 %v506, 1.442695
  %v586 = vpow.pop %v585
  %v587 = vmul.f32 %v507, 1.442695
  %v588 = vpow.pop %v587
  %v589 = vmul.f32 %v508, 1.442695
  %v590 = vpow.pop %v589
  %v591 = vmul.f32 %v509, 1.442695
  %v592 = vpow.pop %v591
  %v593 = vmul.f32 %v510, 1.442695
  %v594 = vpow.pop %v593
  %v595 = vmul.f32 %v511, 1.442695
  %v596 = vpow.pop %v595
  %v597 = vmul.f32 %v512, 1.442695
  %v598 = vpow.pop %v597
  %v599 = vmul.f32 %v513, 1.442695
  %v600 = vpow.pop %v599
  %v601 = vmul.f32 %v514, 1.442695
  %v602 = vpow.pop %v601
  %v603 = vmul.f32 %v515, 1.442695
  %v604 = vpow.pop %v603
  %v605 = vmul.f32 %v516, 1.442695
  %v606 = vpow.pop %v605
  %v607 = vmul.f32 %v517, 1.442695
  %v608 = vpow.pop %v607
  %v609 = vmul.f32 %v518, 1.442695
  %v610 = vpow.pop %v609
  %v611 = vmul.f32 %v519, 1.442695
  %v612 = vpow.pop %v611
  %v613 = vmul.f32 %v520, 1.442695
  %v614 = vpow.pop %v613
  %v615 = vmul.f32 %v521, 1.442695
  %v616 = vpow.pop %v615
  %v617 = vmul.f32 %v522, 1.442695
  %v618 = vpow.pop %v617
  %v619 = vmul.f32 %v523, 1.442695
  %v620 = vpow.pop %v619
  %v621 = vmul.f32 %v524, 1.442695
  %v622 = vpow.pop %v621
  %v623 = vmul.f32 %v525, 1.442695
  %v624 = vpow.pop %v623
  %v625 = vmul.f32 %v526, 1.442695
  %v626 = vpow.pop %v625
  %v627 = vmul.f32 %v527, 1.442695
  %v628 = vpow.pop %v627
  %v629 = vmul.f32 %v528, 1.442695
  %v630 = vpow.pop %v629
  %v631 = vmul.f32 %v529, 1.442695
  %v632 = vpow.pop %v631
  %v633 = vmul.f32 %v530, 1.442695
  %v634 = vpow.pop %v633
  %v635 = vmul.f32 %v531, 1.442695
  %v636 = vpow.pop %v635
  %v637 = vmul.f32 %v532, 1.442695
  %v638 = vpow.pop %v637
  %v639 = vmul.f32 %v533, 1.442695
  %v640 = vpow.pop %v639
  %v641 = vmul.f32 %v534, 1.442695
  %v642 = vpow.pop %v641
  %v643 = vmul.f32 %v535, 1.442695
  %v644 = vpow.pop %v643
  %v645 = vmul.f32 %v536, 1.442695
  %v646 = vpow.pop %v645
  %v647 = vmul.f32 %v537, 1.442695
  %v648 = vpow.pop %v647
  %v649 = vmul.f32 %v538, 1.442695
  %v650 = vpow.pop %v649
  %v651 = vadd.f32 %v540, 1.0
  %v652 = vadd.f32 %v542, 1.0
  %v653 = vadd.f32 %v544, 1.0
  %v654 = vadd.f32 %v546, 1.0
  %v655 = vadd.f32 %v548, 1.0
  %v656 = vadd.f32 %v550, 1.0
  %v657 = vadd.f32 %v552, 1.0
  %v658 = vadd.f32 %v554, 1.0
  %v659 = vadd.f32 %v556, 1.0
  %v660 = vadd.f32 %v558, 1.0
  %v661 = vadd.f32 %v560, 1.0
  %v662 = vadd.f32 %v562, 1.0
  %v663 = vadd.f32 %v564, 1.0
  %v664 = vadd.f32 %v566, 1.0
  %v665 = vadd.f32 %v568, 1.0
  %v666 = vadd.f32 %v570, 1.0
  %v667 = vadd.f32 %v572, 1.0
  %v668 = vadd.f32 %v574, 1.0
  %v669 = vadd.f32 %v576, 1.0
  %v670 = vadd.f32 %v578, 1.0
  %v671 = vadd.f32 %v580, 1.0
  %v672 = vadd.f32 %v582, 1.0
  %v673 = vadd.f32 %v584, 1.0
  %v674 = vadd.f32 %v586, 1.0
  %v675 = vadd.f32 %v588, 1.0
  %v676 = vadd.f32 %v590, 1.0
  %v677 = vadd.f32 %v592, 1.0
  %v678 = vadd.f32 %v594, 1.0
  %v679 = vadd.f32 %v596, 1.0
  %v680 = vadd.f32 %v598, 1.0
  %v681 = vadd.f32 %v600, 1.0
  %v682 = vadd.f32 %v602, 1.0
  %v683 = vadd.f32 %v604, 1.0
  %v684 = vadd.f32 %v606, 1.0
  %v685 = vadd.f32 %v608, 1.0
  %v686 = vadd.f32 %v610, 1.0
  %v687 = vadd.f32 %v612, 1.0
  %v688 = vadd.f32 %v614, 1.0
  %v689 = vadd.f32 %v616, 1.0
  %v690 = vadd.f32 %v618, 1.0
  %v691 = vadd.f32 %v620, 1.0
  %v692 = vadd.f32 %v622, 1.0
  %v693 = vadd.f32 %v624, 1.0
  %v694 = vadd.f32 %v626, 1.0
  %v695 = vadd.f32 %v628, 1.0
  %v696 = vadd.f32 %v630, 1.0
  %v697 = vadd.f32 %v632, 1.0
  %v698 = vadd.f32 %v634, 1.0
  %v699 = vadd.f32 %v636, 1.0
  %v700 = vadd.f32 %v638, 1.0
  %v701 = vadd.f32 %v640, 1.0
  %v702 = vadd.f32 %v642, 1.0
  %v703 = vadd.f32 %v644, 1.0
  %v704 = vadd.f32 %v646, 1.0
  %v705 = vadd.f32 %v648, 1.0
  %v706 = vadd.f32 %v650, 1.0
  %v707 = vrcp.pop %v651
  %v708 = vmul.f32 %v651, %v707
  %v709 = vsub.f32 1.0, %v708
  %v710 = vmul.f32 %v707, %v709
  %v711 = vadd.f32 %v707, %v710
  %vm712 = vweird.f32 %v651
  %vm713 = vweird.f32 %v707
  %vm714 = vmor %vm712, %vm713
  %v715 = vsel %vm714, %v707, %v711
  %v716 = vand.u32 2147483647, %v651
  %vm717 = vcmp.eq.f32.partialorder %v716, 8.507059e+37
  %v718 = vand.u32 %v651, 2147483648
  %v719 = vor.u32 1.1754944e-38, %v718
  %v720 = vsel %vm717, %v719, %v715
  %v721 = vmul.f32 1.0, %v720
  %v722 = vrcp.pop %v652
  %v723 = vmul.f32 %v652, %v722
  %v724 = vsub.f32 1.0, %v723
  %v725 = vmul.f32 %v722, %v724
  %v726 = vadd.f32 %v722, %v725
  %vm727 = vweird.f32 %v652
  %vm728 = vweird.f32 %v722
  %vm729 = vmor %vm727, %vm728
  %v730 = vsel %vm729, %v722, %v726
  %v731 = vand.u32 2147483647, %v652
  %vm732 = vcmp.eq.f32.partialorder %v731, 8.507059e+37
  %v733 = vand.u32 %v652, 2147483648
  %v734 = vor.u32 1.1754944e-38, %v733
  %v735 = vsel %vm732, %v734, %v730
  %v736 = vmul.f32 1.0, %v735
  %v737 = vrcp.pop %v653
  %v738 = vmul.f32 %v653, %v737
  %v739 = vsub.f32 1.0, %v738
  %v740 = vmul.f32 %v737, %v739
  %v741 = vadd.f32 %v737, %v740
  %vm742 = vweird.f32 %v653
  %vm743 = vweird.f32 %v737
  %vm744 = vmor %vm742, %vm743
  %v745 = vsel %vm744, %v737, %v741
  %v746 = vand.u32 2147483647, %v653
  %vm747 = vcmp.eq.f32.partialorder %v746, 8.507059e+37
  %v748 = vand.u32 %v653, 2147483648
  %v749 = vor.u32 1.1754944e-38, %v748
  %v750 = vsel %vm747, %v749, %v745
  %v751 = vmul.f32 1.0, %v750
  %v752 = vrcp.pop %v654
  %v753 = vmul.f32 %v654, %v752
  %v754 = vsub.f32 1.0, %v753
  %v755 = vmul.f32 %v752, %v754
  %v756 = vadd.f32 %v752, %v755
  %vm757 = vweird.f32 %v654
  %vm758 = vweird.f32 %v752
  %vm759 = vmor %vm757, %vm758
  %v760 = vsel %vm759, %v752, %v756
  %v761 = vand.u32 2147483647, %v654
  %vm762 = vcmp.eq.f32.partialorder %v761, 8.507059e+37
  %v763 = vand.u32 %v654, 2147483648
  %v764 = vor.u32 1.1754944e-38, %v763
  %v765 = vsel %vm762, %v764, %v760
  %v766 = vmul.f32 1.0, %v765
  %v767 = vrcp.pop %v655
  %v768 = vmul.f32 %v655, %v767
  %v769 = vsub.f32 1.0, %v768
  %v770 = vmul.f32 %v767, %v769
  %v771 = vadd.f32 %v767, %v770
  %vm772 = vweird.f32 %v655
  %vm773 = vweird.f32 %v767
  %vm774 = vmor %vm772, %vm773
  %v775 = vsel %vm774, %v767, %v771
  %v776 = vand.u32 2147483647, %v655
  %vm777 = vcmp.eq.f32.partialorder %v776, 8.507059e+37
  %v778 = vand.u32 %v655, 2147483648
  %v779 = vor.u32 1.1754944e-38, %v778
  %v780 = vsel %vm777, %v779, %v775
  %v781 = vmul.f32 1.0, %v780
  %v782 = vrcp.pop %v656
  %v783 = vmul.f32 %v656, %v782
  %v784 = vsub.f32 1.0, %v783
  %v785 = vmul.f32 %v782, %v784
  %v786 = vadd.f32 %v782, %v785
  %vm787 = vweird.f32 %v656
  %vm788 = vweird.f32 %v782
  %vm789 = vmor %vm787, %vm788
  %v790 = vsel %vm789, %v782, %v786
  %v791 = vand.u32 2147483647, %v656
  %vm792 = vcmp.eq.f32.partialorder %v791, 8.507059e+37
  %v793 = vand.u32 %v656, 2147483648
  %v794 = vor.u32 1.1754944e-38, %v793
  %v795 = vsel %vm792, %v794, %v790
  %v796 = vmul.f32 1.0, %v795
  %v797 = vrcp.pop %v657
  %v798 = vmul.f32 %v657, %v797
  %v799 = vsub.f32 1.0, %v798
  %v800 = vmul.f32 %v797, %v799
  %v801 = vadd.f32 %v797, %v800
  %vm802 = vweird.f32 %v657
  %vm803 = vweird.f32 %v797
  %vm804 = vmor %vm802, %vm803
  %v805 = vsel %vm804, %v797, %v801
  %v806 = vand.u32 2147483647, %v657
  %vm807 = vcmp.eq.f32.partialorder %v806, 8.507059e+37
  %v808 = vand.u32 %v657, 2147483648
  %v809 = vor.u32 1.1754944e-38, %v808
  %v810 = vsel %vm807, %v809, %v805
  %v811 = vmul.f32 1.0, %v810
  %v812 = vrcp.pop %v658
  %v813 = vmul.f32 %v658, %v812
  %v814 = vsub.f32 1.0, %v813
  %v815 = vmul.f32 %v812, %v814
  %v816 = vadd.f32 %v812, %v815
  %vm817 = vweird.f32 %v658
  %vm818 = vweird.f32 %v812
  %vm819 = vmor %vm817, %vm818
  %v820 = vsel %vm819, %v812, %v816
  %v821 = vand.u32 2147483647, %v658
  %vm822 = vcmp.eq.f32.partialorder %v821, 8.507059e+37
  %v823 = vand.u32 %v658, 2147483648
  %v824 = vor.u32 1.1754944e-38, %v823
  %v825 = vsel %vm822, %v824, %v820
  %v826 = vmul.f32 1.0, %v825
  %v827 = vrcp.pop %v659
  %v828 = vmul.f32 %v659, %v827
  %v829 = vsub.f32 1.0, %v828
  %v830 = vmul.f32 %v827, %v829
  %v831 = vadd.f32 %v827, %v830
  %vm832 = vweird.f32 %v659
  %vm833 = vweird.f32 %v827
  %vm834 = vmor %vm832, %vm833
  %v835 = vsel %vm834, %v827, %v831
  %v836 = vand.u32 2147483647, %v659
  %vm837 = vcmp.eq.f32.partialorder %v836, 8.507059e+37
  %v838 = vand.u32 %v659, 2147483648
  %v839 = vor.u32 1.1754944e-38, %v838
  %v840 = vsel %vm837, %v839, %v835
  %v841 = vmul.f32 1.0, %v840
  %v842 = vrcp.pop %v660
  %v843 = vmul.f32 %v660, %v842
  %v844 = vsub.f32 1.0, %v843
  %v845 = vmul.f32 %v842, %v844
  %v846 = vadd.f32 %v842, %v845
  %vm847 = vweird.f32 %v660
  %vm848 = vweird.f32 %v842
  %vm849 = vmor %vm847, %vm848
  %v850 = vsel %vm849, %v842, %v846
  %v851 = vand.u32 2147483647, %v660
  %vm852 = vcmp.eq.f32.partialorder %v851, 8.507059e+37
  %v853 = vand.u32 %v660, 2147483648
  %v854 = vor.u32 1.1754944e-38, %v853
  %v855 = vsel %vm852, %v854, %v850
  %v856 = vmul.f32 1.0, %v855
  %v857 = vrcp.pop %v661
  %v858 = vmul.f32 %v661, %v857
  %v859 = vsub.f32 1.0, %v858
  %v860 = vmul.f32 %v857, %v859
  %v861 = vadd.f32 %v857, %v860
  %vm862 = vweird.f32 %v661
  %vm863 = vweird.f32 %v857
  %vm864 = vmor %vm862, %vm863
  %v865 = vsel %vm864, %v857, %v861
  %v866 = vand.u32 2147483647, %v661
  %vm867 = vcmp.eq.f32.partialorder %v866, 8.507059e+37
  %v868 = vand.u32 %v661, 2147483648
  %v869 = vor.u32 1.1754944e-38, %v868
  %v870 = vsel %vm867, %v869, %v865
  %v871 = vmul.f32 1.0, %v870
  %v872 = vrcp.pop %v662
  %v873 = vmul.f32 %v662, %v872
  %v874 = vsub.f32 1.0, %v873
  %v875 = vmul.f32 %v872, %v874
  %v876 = vadd.f32 %v872, %v875
  %vm877 = vweird.f32 %v662
  %vm878 = vweird.f32 %v872
  %vm879 = vmor %vm877, %vm878
  %v880 = vsel %vm879, %v872, %v876
  %v881 = vand.u32 2147483647, %v662
  %vm882 = vcmp.eq.f32.partialorder %v881, 8.507059e+37
  %v883 = vand.u32 %v662, 2147483648
  %v884 = vor.u32 1.1754944e-38, %v883
  %v885 = vsel %vm882, %v884, %v880
  %v886 = vmul.f32 1.0, %v885
  %v887 = vrcp.pop %v663
  %v888 = vmul.f32 %v663, %v887
  %v889 = vsub.f32 1.0, %v888
  %v890 = vmul.f32 %v887, %v889
  %v891 = vadd.f32 %v887, %v890
  %vm892 = vweird.f32 %v663
  %vm893 = vweird.f32 %v887
  %vm894 = vmor %vm892, %vm893
  %v895 = vsel %vm894, %v887, %v891
  %v896 = vand.u32 2147483647, %v663
  %vm897 = vcmp.eq.f32.partialorder %v896, 8.507059e+37
  %v898 = vand.u32 %v663, 2147483648
  %v899 = vor.u32 1.1754944e-38, %v898
  %v900 = vsel %vm897, %v899, %v895
  %v901 = vmul.f32 1.0, %v900
  %v902 = vrcp.pop %v664
  %v903 = vmul.f32 %v664, %v902
  %v904 = vsub.f32 1.0, %v903
  %v905 = vmul.f32 %v902, %v904
  %v906 = vadd.f32 %v902, %v905
  %vm907 = vweird.f32 %v664
  %vm908 = vweird.f32 %v902
  %vm909 = vmor %vm907, %vm908
  %v910 = vsel %vm909, %v902, %v906
  %v911 = vand.u32 2147483647, %v664
  %vm912 = vcmp.eq.f32.partialorder %v911, 8.507059e+37
  %v913 = vand.u32 %v664, 2147483648
  %v914 = vor.u32 1.1754944e-38, %v913
  %v915 = vsel %vm912, %v914, %v910
  %v916 = vmul.f32 1.0, %v915
  %v917 = vrcp.pop %v665
  %v918 = vmul.f32 %v665, %v917
  %v919 = vsub.f32 1.0, %v918
  %v920 = vmul.f32 %v917, %v919
  %v921 = vadd.f32 %v917, %v920
  %vm922 = vweird.f32 %v665
  %vm923 = vweird.f32 %v917
  %vm924 = vmor %vm922, %vm923
  %v925 = vsel %vm924, %v917, %v921
  %v926 = vand.u32 2147483647, %v665
  %vm927 = vcmp.eq.f32.partialorder %v926, 8.507059e+37
  %v928 = vand.u32 %v665, 2147483648
  %v929 = vor.u32 1.1754944e-38, %v928
  %v930 = vsel %vm927, %v929, %v925
  %v931 = vmul.f32 1.0, %v930
  %v932 = vrcp.pop %v666
  %v933 = vmul.f32 %v666, %v932
  %v934 = vsub.f32 1.0, %v933
  %v935 = vmul.f32 %v932, %v934
  %v936 = vadd.f32 %v932, %v935
  %vm937 = vweird.f32 %v666
  %vm938 = vweird.f32 %v932
  %vm939 = vmor %vm937, %vm938
  %v940 = vsel %vm939, %v932, %v936
  %v941 = vand.u32 2147483647, %v666
  %vm942 = vcmp.eq.f32.partialorder %v941, 8.507059e+37
  %v943 = vand.u32 %v666, 2147483648
  %v944 = vor.u32 1.1754944e-38, %v943
  %v945 = vsel %vm942, %v944, %v940
  %v946 = vmul.f32 1.0, %v945
  %v947 = vrcp.pop %v667
  %v948 = vmul.f32 %v667, %v947
  %v949 = vsub.f32 1.0, %v948
  %v950 = vmul.f32 %v947, %v949
  %v951 = vadd.f32 %v947, %v950
  %vm952 = vweird.f32 %v667
  %vm953 = vweird.f32 %v947
  %vm954 = vmor %vm952, %vm953
  %v955 = vsel %vm954, %v947, %v951
  %v956 = vand.u32 2147483647, %v667
  %vm957 = vcmp.eq.f32.partialorder %v956, 8.507059e+37
  %v958 = vand.u32 %v667, 2147483648
  %v959 = vor.u32 1.1754944e-38, %v958
  %v960 = vsel %vm957, %v959, %v955
  %v961 = vmul.f32 1.0, %v960
  %v962 = vrcp.pop %v668
  %v963 = vmul.f32 %v668, %v962
  %v964 = vsub.f32 1.0, %v963
  %v965 = vmul.f32 %v962, %v964
  %v966 = vadd.f32 %v962, %v965
  %vm967 = vweird.f32 %v668
  %vm968 = vweird.f32 %v962
  %vm969 = vmor %vm967, %vm968
  %v970 = vsel %vm969, %v962, %v966
  %v971 = vand.u32 2147483647, %v668
  %vm972 = vcmp.eq.f32.partialorder %v971, 8.507059e+37
  %v973 = vand.u32 %v668, 2147483648
  %v974 = vor.u32 1.1754944e-38, %v973
  %v975 = vsel %vm972, %v974, %v970
  %v976 = vmul.f32 1.0, %v975
  %v977 = vrcp.pop %v669
  %v978 = vmul.f32 %v669, %v977
  %v979 = vsub.f32 1.0, %v978
  %v980 = vmul.f32 %v977, %v979
  %v981 = vadd.f32 %v977, %v980
  %vm982 = vweird.f32 %v669
  %vm983 = vweird.f32 %v977
  %vm984 = vmor %vm982, %vm983
  %v985 = vsel %vm984, %v977, %v981
  %v986 = vand.u32 2147483647, %v669
  %vm987 = vcmp.eq.f32.partialorder %v986, 8.507059e+37
  %v988 = vand.u32 %v669, 2147483648
  %v989 = vor.u32 1.1754944e-38, %v988
  %v990 = vsel %vm987, %v989, %v985
  %v991 = vmul.f32 1.0, %v990
  %v992 = vrcp.pop %v670
  %v993 = vmul.f32 %v670, %v992
  %v994 = vsub.f32 1.0, %v993
  %v995 = vmul.f32 %v992, %v994
  %v996 = vadd.f32 %v992, %v995
  %vm997 = vweird.f32 %v670
  %vm998 = vweird.f32 %v992
  %vm999 = vmor %vm997, %vm998
  %v1000 = vsel %vm999, %v992, %v996
  %v1001 = vand.u32 2147483647, %v670
  %vm1002 = vcmp.eq.f32.partialorder %v1001, 8.507059e+37
  %v1003 = vand.u32 %v670, 2147483648
  %v1004 = vor.u32 1.1754944e-38, %v1003
  %v1005 = vsel %vm1002, %v1004, %v1000
  %v1006 = vmul.f32 1.0, %v1005
  %v1007 = vrcp.pop %v671
  %v1008 = vmul.f32 %v671, %v1007
  %v1009 = vsub.f32 1.0, %v1008
  %v1010 = vmul.f32 %v1007, %v1009
  %v1011 = vadd.f32 %v1007, %v1010
  %vm1012 = vweird.f32 %v671
  %vm1013 = vweird.f32 %v1007
  %vm1014 = vmor %vm1012, %vm1013
  %v1015 = vsel %vm1014, %v1007, %v1011
  %v1016 = vand.u32 2147483647, %v671
  %vm1017 = vcmp.eq.f32.partialorder %v1016, 8.507059e+37
  %v1018 = vand.u32 %v671, 2147483648
  %v1019 = vor.u32 1.1754944e-38, %v1018
  %v1020 = vsel %vm1017, %v1019, %v1015
  %v1021 = vmul.f32 1.0, %v1020
  %v1022 = vrcp.pop %v672
  %v1023 = vmul.f32 %v672, %v1022
  %v1024 = vsub.f32 1.0, %v1023
  %v1025 = vmul.f32 %v1022, %v1024
  %v1026 = vadd.f32 %v1022, %v1025
  %vm1027 = vweird.f32 %v672
  %vm1028 = vweird.f32 %v1022
  %vm1029 = vmor %vm1027, %vm1028
  %v1030 = vsel %vm1029, %v1022, %v1026
  %v1031 = vand.u32 2147483647, %v672
  %vm1032 = vcmp.eq.f32.partialorder %v1031, 8.507059e+37
  %v1033 = vand.u32 %v672, 2147483648
  %v1034 = vor.u32 1.1754944e-38, %v1033
  %v1035 = vsel %vm1032, %v1034, %v1030
  %v1036 = vmul.f32 1.0, %v1035
  %v1037 = vrcp.pop %v673
  %v1038 = vmul.f32 %v673, %v1037
  %v1039 = vsub.f32 1.0, %v1038
  %v1040 = vmul.f32 %v1037, %v1039
  %v1041 = vadd.f32 %v1037, %v1040
  %vm1042 = vweird.f32 %v673
  %vm1043 = vweird.f32 %v1037
  %vm1044 = vmor %vm1042, %vm1043
  %v1045 = vsel %vm1044, %v1037, %v1041
  %v1046 = vand.u32 2147483647, %v673
  %vm1047 = vcmp.eq.f32.partialorder %v1046, 8.507059e+37
  %v1048 = vand.u32 %v673, 2147483648
  %v1049 = vor.u32 1.1754944e-38, %v1048
  %v1050 = vsel %vm1047, %v1049, %v1045
  %v1051 = vmul.f32 1.0, %v1050
  %v1052 = vrcp.pop %v674
  %v1053 = vmul.f32 %v674, %v1052
  %v1054 = vsub.f32 1.0, %v1053
  %v1055 = vmul.f32 %v1052, %v1054
  %v1056 = vadd.f32 %v1052, %v1055
  %vm1057 = vweird.f32 %v674
  %vm1058 = vweird.f32 %v1052
  %vm1059 = vmor %vm1057, %vm1058
  %v1060 = vsel %vm1059, %v1052, %v1056
  %v1061 = vand.u32 2147483647, %v674
  %vm1062 = vcmp.eq.f32.partialorder %v1061, 8.507059e+37
  %v1063 = vand.u32 %v674, 2147483648
  %v1064 = vor.u32 1.1754944e-38, %v1063
  %v1065 = vsel %vm1062, %v1064, %v1060
  %v1066 = vmul.f32 1.0, %v1065
  %v1067 = vrcp.pop %v675
  %v1068 = vmul.f32 %v675, %v1067
  %v1069 = vsub.f32 1.0, %v1068
  %v1070 = vmul.f32 %v1067, %v1069
  %v1071 = vadd.f32 %v1067, %v1070
  %vm1072 = vweird.f32 %v675
  %vm1073 = vweird.f32 %v1067
  %vm1074 = vmor %vm1072, %vm1073
  %v1075 = vsel %vm1074, %v1067, %v1071
  %v1076 = vand.u32 2147483647, %v675
  %vm1077 = vcmp.eq.f32.partialorder %v1076, 8.507059e+37
  %v1078 = vand.u32 %v675, 2147483648
  %v1079 = vor.u32 1.1754944e-38, %v1078
  %v1080 = vsel %vm1077, %v1079, %v1075
  %v1081 = vmul.f32 1.0, %v1080
  %v1082 = vrcp.pop %v676
  %v1083 = vmul.f32 %v676, %v1082
  %v1084 = vsub.f32 1.0, %v1083
  %v1085 = vmul.f32 %v1082, %v1084
  %v1086 = vadd.f32 %v1082, %v1085
  %vm1087 = vweird.f32 %v676
  %vm1088 = vweird.f32 %v1082
  %vm1089 = vmor %vm1087, %vm1088
  %v1090 = vsel %vm1089, %v1082, %v1086
  %v1091 = vand.u32 2147483647, %v676
  %vm1092 = vcmp.eq.f32.partialorder %v1091, 8.507059e+37
  %v1093 = vand.u32 %v676, 2147483648
  %v1094 = vor.u32 1.1754944e-38, %v1093
  %v1095 = vsel %vm1092, %v1094, %v1090
  %v1096 = vmul.f32 1.0, %v1095
  %v1097 = vrcp.pop %v677
  %v1098 = vmul.f32 %v677, %v1097
  %v1099 = vsub.f32 1.0, %v1098
  %v1100 = vmul.f32 %v1097, %v1099
  %v1101 = vadd.f32 %v1097, %v1100
  %vm1102 = vweird.f32 %v677
  %vm1103 = vweird.f32 %v1097
  %vm1104 = vmor %vm1102, %vm1103
  %v1105 = vsel %vm1104, %v1097, %v1101
  %v1106 = vand.u32 2147483647, %v677
  %vm1107 = vcmp.eq.f32.partialorder %v1106, 8.507059e+37
  %v1108 = vand.u32 %v677, 2147483648
  %v1109 = vor.u32 1.1754944e-38, %v1108
  %v1110 = vsel %vm1107, %v1109, %v1105
  %v1111 = vmul.f32 1.0, %v1110
  %v1112 = vrcp.pop %v678
  %v1113 = vmul.f32 %v678, %v1112
  %v1114 = vsub.f32 1.0, %v1113
  %v1115 = vmul.f32 %v1112, %v1114
  %v1116 = vadd.f32 %v1112, %v1115
  %vm1117 = vweird.f32 %v678
  %vm1118 = vweird.f32 %v1112
  %vm1119 = vmor %vm1117, %vm1118
  %v1120 = vsel %vm1119, %v1112, %v1116
  %v1121 = vand.u32 2147483647, %v678
  %vm1122 = vcmp.eq.f32.partialorder %v1121, 8.507059e+37
  %v1123 = vand.u32 %v678, 2147483648
  %v1124 = vor.u32 1.1754944e-38, %v1123
  %v1125 = vsel %vm1122, %v1124, %v1120
  %v1126 = vmul.f32 1.0, %v1125
  %v1127 = vrcp.pop %v679
  %v1128 = vmul.f32 %v679, %v1127
  %v1129 = vsub.f32 1.0, %v1128
  %v1130 = vmul.f32 %v1127, %v1129
  %v1131 = vadd.f32 %v1127, %v1130
  %vm1132 = vweird.f32 %v679
  %vm1133 = vweird.f32 %v1127
  %vm1134 = vmor %vm1132, %vm1133
  %v1135 = vsel %vm1134, %v1127, %v1131
  %v1136 = vand.u32 2147483647, %v679
  %vm1137 = vcmp.eq.f32.partialorder %v1136, 8.507059e+37
  %v1138 = vand.u32 %v679, 2147483648
  %v1139 = vor.u32 1.1754944e-38, %v1138
  %v1140 = vsel %vm1137, %v1139, %v1135
  %v1141 = vmul.f32 1.0, %v1140
  %v1142 = vrcp.pop %v680
  %v1143 = vmul.f32 %v680, %v1142
  %v1144 = vsub.f32 1.0, %v1143
  %v1145 = vmul.f32 %v1142, %v1144
  %v1146 = vadd.f32 %v1142, %v1145
  %vm1147 = vweird.f32 %v680
  %vm1148 = vweird.f32 %v1142
  %vm1149 = vmor %vm1147, %vm1148
  %v1150 = vsel %vm1149, %v1142, %v1146
  %v1151 = vand.u32 2147483647, %v680
  %vm1152 = vcmp.eq.f32.partialorder %v1151, 8.507059e+37
  %v1153 = vand.u32 %v680, 2147483648
  %v1154 = vor.u32 1.1754944e-38, %v1153
  %v1155 = vsel %vm1152, %v1154, %v1150
  %v1156 = vmul.f32 1.0, %v1155
  %v1157 = vrcp.pop %v681
  %v1158 = vmul.f32 %v681, %v1157
  %v1159 = vsub.f32 1.0, %v1158
  %v1160 = vmul.f32 %v1157, %v1159
  %v1161 = vadd.f32 %v1157, %v1160
  %vm1162 = vweird.f32 %v681
  %vm1163 = vweird.f32 %v1157
  %vm1164 = vmor %vm1162, %vm1163
  %v1165 = vsel %vm1164, %v1157, %v1161
  %v1166 = vand.u32 2147483647, %v681
  %vm1167 = vcmp.eq.f32.partialorder %v1166, 8.507059e+37
  %v1168 = vand.u32 %v681, 2147483648
  %v1169 = vor.u32 1.1754944e-38, %v1168
  %v1170 = vsel %vm1167, %v1169, %v1165
  %v1171 = vmul.f32 1.0, %v1170
  %v1172 = vrcp.pop %v682
  %v1173 = vmul.f32 %v682, %v1172
  %v1174 = vsub.f32 1.0, %v1173
  %v1175 = vmul.f32 %v1172, %v1174
  %v1176 = vadd.f32 %v1172, %v1175
  %vm1177 = vweird.f32 %v682
  %vm1178 = vweird.f32 %v1172
  %vm1179 = vmor %vm1177, %vm1178
  %v1180 = vsel %vm1179, %v1172, %v1176
  %v1181 = vand.u32 2147483647, %v682
  %vm1182 = vcmp.eq.f32.partialorder %v1181, 8.507059e+37
  %v1183 = vand.u32 %v682, 2147483648
  %v1184 = vor.u32 1.1754944e-38, %v1183
  %v1185 = vsel %vm1182, %v1184, %v1180
  %v1186 = vmul.f32 1.0, %v1185
  %v1187 = vrcp.pop %v683
  %v1188 = vmul.f32 %v683, %v1187
  %v1189 = vsub.f32 1.0, %v1188
  %v1190 = vmul.f32 %v1187, %v1189
  %v1191 = vadd.f32 %v1187, %v1190
  %vm1192 = vweird.f32 %v683
  %vm1193 = vweird.f32 %v1187
  %vm1194 = vmor %vm1192, %vm1193
  %v1195 = vsel %vm1194, %v1187, %v1191
  %v1196 = vand.u32 2147483647, %v683
  %vm1197 = vcmp.eq.f32.partialorder %v1196, 8.507059e+37
  %v1198 = vand.u32 %v683, 2147483648
  %v1199 = vor.u32 1.1754944e-38, %v1198
  %v1200 = vsel %vm1197, %v1199, %v1195
  %v1201 = vmul.f32 1.0, %v1200
  %v1202 = vrcp.pop %v684
  %v1203 = vmul.f32 %v684, %v1202
  %v1204 = vsub.f32 1.0, %v1203
  %v1205 = vmul.f32 %v1202, %v1204
  %v1206 = vadd.f32 %v1202, %v1205
  %vm1207 = vweird.f32 %v684
  %vm1208 = vweird.f32 %v1202
  %vm1209 = vmor %vm1207, %vm1208
  %v1210 = vsel %vm1209, %v1202, %v1206
  %v1211 = vand.u32 2147483647, %v684
  %vm1212 = vcmp.eq.f32.partialorder %v1211, 8.507059e+37
  %v1213 = vand.u32 %v684, 2147483648
  %v1214 = vor.u32 1.1754944e-38, %v1213
  %v1215 = vsel %vm1212, %v1214, %v1210
  %v1216 = vmul.f32 1.0, %v1215
  %v1217 = vrcp.pop %v685
  %v1218 = vmul.f32 %v685, %v1217
  %v1219 = vsub.f32 1.0, %v1218
  %v1220 = vmul.f32 %v1217, %v1219
  %v1221 = vadd.f32 %v1217, %v1220
  %vm1222 = vweird.f32 %v685
  %vm1223 = vweird.f32 %v1217
  %vm1224 = vmor %vm1222, %vm1223
  %v1225 = vsel %vm1224, %v1217, %v1221
  %v1226 = vand.u32 2147483647, %v685
  %vm1227 = vcmp.eq.f32.partialorder %v1226, 8.507059e+37
  %v1228 = vand.u32 %v685, 2147483648
  %v1229 = vor.u32 1.1754944e-38, %v1228
  %v1230 = vsel %vm1227, %v1229, %v1225
  %v1231 = vmul.f32 1.0, %v1230
  %v1232 = vrcp.pop %v686
  %v1233 = vmul.f32 %v686, %v1232
  %v1234 = vsub.f32 1.0, %v1233
  %v1235 = vmul.f32 %v1232, %v1234
  %v1236 = vadd.f32 %v1232, %v1235
  %vm1237 = vweird.f32 %v686
  %vm1238 = vweird.f32 %v1232
  %vm1239 = vmor %vm1237, %vm1238
  %v1240 = vsel %vm1239, %v1232, %v1236
  %v1241 = vand.u32 2147483647, %v686
  %vm1242 = vcmp.eq.f32.partialorder %v1241, 8.507059e+37
  %v1243 = vand.u32 %v686, 2147483648
  %v1244 = vor.u32 1.1754944e-38, %v1243
  %v1245 = vsel %vm1242, %v1244, %v1240
  %v1246 = vmul.f32 1.0, %v1245
  %v1247 = vrcp.pop %v687
  %v1248 = vmul.f32 %v687, %v1247
  %v1249 = vsub.f32 1.0, %v1248
  %v1250 = vmul.f32 %v1247, %v1249
  %v1251 = vadd.f32 %v1247, %v1250
  %vm1252 = vweird.f32 %v687
  %vm1253 = vweird.f32 %v1247
  %vm1254 = vmor %vm1252, %vm1253
  %v1255 = vsel %vm1254, %v1247, %v1251
  %v1256 = vand.u32 2147483647, %v687
  %vm1257 = vcmp.eq.f32.partialorder %v1256, 8.507059e+37
  %v1258 = vand.u32 %v687, 2147483648
  %v1259 = vor.u32 1.1754944e-38, %v1258
  %v1260 = vsel %vm1257, %v1259, %v1255
  %v1261 = vmul.f32 1.0, %v1260
  %v1262 = vrcp.pop %v688
  %v1263 = vmul.f32 %v688, %v1262
  %v1264 = vsub.f32 1.0, %v1263
  %v1265 = vmul.f32 %v1262, %v1264
  %v1266 = vadd.f32 %v1262, %v1265
  %vm1267 = vweird.f32 %v688
  %vm1268 = vweird.f32 %v1262
  %vm1269 = vmor %vm1267, %vm1268
  %v1270 = vsel %vm1269, %v1262, %v1266
  %v1271 = vand.u32 2147483647, %v688
  %vm1272 = vcmp.eq.f32.partialorder %v1271, 8.507059e+37
  %v1273 = vand.u32 %v688, 2147483648
  %v1274 = vor.u32 1.1754944e-38, %v1273
  %v1275 = vsel %vm1272, %v1274, %v1270
  %v1276 = vmul.f32 1.0, %v1275
  %v1277 = vrcp.pop %v689
  %v1278 = vmul.f32 %v689, %v1277
  %v1279 = vsub.f32 1.0, %v1278
  %v1280 = vmul.f32 %v1277, %v1279
  %v1281 = vadd.f32 %v1277, %v1280
  %vm1282 = vweird.f32 %v689
  %vm1283 = vweird.f32 %v1277
  %vm1284 = vmor %vm1282, %vm1283
  %v1285 = vsel %vm1284, %v1277, %v1281
  %v1286 = vand.u32 2147483647, %v689
  %vm1287 = vcmp.eq.f32.partialorder %v1286, 8.507059e+37
  %v1288 = vand.u32 %v689, 2147483648
  %v1289 = vor.u32 1.1754944e-38, %v1288
  %v1290 = vsel %vm1287, %v1289, %v1285
  %v1291 = vmul.f32 1.0, %v1290
  %v1292 = vrcp.pop %v690
  %v1293 = vmul.f32 %v690, %v1292
  %v1294 = vsub.f32 1.0, %v1293
  %v1295 = vmul.f32 %v1292, %v1294
  %v1296 = vadd.f32 %v1292, %v1295
  %vm1297 = vweird.f32 %v690
  %vm1298 = vweird.f32 %v1292
  %vm1299 = vmor %vm1297, %vm1298
  %v1300 = vsel %vm1299, %v1292, %v1296
  %v1301 = vand.u32 2147483647, %v690
  %vm1302 = vcmp.eq.f32.partialorder %v1301, 8.507059e+37
  %v1303 = vand.u32 %v690, 2147483648
  %v1304 = vor.u32 1.1754944e-38, %v1303
  %v1305 = vsel %vm1302, %v1304, %v1300
  %v1306 = vmul.f32 1.0, %v1305
  %v1307 = vrcp.pop %v691
  %v1308 = vmul.f32 %v691, %v1307
  %v1309 = vsub.f32 1.0, %v1308
  %v1310 = vmul.f32 %v1307, %v1309
  %v1311 = vadd.f32 %v1307, %v1310
  %vm1312 = vweird.f32 %v691
  %vm1313 = vweird.f32 %v1307
  %vm1314 = vmor %vm1312, %vm1313
  %v1315 = vsel %vm1314, %v1307, %v1311
  %v1316 = vand.u32 2147483647, %v691
  %vm1317 = vcmp.eq.f32.partialorder %v1316, 8.507059e+37
  %v1318 = vand.u32 %v691, 2147483648
  %v1319 = vor.u32 1.1754944e-38, %v1318
  %v1320 = vsel %vm1317, %v1319, %v1315
  %v1321 = vmul.f32 1.0, %v1320
  %v1322 = vrcp.pop %v692
  %v1323 = vmul.f32 %v692, %v1322
  %v1324 = vsub.f32 1.0, %v1323
  %v1325 = vmul.f32 %v1322, %v1324
  %v1326 = vadd.f32 %v1322, %v1325
  %vm1327 = vweird.f32 %v692
  %vm1328 = vweird.f32 %v1322
  %vm1329 = vmor %vm1327, %vm1328
  %v1330 = vsel %vm1329, %v1322, %v1326
  %v1331 = vand.u32 2147483647, %v692
  %vm1332 = vcmp.eq.f32.partialorder %v1331, 8.507059e+37
  %v1333 = vand.u32 %v692, 2147483648
  %v1334 = vor.u32 1.1754944e-38, %v1333
  %v1335 = vsel %vm1332, %v1334, %v1330
  %v1336 = vmul.f32 1.0, %v1335
  %v1337 = vrcp.pop %v693
  %v1338 = vmul.f32 %v693, %v1337
  %v1339 = vsub.f32 1.0, %v1338
  %v1340 = vmul.f32 %v1337, %v1339
  %v1341 = vadd.f32 %v1337, %v1340
  %vm1342 = vweird.f32 %v693
  %vm1343 = vweird.f32 %v1337
  %vm1344 = vmor %vm1342, %vm1343
  %v1345 = vsel %vm1344, %v1337, %v1341
  %v1346 = vand.u32 2147483647, %v693
  %vm1347 = vcmp.eq.f32.partialorder %v1346, 8.507059e+37
  %v1348 = vand.u32 %v693, 2147483648
  %v1349 = vor.u32 1.1754944e-38, %v1348
  %v1350 = vsel %vm1347, %v1349, %v1345
  %v1351 = vmul.f32 1.0, %v1350
  %v1352 = vrcp.pop %v694
  %v1353 = vmul.f32 %v694, %v1352
  %v1354 = vsub.f32 1.0, %v1353
  %v1355 = vmul.f32 %v1352, %v1354
  %v1356 = vadd.f32 %v1352, %v1355
  %vm1357 = vweird.f32 %v694
  %vm1358 = vweird.f32 %v1352
  %vm1359 = vmor %vm1357, %vm1358
  %v1360 = vsel %vm1359, %v1352, %v1356
  %v1361 = vand.u32 2147483647, %v694
  %vm1362 = vcmp.eq.f32.partialorder %v1361, 8.507059e+37
  %v1363 = vand.u32 %v694, 2147483648
  %v1364 = vor.u32 1.1754944e-38, %v1363
  %v1365 = vsel %vm1362, %v1364, %v1360
  %v1366 = vmul.f32 1.0, %v1365
  %v1367 = vrcp.pop %v695
  %v1368 = vmul.f32 %v695, %v1367
  %v1369 = vsub.f32 1.0, %v1368
  %v1370 = vmul.f32 %v1367, %v1369
  %v1371 = vadd.f32 %v1367, %v1370
  %vm1372 = vweird.f32 %v695
  %vm1373 = vweird.f32 %v1367
  %vm1374 = vmor %vm1372, %vm1373
  %v1375 = vsel %vm1374, %v1367, %v1371
  %v1376 = vand.u32 2147483647, %v695
  %vm1377 = vcmp.eq.f32.partialorder %v1376, 8.507059e+37
  %v1378 = vand.u32 %v695, 2147483648
  %v1379 = vor.u32 1.1754944e-38, %v1378
  %v1380 = vsel %vm1377, %v1379, %v1375
  %v1381 = vmul.f32 1.0, %v1380
  %v1382 = vrcp.pop %v696
  %v1383 = vmul.f32 %v696, %v1382
  %v1384 = vsub.f32 1.0, %v1383
  %v1385 = vmul.f32 %v1382, %v1384
  %v1386 = vadd.f32 %v1382, %v1385
  %vm1387 = vweird.f32 %v696
  %vm1388 = vweird.f32 %v1382
  %vm1389 = vmor %vm1387, %vm1388
  %v1390 = vsel %vm1389, %v1382, %v1386
  %v1391 = vand.u32 2147483647, %v696
  %vm1392 = vcmp.eq.f32.partialorder %v1391, 8.507059e+37
  %v1393 = vand.u32 %v696, 2147483648
  %v1394 = vor.u32 1.1754944e-38, %v1393
  %v1395 = vsel %vm1392, %v1394, %v1390
  %v1396 = vmul.f32 1.0, %v1395
  %v1397 = vrcp.pop %v697
  %v1398 = vmul.f32 %v697, %v1397
  %v1399 = vsub.f32 1.0, %v1398
  %v1400 = vmul.f32 %v1397, %v1399
  %v1401 = vadd.f32 %v1397, %v1400
  %vm1402 = vweird.f32 %v697
  %vm1403 = vweird.f32 %v1397
  %vm1404 = vmor %vm1402, %vm1403
  %v1405 = vsel %vm1404, %v1397, %v1401
  %v1406 = vand.u32 2147483647, %v697
  %vm1407 = vcmp.eq.f32.partialorder %v1406, 8.507059e+37
  %v1408 = vand.u32 %v697, 2147483648
  %v1409 = vor.u32 1.1754944e-38, %v1408
  %v1410 = vsel %vm1407, %v1409, %v1405
  %v1411 = vmul.f32 1.0, %v1410
  %v1412 = vrcp.pop %v698
  %v1413 = vmul.f32 %v698, %v1412
  %v1414 = vsub.f32 1.0, %v1413
  %v1415 = vmul.f32 %v1412, %v1414
  %v1416 = vadd.f32 %v1412, %v1415
  %vm1417 = vweird.f32 %v698
  %vm1418 = vweird.f32 %v1412
  %vm1419 = vmor %vm1417, %vm1418
  %v1420 = vsel %vm1419, %v1412, %v1416
  %v1421 = vand.u32 2147483647, %v698
  %vm1422 = vcmp.eq.f32.partialorder %v1421, 8.507059e+37
  %v1423 = vand.u32 %v698, 2147483648
  %v1424 = vor.u32 1.1754944e-38, %v1423
  %v1425 = vsel %vm1422, %v1424, %v1420
  %v1426 = vmul.f32 1.0, %v1425
  %v1427 = vrcp.pop %v699
  %v1428 = vmul.f32 %v699, %v1427
  %v1429 = vsub.f32 1.0, %v1428
  %v1430 = vmul.f32 %v1427, %v1429
  %v1431 = vadd.f32 %v1427, %v1430
  %vm1432 = vweird.f32 %v699
  %vm1433 = vweird.f32 %v1427
  %vm1434 = vmor %vm1432, %vm1433
  %v1435 = vsel %vm1434, %v1427, %v1431
  %v1436 = vand.u32 2147483647, %v699
  %vm1437 = vcmp.eq.f32.partialorder %v1436, 8.507059e+37
  %v1438 = vand.u32 %v699, 2147483648
  %v1439 = vor.u32 1.1754944e-38, %v1438
  %v1440 = vsel %vm1437, %v1439, %v1435
  %v1441 = vmul.f32 1.0, %v1440
  %v1442 = vrcp.pop %v700
  %v1443 = vmul.f32 %v700, %v1442
  %v1444 = vsub.f32 1.0, %v1443
  %v1445 = vmul.f32 %v1442, %v1444
  %v1446 = vadd.f32 %v1442, %v1445
  %vm1447 = vweird.f32 %v700
  %vm1448 = vweird.f32 %v1442
  %vm1449 = vmor %vm1447, %vm1448
  %v1450 = vsel %vm1449, %v1442, %v1446
  %v1451 = vand.u32 2147483647, %v700
  %vm1452 = vcmp.eq.f32.partialorder %v1451, 8.507059e+37
  %v1453 = vand.u32 %v700, 2147483648
  %v1454 = vor.u32 1.1754944e-38, %v1453
  %v1455 = vsel %vm1452, %v1454, %v1450
  %v1456 = vmul.f32 1.0, %v1455
  %v1457 = vrcp.pop %v701
  %v1458 = vmul.f32 %v701, %v1457
  %v1459 = vsub.f32 1.0, %v1458
  %v1460 = vmul.f32 %v1457, %v1459
  %v1461 = vadd.f32 %v1457, %v1460
  %vm1462 = vweird.f32 %v701
  %vm1463 = vweird.f32 %v1457
  %vm1464 = vmor %vm1462, %vm1463
  %v1465 = vsel %vm1464, %v1457, %v1461
  %v1466 = vand.u32 2147483647, %v701
  %vm1467 = vcmp.eq.f32.partialorder %v1466, 8.507059e+37
  %v1468 = vand.u32 %v701, 2147483648
  %v1469 = vor.u32 1.1754944e-38, %v1468
  %v1470 = vsel %vm1467, %v1469, %v1465
  %v1471 = vmul.f32 1.0, %v1470
  %v1472 = vrcp.pop %v702
  %v1473 = vmul.f32 %v702, %v1472
  %v1474 = vsub.f32 1.0, %v1473
  %v1475 = vmul.f32 %v1472, %v1474
  %v1476 = vadd.f32 %v1472, %v1475
  %vm1477 = vweird.f32 %v702
  %vm1478 = vweird.f32 %v1472
  %vm1479 = vmor %vm1477, %vm1478
  %v1480 = vsel %vm1479, %v1472, %v1476
  %v1481 = vand.u32 2147483647, %v702
  %vm1482 = vcmp.eq.f32.partialorder %v1481, 8.507059e+37
  %v1483 = vand.u32 %v702, 2147483648
  %v1484 = vor.u32 1.1754944e-38, %v1483
  %v1485 = vsel %vm1482, %v1484, %v1480
  %v1486 = vmul.f32 1.0, %v1485
  %v1487 = vrcp.pop %v703
  %v1488 = vmul.f32 %v703, %v1487
  %v1489 = vsub.f32 1.0, %v1488
  %v1490 = vmul.f32 %v1487, %v1489
  %v1491 = vadd.f32 %v1487, %v1490
  %vm1492 = vweird.f32 %v703
  %vm1493 = vweird.f32 %v1487
  %vm1494 = vmor %vm1492, %vm1493
  %v1495 = vsel %vm1494, %v1487, %v1491
  %v1496 = vand.u32 2147483647, %v703
  %vm1497 = vcmp.eq.f32.partialorder %v1496, 8.507059e+37
  %v1498 = vand.u32 %v703, 2147483648
  %v1499 = vor.u32 1.1754944e-38, %v1498
  %v1500 = vsel %vm1497, %v1499, %v1495
  %v1501 = vmul.f32 1.0, %v1500
  %v1502 = vrcp.pop %v704
  %v1503 = vmul.f32 %v704, %v1502
  %v1504 = vsub.f32 1.0, %v1503
  %v1505 = vmul.f32 %v1502, %v1504
  %v1506 = vadd.f32 %v1502, %v1505
  %vm1507 = vweird.f32 %v704
  %vm1508 = vweird.f32 %v1502
  %vm1509 = vmor %vm1507, %vm1508
  %v1510 = vsel %vm1509, %v1502, %v1506
  %v1511 = vand.u32 2147483647, %v704
  %vm1512 = vcmp.eq.f32.partialorder %v1511, 8.507059e+37
  %v1513 = vand.u32 %v704, 2147483648
  %v1514 = vor.u32 1.1754944e-38, %v1513
  %v1515 = vsel %vm1512, %v1514, %v1510
  %v1516 = vmul.f32 1.0, %v1515
  %v1517 = vrcp.pop %v705
  %v1518 = vmul.f32 %v705, %v1517
  %v1519 = vsub.f32 1.0, %v1518
  %v1520 = vmul.f32 %v1517, %v1519
  %v1521 = vadd.f32 %v1517, %v1520
  %vm1522 = vweird.f32 %v705
  %vm1523 = vweird.f32 %v1517
  %vm1524 = vmor %vm1522, %vm1523
  %v1525 = vsel %vm1524, %v1517, %v1521
  %v1526 = vand.u32 2147483647, %v705
  %vm1527 = vcmp.eq.f32.partialorder %v1526, 8.507059e+37
  %v1528 = vand.u32 %v705, 2147483648
  %v1529 = vor.u32 1.1754944e-38, %v1528
  %v1530 = vsel %vm1527, %v1529, %v1525
  %v1531 = vmul.f32 1.0, %v1530
  %v1532 = vrcp.pop %v706
  %v1533 = vmul.f32 %v706, %v1532
  %v1534 = vsub.f32 1.0, %v1533
  %v1535 = vmul.f32 %v1532, %v1534
  %v1536 = vadd.f32 %v1532, %v1535
  %vm1537 = vweird.f32 %v706
  %vm1538 = vweird.f32 %v1532
  %vm1539 = vmor %vm1537, %vm1538
  %v1540 = vsel %vm1539, %v1532, %v1536
  %v1541 = vand.u32 2147483647, %v706
  %vm1542 = vcmp.eq.f32.partialorder %v1541, 8.507059e+37
  %v1543 = vand.u32 %v706, 2147483648
  %v1544 = vor.u32 1.1754944e-38, %v1543
  %v1545 = vsel %vm1542, %v1544, %v1540
  %v1546 = vmul.f32 1.0, %v1545
  %1547 = vst [vmem:[%s3] sm:$0xff] %v721
  %1548 = vst [vmem:[%s3 + $0x8] sm:$0xff] %v736
  %1549 = vst [vmem:[%s3 + $0x10] sm:$0xff] %v751
  %1550 = vst [vmem:[%s3 + $0x18] sm:$0xff] %v766
  %1551 = vst [vmem:[%s3 + $0x20] sm:$0xff] %v781
  %1552 = vst [vmem:[%s3 + $0x28] sm:$0xff] %v796
  %vm1553 = vcmask 932864
  %1554 = vst.msk [vmem:[%s3 + $0x30] sm:$0xff] %vm1553, %v811
  %1555 = vst [vmem:[%s3 + $0x38] sm:$0xff] %v826
  %1556 = vst [vmem:[%s3 + $0x40] sm:$0xff] %v841
  %1557 = vst [vmem:[%s3 + $0x48] sm:$0xff] %v856
  %1558 = vst [vmem:[%s3 + $0x50] sm:$0xff] %v871
  %1559 = vst [vmem:[%s3 + $0x58] sm:$0xff] %v886
  %1560 = vst [vmem:[%s3 + $0x60] sm:$0xff] %v901
  %1561 = vst.msk [vmem:[%s3 + $0x68] sm:$0xff] %vm1553, %v916
  %1562 = vst [vmem:[%s3 + $0x70] sm:$0xff] %v931
  %1563 = vst [vmem:[%s3 + $0x78] sm:$0xff] %v946
  %1564 = vst [vmem:[%s3 + $0x80] sm:$0xff] %v961
  %1565 = vst [vmem:[%s3 + $0x88] sm:$0xff] %v976
  %1566 = vst [vmem:[%s3 + $0x90] sm:$0xff] %v991
  %1567 = vst [vmem:[%s3 + $0x98] sm:$0xff] %v1006
  %1568 = vst.msk [vmem:[%s3 + $0xa0] sm:$0xff] %vm1553, %v1021
  %1569 = vst [vmem:[%s3 + $0xa8] sm:$0xff] %v1036
  %1570 = vst [vmem:[%s3 + $0xb0] sm:$0xff] %v1051
  %1571 = vst [vmem:[%s3 + $0xb8] sm:$0xff] %v1066
  %1572 = vst [vmem:[%s3 + $0xc0] sm:$0xff] %v1081
  %1573 = vst [vmem:[%s3 + $0xc8] sm:$0xff] %v1096
  %1574 = vst [vmem:[%s3 + $0xd0] sm:$0xff] %v1111
  %1575 = vst.msk [vmem:[%s3 + $0xd8] sm:$0xff] %vm1553, %v1126
  %1576 = vst [vmem:[%s3 + $0xe0] sm:$0xff] %v1141
  %1577 = vst [vmem:[%s3 + $0xe8] sm:$0xff] %v1156
  %1578 = vst [vmem:[%s3 + $0xf0] sm:$0xff] %v1171
  %1579 = vst [vmem:[%s3 + $0xf8] sm:$0xff] %v1186
  %1580 = vst [vmem:[%s3 + $0x100] sm:$0xff] %v1201
  %1581 = vst [vmem:[%s3 + $0x108] sm:$0xff] %v1216
  %1582 = vst.msk [vmem:[%s3 + $0x110] sm:$0xff] %vm1553, %v1231
  %1583 = vst [vmem:[%s3 + $0x118] sm:$0xff] %v1246
  %1584 = vst [vmem:[%s3 + $0x120] sm:$0xff] %v1261
  %1585 = vst [vmem:[%s3 + $0x128] sm:$0xff] %v1276
  %1586 = vst [vmem:[%s3 + $0x130] sm:$0xff] %v1291
  %1587 = vst [vmem:[%s3 + $0x138] sm:$0xff] %v1306
  %1588 = vst [vmem:[%s3 + $0x140] sm:$0xff] %v1321
  %1589 = vst.msk [vmem:[%s3 + $0x148] sm:$0xff] %vm1553, %v1336
  %1590 = vst [vmem:[%s3 + $0x150] sm:$0xff] %v1351
  %1591 = vst [vmem:[%s3 + $0x158] sm:$0xff] %v1366
  %1592 = vst [vmem:[%s3 + $0x160] sm:$0xff] %v1381
  %1593 = vst [vmem:[%s3 + $0x168] sm:$0xff] %v1396
  %1594 = vst [vmem:[%s3 + $0x170] sm:$0xff] %v1411
  %1595 = vst [vmem:[%s3 + $0x178] sm:$0xff] %v1426
  %1596 = vst.msk [vmem:[%s3 + $0x180] sm:$0xff] %vm1553, %v1441
  %1597 = vst [vmem:[%s3 + $0x188] sm:$0xff] %v1456
  %1598 = vst [vmem:[%s3 + $0x190] sm:$0xff] %v1471
  %1599 = vst [vmem:[%s3 + $0x198] sm:$0xff] %v1486
  %1600 = vst [vmem:[%s3 + $0x1a0] sm:$0xff] %v1501
  %1601 = vst [vmem:[%s3 + $0x1a8] sm:$0xff] %v1516
  %1602 = vst [vmem:[%s3 + $0x1b0] sm:$0xff] %v1531
  %1603 = vst.msk [vmem:[%s3 + $0x1b8] sm:$0xff] %vm1553, %v1546
  // Predicated region
  $region14: #{vae_forward.13} parent=0 // pred_check
    _
  $region15: #{vae_forward.13} parent=0 // pred_check_branch
    %1605 = sbr.rel (0) target = $region17
  $region16: #{vae_forward.13} parent=0 // pred_region
    _
  $region17: #{vae_forward.13} parent=0 // pred_fallthru
    _
  // Predicated region
  $region18: #{vae_forward.13} parent=0 // pred_check
    _
  $region19: #{vae_forward.13} parent=0 // pred_check_branch
    %1607 = sbr.rel (0) target = $region21
  $region20: #{vae_forward.13} parent=0 // pred_region
    _
  $region21: #{vae_forward.13} parent=0 // pred_fallthru
    _

</llo_original>
